<compile_context>
chip_gen: v5e
topology: v5e:2x2
jax: 0.10.0
libtpu: 0.0.40
codegen_flags: <defaults>
</compile_context>

<pallas_src>
import functools
import math

import jax
import jax.numpy as jnp
import numpy as np
from jax.experimental import pallas as pl
from jax.experimental.pallas import tpu as pltpu

# ----------------------- hyper-parameters (small) ---------------------------
N_NODES = 6
N_EDGES = 10
LMAX = 3
SB = (LMAX + 1) ** 2            # 16 : sphere_basis
SBR = 1 + 3 * LMAX              # 10 : sphere_basis_reduce (mmax=1 truncation)
CS = 32                         # sphere_channels
CR = 16                         # sphere_channels_reduce
CL0 = 16                        # sphere_channels_l0
HID = 32                        # hidden_channels
NG = 8                          # num_gaussians
NB = 8                          # num_basis_functions
MAXEL = 10                      # max_num_elements
NBANDS = 2                      # sphharm.num_bands
GH, GW = 4, 8
HW = GH * GW
BRANCH = 5
CUTOFF = 6.0
INV_SQRT_3 = 1.0 / math.sqrt(3.0)
TWO_THIRDS = 2.0 / 3.0          # matches self.inv_3 = 2/3 in the reference
COEFF = -0.5 / (CUTOFF / (NG - 1)) ** 2    # gaussian smearing coefficient
M_IDX = [0] + sum([[i * i + i - 1, i * i + i, i * i + i + 1]
                   for i in range(1, LMAX + 1)], [])   # [0,1,2,3,5,6,7,11,12,13]


def _silu(x):
    return x * jax.nn.sigmoid(x)


def _vmem(n):
    return [pl.BlockSpec(memory_space=pltpu.MemorySpace.VMEM) for _ in range(n)]


# ----------------------------- Pallas kernels -------------------------------
# Kernel A: downsample + equivariant layer norm + (Rotate | m-select), per node.
# All tensors kept in lane-dense (node, feature) layout; structure operators
# (kron of downsample / rotation with identity, degree indicators) are
# precomputed so the kernel is pure 2D matmuls + elementwise.
def _node_prep_kernel(x_ref, kdown_ref, sel0_ref, mask0_ref, dn_ref, dl_ref,
                      wln_ref, kr_ref, down_ref, rot_ref):
    x = x_ref[...]                                                     # (n, SB*CS)
    xd = jnp.dot(x, kdown_ref[...], preferred_element_type=jnp.float32)  # (n, SB*CR)
    down_ref[...] = xd
    # equivariant layer norm (degree-wise RMS; l=0 gets channel-mean removed)
    # TODO(synk): EquivariantLayerNormV2_channel source unavailable; this is the
    # same educated-guess normalization as before, expressed as matmuls.
    m0 = jnp.dot(xd, sel0_ref[...], preferred_element_type=jnp.float32)   # (n, 1)
    xc = xd - m0 * mask0_ref[...]
    norms = jnp.dot(xc * xc, dn_ref[...], preferred_element_type=jnp.float32)  # (n, L+1)
    scales = jnp.dot(jax.lax.rsqrt(norms + 1e-5), dl_ref[...],
                     preferred_element_type=jnp.float32)                  # (n, SB*CR)
    x_in = xc * scales * wln_ref[...] * INV_SQRT_3
    # fused [Rotate ; m-select] operator (edge-independent placeholder rotation)
    rot_ref[...] = jnp.dot(x_in, kr_ref[...], preferred_element_type=jnp.float32)


def node_prep(x_flat, prep):
    n = x_flat.shape[0]
    args = (x_flat, prep["kdown"], prep["sel0"], prep["mask0"], prep["dn"],
            prep["dl"], prep["wln"], prep["kr"])
    outs = (jax.ShapeDtypeStruct((n, SB * CR), jnp.float32),
            jax.ShapeDtypeStruct((n, 2 * SBR * CR), jnp.float32))
    return pl.pallas_call(
        _node_prep_kernel,
        out_shape=outs,
        in_specs=_vmem(len(args)),
        out_specs=tuple(_vmem(2)),
    )(*args)


# Kernel B: the whole per-edge path fused into one call.  The edge dimension is
# padded to a multiple of 8 (sublanes) so all group stacking / unstacking is
# done with aligned concatenation / static slicing (no selection matmuls).
def _edge_kernel(d_ref, emb_ref, st_ref, stk1_ref, stk2_ref,
                 off_ref, wd1, bd1, wd2, bd2,
                 wf1, bf1, wf2, bf2,
                 wg1e, wg1t, bg1, wg2, bg2,
                 wn11, bn11, wn12, bn12,
                 wn21, bn21, wn22, bn22,
                 t0, t1, t2, krinv,
                 msg_ref, xe_ref, *, coeff, ep):
    # ---- DistanceBlock: gaussian smearing + fc1_dist + embeddings + fc1_edge_attr
    d = d_ref[...]                                                    # (Ep, 1)
    xdist = jnp.exp(coeff * (d - off_ref[...]) ** 2)                  # (Ep, NG)
    xdist = jnp.dot(xdist, wd1[...], preferred_element_type=jnp.float32) + bd1[...]
    h = _silu(emb_ref[...] + xdist)
    x_edge = _silu(jnp.dot(h, wd2[...], preferred_element_type=jnp.float32) + bd2[...])
    xe_ref[...] = x_edge                                              # (Ep, NB)

    # ---- MessageBlock edge MLPs
    xe_h = _silu(jnp.dot(x_edge, wf1[...], preferred_element_type=jnp.float32) + bf1[...])
    xe_c = _silu(jnp.dot(x_edge, wf2[...], preferred_element_type=jnp.float32) + bf2[...])

    # ---- MOE gate (mode='message'): relu -> sigmoid
    hg = jnp.maximum(
        jnp.dot(x_edge, wg1e[...], preferred_element_type=jnp.float32)
        + jnp.dot(st_ref[...], wg1t[...], preferred_element_type=jnp.float32)
        + bg1[...], 0.0)
    gate = jax.nn.sigmoid(jnp.dot(hg, wg2[...], preferred_element_type=jnp.float32)
                          + bg2[...])                                  # (Ep, BRANCH*CR)

    # ---- node_interaction1 for source & target merged (shared weights):
    # stacked1 = [rot_src; rot_tgt; red_src; red_tgt]  -> one (4Ep, SBR*CR) LHS
    h1 = _silu(jnp.dot(stk1_ref[...], wn11[...], preferred_element_type=jnp.float32)
               + bn11[...])                                            # (4Ep, HID)
    h1 = h1 * jnp.concatenate([xe_c, xe_c, xe_c, xe_c], axis=0)        # aligned tile
    h1 = _silu(jnp.dot(h1, wn12[...], preferred_element_type=jnp.float32)
               + bn12[...])                                            # (4Ep, SBR*CR)
    ni_a = h1[0 * ep:1 * ep] + h1[2 * ep:3 * ep]                       # (Ep, SBR*CR)
    ni_b = h1[1 * ep:2 * ep] + h1[3 * ep:4 * ep]

    # ---- node_interaction2: stacked2 = [rot_src+rot_tgt; red_src+red_tgt]
    h2 = _silu(jnp.dot(stk2_ref[...], wn21[...], preferred_element_type=jnp.float32)
               + bn21[...])                                            # (2Ep, HID)
    h2 = h2 * jnp.concatenate([xe_h, xe_h], axis=0)
    h2 = _silu(jnp.dot(h2, wn22[...], preferred_element_type=jnp.float32)
               + bn22[...])                                            # (2Ep, SBR*CR)
    ni_c = h2[0:ep] + h2[ep:2 * ep]                                    # (Ep, SBR*CR)

    # ---- gated branch combination (branch->lane tiles built by tiny matmuls)
    g0 = jnp.dot(gate, t0[...], preferred_element_type=jnp.float32)
    g1 = jnp.dot(gate, t1[...], preferred_element_type=jnp.float32)
    g2 = jnp.dot(gate, t2[...], preferred_element_type=jnp.float32)
    nm = ni_a * g0 + ni_b * g1 + g2 * ni_c                             # (Ep, SBR*CR)

    # ---- RotateInv as a kron(Rinv^T, I_CR) matmul -> lane-dense (Ep, SB*CR)
    msg_ref[...] = jnp.dot(nm, krinv[...], preferred_element_type=jnp.float32)


def fused_edge_block(d, emb_sum, st_cat, stacked1, stacked2, prep):
    ep = d.shape[0]                                                    # padded edge count
    kern = functools.partial(_edge_kernel, coeff=COEFF, ep=ep)
    args = (d, emb_sum, st_cat, stacked1, stacked2,
            prep["offsets"], prep["wd1"], prep["bd1"], prep["wd2"], prep["bd2"],
            prep["wf1"], prep["bf1"], prep["wf2"], prep["bf2"],
            prep["wg1e"], prep["wg1t"], prep["bg1"], prep["wg2"], prep["bg2"],
            prep["wn11"], prep["bn11"], prep["wn12"], prep["bn12"],
            prep["wn21"], prep["bn21"], prep["wn22"], prep["bn22"],
            prep["t0"], prep["t1"], prep["t2"], prep["krinv"])
    outs = (jax.ShapeDtypeStruct((ep, SB * CR), jnp.float32),
            jax.ShapeDtypeStruct((ep, NB), jnp.float32))
    return pl.pallas_call(
        kern,
        out_shape=outs,
        in_specs=_vmem(len(args)),
        out_specs=tuple(_vmem(2)),
    )(*args)


# Kernel C: grid 1x1 convs + SE attention + FromGrid + upsample + time update.
# Single block over all (node, grid-point) rows; GAP / SE broadcast / FromGrid
# are block-structured matmuls.
def _grid_time_kernel(xg_ref, inv_ref, t_ref,
                      w1, b1, w2, b2, s1, sb1, s2, sb2, w3, b3,
                      pgap, sup, bigf, wup, wt, bt,
                      xnew_ref, tnew_ref):
    xg = xg_ref[...]                                                   # (n*HW, 4*NB*CR)
    h1 = _silu(jnp.dot(xg, w1[...], preferred_element_type=jnp.float32) + b1[...])
    h2 = _silu(jnp.dot(h1, w2[...], preferred_element_type=jnp.float32) + b2[...])
    gap = jnp.dot(pgap[...], h2, preferred_element_type=jnp.float32)   # (n, 2*CR)
    se = jnp.maximum(jnp.dot(gap, s1[...], preferred_element_type=jnp.float32)
                     + sb1[...], 0.0)
    se = jax.nn.sigmoid(jnp.dot(se, s2[...], preferred_element_type=jnp.float32)
                        + sb2[...])                                    # (n, 2*CR)
    h2 = h2 * jnp.dot(sup[...], se, preferred_element_type=jnp.float32)
    h3 = jnp.dot(h2, w3[...], preferred_element_type=jnp.float32) + b3[...]  # (n*HW, CR)
    xn = jnp.dot(bigf[...], h3, preferred_element_type=jnp.float32)    # (n*SB, CR)
    xnew_ref[...] = jnp.dot(xn, wup[...], preferred_element_type=jnp.float32)  # (n*SB, CS)
    # time update (time_flag == 1): silu(fc_edge(inv_edge) * 2/3 + x_time)
    ht = jnp.dot(inv_ref[...], wt[...], preferred_element_type=jnp.float32) + bt[...]
    tnew_ref[...] = _silu(ht * TWO_THIRDS + t_ref[...])


def grid_time_block(xg, inv_edge, x_time, prep):
    n = inv_edge.shape[0]
    args = (xg, inv_edge, x_time,
            prep["gw1"], prep["gb1"], prep["gw2"], prep["gb2"],
            prep["gs1"], prep["gsb1"], prep["gs2"], prep["gsb2"],
            prep["gw3"], prep["gb3"],
            prep["pgap"], prep["sup"], prep["bigf"], prep["upsample"],
            prep["wt"], prep["bt"])
    outs = (jax.ShapeDtypeStruct((n * SB, CS), jnp.float32),
            jax.ShapeDtypeStruct((n, CL0), jnp.float32))
    return pl.pallas_call(
        _grid_time_kernel,
        out_shape=outs,
        in_specs=_vmem(len(args)),
        out_specs=tuple(_vmem(2)),
    )(*args)


# ------------------------------- glue (JAX) ---------------------------------
@functools.partial(jax.jit, static_argnums=(8,))
def edge_block_forward(prep, x, x_time, atomic_numbers, edge_distance,
                       edge_vec, edge_index, edge_sh, cutoff_index):
    # TODO(synk): e3nn CG tensor-product branches (gate branches 3 & 4) and the
    # per-edge Wigner-D rotation depend on external implementations; they are
    # omitted / replaced by fixed synthesized operators (edge_vec/edge_sh unused).
    del edge_vec, edge_sh
    n = x.shape[0]
    s0, e0 = cutoff_index
    E = e0 - s0
    Ep = ((E + 7) // 8) * 8                 # pad edges to a sublane multiple
    pad = Ep - E
    ei = edge_index[:, s0:e0]
    ei0 = jnp.pad(ei[0], (0, pad))          # pads with node index 0 (valid)
    ei1 = jnp.pad(ei[1], (0, pad))
    valid = (jnp.arange(Ep) < E).astype(jnp.float32)[:, None]

    # ---- kernel A: downsample + layer norm + rotate/m-select (per node)
    x_down_flat, x_rotred = node_prep(x.reshape(n, SB * CS), prep)

    # ---- per-edge gathers / stacking (glue)
    d = jnp.pad(edge_distance[s0:e0, None], ((0, pad), (0, 0)), constant_values=1.0)
    emb_sum = (prep["src_emb"][atomic_numbers[ei0]]
               + prep["tgt_emb"][atomic_numbers[ei1]])
    st_cat = jnp.concatenate([x_time[ei0], x_time[ei1]], axis=1)
    rr_src = x_rotred[ei0]
    rr_tgt = x_rotred[ei1]
    rot_src, red_src = rr_src[:, :SBR * CR], rr_src[:, SBR * CR:]
    rot_tgt, red_tgt = rr_tgt[:, :SBR * CR], rr_tgt[:, SBR * CR:]
    stacked1 = jnp.concatenate([rot_src, rot_tgt, red_src, red_tgt], axis=0)
    stacked2 = jnp.concatenate([rot_src + rot_tgt, red_src + red_tgt], axis=0)

    # ---- kernel B: fused edge path -> per-edge message + x_edge
    msg_flat, x_edge = fused_edge_block(d, emb_sum, st_cat, stacked1, stacked2, prep)
    msg_flat = msg_flat * valid             # zero out padded edges before scatter
    x_edge = x_edge * valid

    # ---- scatters (glue)
    x_new = jnp.zeros((n, SB, CR), jnp.float32).at[ei1].add(msg_flat.reshape(Ep, SB, CR))
    inv_edge = jnp.zeros((n, NB), jnp.float32).at[ei1].add(x_edge)

    # ---- ToGrid_inv (glue einsum on KB-sized tensors)
    # TODO(synk): sphharm.ToGrid_inv / FromGrid matrices are external precomputed
    # spherical-harmonic grids; deterministically synthesized matrices are used.
    x_down = x_down_flat.reshape(n, SB, CR)
    g1 = jnp.einsum("bgs,nsc->ngbc", prep["to_grid"], x_down).reshape(n, HW, 2 * NBANDS * CR)
    g2 = jnp.einsum("bgs,nsc->ngbc", prep["to_grid"], x_new).reshape(n, HW, 2 * NBANDS * CR)
    xg = jnp.concatenate([g1, g2], axis=-1).reshape(n * HW, 4 * NBANDS * CR)

    # ---- kernel C: grid SE path + FromGrid + upsample + time update
    x_up_flat, x_new_time = grid_time_block(xg, inv_edge, x_time, prep)
    return x_up_flat.reshape(n, SB, CS), x_new_time


# ----------------------------- parameter init -------------------------------
def init_params(key):
    keys = iter(jax.random.split(key, 64))

    def lin(kin, kout):
        s = 1.0 / math.sqrt(kin)
        return jax.random.uniform(next(keys), (kin, kout), jnp.float32, -s, s)

    def bias(kout, kin):
        s = 1.0 / math.sqrt(kin)
        return jax.random.uniform(next(keys), (1, kout), jnp.float32, -s, s)

    offsets = jnp.linspace(0.0, CUTOFF, NG)
    gate_in = NB + 2 * CL0
    gate_hid = gate_in // 4

    return {
        "dist": {
            "offsets": offsets.reshape(1, NG),
            "w1": lin(NG, NB), "b1": bias(NB, NG),
            "src_emb": jax.random.uniform(next(keys), (MAXEL, NB), jnp.float32, -0.001, 0.001),
            "tgt_emb": jax.random.uniform(next(keys), (MAXEL, NB), jnp.float32, -0.001, 0.001),
            "w2": lin(NB, NB), "b2": bias(NB, NB),
        },
        "ln_weight": jnp.ones((LMAX + 1, CR), jnp.float32),
        "downsample": lin(CS, CR),
        "upsample": lin(CR, CS),
        "msg": {
            "fc1_dist_w": lin(NB, HID), "fc1_dist_b": bias(HID, NB),
            "fc2_dist_w": lin(NB, HID), "fc2_dist_b": bias(HID, NB),
            "gate_w1": lin(gate_in, gate_hid), "gate_b1": bias(gate_hid, gate_in),
            "gate_w2": lin(gate_hid, BRANCH * CR), "gate_b2": bias(BRANCH * CR, gate_hid),
            "ni1": {"w1": lin(SBR * CR, HID), "b1": bias(HID, SBR * CR),
                    "w2": lin(HID, SBR * CR), "b2": bias(SBR * CR, HID)},
            "ni2": {"w1": lin(SBR * CR, HID), "b1": bias(HID, SBR * CR),
                    "w2": lin(HID, SBR * CR), "b2": bias(SBR * CR, HID)},
            "rotate": jax.random.normal(next(keys), (SBR, SB), jnp.float32) / math.sqrt(SB),
            "rotate_inv": jax.random.normal(next(keys), (SB, SBR), jnp.float32) / math.sqrt(SBR),
        },
        "to_grid": jax.random.normal(next(keys), (2 * NBANDS, HW, SB), jnp.float32) / math.sqrt(SB),
        "from_grid": jax.random.normal(next(keys), (SB, HW), jnp.float32) / math.sqrt(HW),
        "grid": {
            "w1": lin(4 * NBANDS * CR, 2 * NBANDS * CR), "b1": bias(2 * NBANDS * CR, 4 * NBANDS * CR),
            "w2": lin(2 * NBANDS * CR, 2 * CR), "b2": bias(2 * CR, 2 * NBANDS * CR),
            "s1": lin(2 * CR, 2 * CR // 16), "sb1": bias(2 * CR // 16, 2 * CR),
            "s2": lin(2 * CR // 16, 2 * CR), "sb2": bias(2 * CR, 2 * CR // 16),
            "w3": lin(2 * CR, CR), "b3": bias(CR, 2 * CR),
        },
        "fc_edge_w": lin(NB, CL0),
        "fc_edge_b": bias(CL0, NB),
    }


def prepare_params(p, n_nodes):
    """One-time preprocessing: fused/kron operators for the Pallas kernels."""
    eye_cr = jnp.eye(CR, dtype=jnp.float32)

    # ---- node-prep operators (lane index = s*CR + c)
    kdown = jnp.kron(jnp.eye(SB, dtype=jnp.float32), p["downsample"])     # (SB*CS, SB*CR)
    deg = np.repeat(np.arange(LMAX + 1), [2 * l + 1 for l in range(LMAX + 1)])
    deg_lane = np.repeat(deg, CR)
    dn = np.zeros((SB * CR, LMAX + 1), np.float32)
    for l in range(LMAX + 1):
        dn[deg_lane == l, l] = 1.0 / ((2 * l + 1) * CR)
    dl = (deg_lane[None, :] == np.arange(LMAX + 1)[:, None]).astype(np.float32)
    mask0 = np.zeros((1, SB * CR), np.float32)
    mask0[0, :CR] = 1.0
    sel0 = np.zeros((SB * CR, 1), np.float32)
    sel0[:CR, 0] = 1.0 / CR
    wln = p["ln_weight"][np.asarray(deg)].reshape(1, SB * CR)
    m_sel = np.zeros((SBR, SB), np.float32)
    for r, s in enumerate(M_IDX):
        m_sel[r, s] = 1.0
    rm = jnp.concatenate([p["msg"]["rotate"], jnp.asarray(m_sel)], axis=0)  # (2*SBR, SB)
    kr = jnp.kron(rm.T, eye_cr)                                            # (SB*CR, 2*SBR*CR)

    # ---- edge-kernel operators
    krinv = jnp.kron(p["msg"]["rotate_inv"].T, eye_cr)                     # (SBR*CR, SB*CR)
    tsel = []
    for b in range(3):
        eb = np.zeros((BRANCH, SBR), np.float32)
        eb[b, :] = 1.0
        tsel.append(jnp.kron(jnp.asarray(eb), eye_cr))                     # (BRANCH*CR, SBR*CR)
    gate_w1 = p["msg"]["gate_w1"]

    # ---- grid-kernel operators (row index = n*HW + g  /  n*SB + s)
    pgap = np.kron(np.eye(n_nodes, dtype=np.float32),
                   np.full((1, HW), 1.0 / HW, np.float32))                 # (n, n*HW)
    sup = np.kron(np.eye(n_nodes, dtype=np.float32),
                  np.ones((HW, 1), np.float32))                            # (n*HW, n)
    bigf = jnp.kron(jnp.eye(n_nodes, dtype=jnp.float32), p["from_grid"])   # (n*SB, n*HW)

    return {
        "kdown": kdown, "sel0": sel0, "mask0": mask0, "dn": dn, "dl": dl,
        "wln": wln, "kr": kr,
        "src_emb": p["dist"]["src_emb"], "tgt_emb": p["dist"]["tgt_emb"],
        "offsets": p["dist"]["offsets"],
        "wd1": p["dist"]["w1"], "bd1": p["dist"]["b1"],
        "wd2": p["dist"]["w2"], "bd2": p["dist"]["b2"],
        "wf1": p["msg"]["fc1_dist_w"], "bf1": p["msg"]["fc1_dist_b"],
        "wf2": p["msg"]["fc2_dist_w"], "bf2": p["msg"]["fc2_dist_b"],
        "wg1e": gate_w1[:NB], "wg1t": gate_w1[NB:], "bg1": p["msg"]["gate_b1"],
        "wg2": p["msg"]["gate_w2"], "bg2": p["msg"]["gate_b2"],
        "wn11": p["msg"]["ni1"]["w1"], "bn11": p["msg"]["ni1"]["b1"],
        "wn12": p["msg"]["ni1"]["w2"], "bn12": p["msg"]["ni1"]["b2"],
        "wn21": p["msg"]["ni2"]["w1"], "bn21": p["msg"]["ni2"]["b1"],
        "wn22": p["msg"]["ni2"]["w2"], "bn22": p["msg"]["ni2"]["b2"],
        "t0": tsel[0], "t1": tsel[1], "t2": tsel[2], "krinv": krinv,
        "to_grid": p["to_grid"],
        "gw1": p["grid"]["w1"], "gb1": p["grid"]["b1"],
        "gw2": p["grid"]["w2"], "gb2": p["grid"]["b2"],
        "gs1": p["grid"]["s1"], "gsb1": p["grid"]["sb1"],
        "gs2": p["grid"]["s2"], "gsb2": p["grid"]["sb2"],
        "gw3": p["grid"]["w3"], "gb3": p["grid"]["b3"],
        "pgap": pgap, "sup": sup, "bigf": bigf, "upsample": p["upsample"],
        "wt": p["fc_edge_w"], "bt": p["fc_edge_b"],
    }


# --------------------------------- main --------------------------------------
if __name__ == "__main__":
    key = jax.random.PRNGKey(0)
    pkey, *ikeys = jax.random.split(key, 8)
    params = init_params(pkey)
    prep = prepare_params(params, N_NODES)

    x = jax.random.normal(ikeys[0], (N_NODES, SB, CS), jnp.float32)
    x_time = jax.random.normal(ikeys[1], (N_NODES, CL0), jnp.float32)
    atomic_numbers = jax.random.randint(ikeys[2], (N_NODES,), 0, MAXEL)
    edge_distance = jax.random.uniform(ikeys[3], (N_EDGES,), jnp.float32, 0.5, CUTOFF)
    edge_vec = jax.random.normal(ikeys[4], (N_EDGES, 3), jnp.float32)
    edge_index = jax.random.randint(ikeys[5], (2, N_EDGES), 0, N_NODES)
    edge_sh = jax.random.normal(ikeys[6], (N_EDGES, SB), jnp.float32)
    cutoff_index = (0, N_EDGES)

    x_new, x_new_time = edge_block_forward(prep, x, x_time, atomic_numbers,
                                           edge_distance, edge_vec, edge_index,
                                           edge_sh, cutoff_index)
    jax.block_until_ready((x_new, x_new_time))
    assert x_new.shape == (N_NODES, SB, CS)
    assert x_new_time.shape == (N_NODES, CL0)
    assert bool(jnp.all(jnp.isfinite(x_new)))
    assert bool(jnp.all(jnp.isfinite(x_new_time)))
    print("KERNEL_OK")
</pallas_src>

<mosaic_0001>
module attributes {stable_mosaic.version = 11 : i64} {
  func.func @_node_prep_kernel(%arg0: memref<6x512xf32, #tpu.memory_space<vmem>>, %arg1: memref<512x256xf32, #tpu.memory_space<vmem>>, %arg2: memref<256x1xf32, #tpu.memory_space<vmem>>, %arg3: memref<1x256xf32, #tpu.memory_space<vmem>>, %arg4: memref<256x4xf32, #tpu.memory_space<vmem>>, %arg5: memref<4x256xf32, #tpu.memory_space<vmem>>, %arg6: memref<1x256xf32, #tpu.memory_space<vmem>>, %arg7: memref<256x320xf32, #tpu.memory_space<vmem>>, %arg8: memref<6x256xf32, #tpu.memory_space<vmem>>, %arg9: memref<6x320xf32, #tpu.memory_space<vmem>>) attributes {dimension_semantics = [], scalar_prefetch = 0 : i64, scratch_operands = 0 : i64, tpu.core_type = #tpu.core_type<tc>} {
    %c0 = arith.constant 0 : index
    %c0_0 = arith.constant 0 : index
    %0 = vector.load %arg0[%c0, %c0_0] : memref<6x512xf32, #tpu.memory_space<vmem>>, vector<6x512xf32>
    %c0_1 = arith.constant 0 : index
    %c0_2 = arith.constant 0 : index
    %1 = vector.load %arg1[%c0_1, %c0_2] : memref<512x256xf32, #tpu.memory_space<vmem>>, vector<512x256xf32>
    %cst = arith.constant dense<0.000000e+00> : vector<6x256xf32>
    %2 = tpu.matmul %0, %1, %cst {dimension_numbers = #tpu.dot_dimension_numbers<[1], [0], [0], [1], [0, 0, 1, 1], [], []>} : vector<6x512xf32>, vector<512x256xf32>, vector<6x256xf32> -> vector<6x256xf32>
    %c0_3 = arith.constant 0 : index
    %c0_4 = arith.constant 0 : index
    %3 = vector.load %arg8[%c0_3, %c0_4] : memref<6x256xf32, #tpu.memory_space<vmem>>, vector<6x256xf32>
    tpu.vector_store %arg8[%c0_3, %c0_4], %2 {strides = array<i32>} : memref<6x256xf32, #tpu.memory_space<vmem>>, vector<6x256xf32>,
    %c0_5 = arith.constant 0 : index
    %c0_6 = arith.constant 0 : index
    %4 = vector.load %arg2[%c0_5, %c0_6] : memref<256x1xf32, #tpu.memory_space<vmem>>, vector<256x1xf32>
    %cst_7 = arith.constant dense<0.000000e+00> : vector<6x1xf32>
    %5 = tpu.matmul %2, %4, %cst_7 {dimension_numbers = #tpu.dot_dimension_numbers<[1], [0], [0], [1], [0, 0, 1, 1], [], []>} : vector<6x256xf32>, vector<256x1xf32>, vector<6x1xf32> -> vector<6x1xf32>
    %c0_8 = arith.constant 0 : index
    %c0_9 = arith.constant 0 : index
    %6 = vector.load %arg3[%c0_8, %c0_9] : memref<1x256xf32, #tpu.memory_space<vmem>>, vector<1x256xf32>
    %7 = vector.broadcast %5 : vector<6x1xf32> to vector<6x256xf32>
    %8 = vector.broadcast %6 : vector<1x256xf32> to vector<6x256xf32>
    %9 = arith.mulf %7, %8 : vector<6x256xf32>
    %10 = arith.subf %2, %9 : vector<6x256xf32>
    %11 = arith.mulf %10, %10 : vector<6x256xf32>
    %c0_10 = arith.constant 0 : index
    %c0_11 = arith.constant 0 : index
    %12 = vector.load %arg4[%c0_10, %c0_11] : memref<256x4xf32, #tpu.memory_space<vmem>>, vector<256x4xf32>
    %cst_12 = arith.constant dense<0.000000e+00> : vector<6x4xf32>
    %13 = tpu.matmul %11, %12, %cst_12 {dimension_numbers = #tpu.dot_dimension_numbers<[1], [0], [0], [1], [0, 0, 1, 1], [], []>} : vector<6x256xf32>, vector<256x4xf32>, vector<6x4xf32> -> vector<6x4xf32>
    %cst_13 = arith.constant 9.99999974E-6 : f32
    %14 = vector.broadcast %cst_13 : f32 to vector<6x4xf32>
    %15 = arith.addf %13, %14 : vector<6x4xf32>
    %16 = math.rsqrt %15 : vector<6x4xf32>
    %c0_14 = arith.constant 0 : index
    %c0_15 = arith.constant 0 : index
    %17 = vector.load %arg5[%c0_14, %c0_15] : memref<4x256xf32, #tpu.memory_space<vmem>>, vector<4x256xf32>
    %cst_16 = arith.constant dense<0.000000e+00> : vector<6x256xf32>
    %18 = tpu.matmul %16, %17, %cst_16 {dimension_numbers = #tpu.dot_dimension_numbers<[1], [0], [0], [1], [0, 0, 1, 1], [], []>} : vector<6x4xf32>, vector<4x256xf32>, vector<6x256xf32> -> vector<6x256xf32>
    %19 = arith.mulf %10, %18 : vector<6x256xf32>
    %c0_17 = arith.constant 0 : index
    %c0_18 = arith.constant 0 : index
    %20 = vector.load %arg6[%c0_17, %c0_18] : memref<1x256xf32, #tpu.memory_space<vmem>>, vector<1x256xf32>
    %21 = vector.broadcast %20 : vector<1x256xf32> to vector<6x256xf32>
    %22 = arith.mulf %19, %21 : vector<6x256xf32>
    %cst_19 = arith.constant 0.577350259 : f32
    %23 = vector.broadcast %cst_19 : f32 to vector<6x256xf32>
    %24 = arith.mulf %22, %23 : vector<6x256xf32>
    %c0_20 = arith.constant 0 : index
    %c0_21 = arith.constant 0 : index
    %25 = vector.load %arg7[%c0_20, %c0_21] : memref<256x320xf32, #tpu.memory_space<vmem>>, vector<256x320xf32>
    %cst_22 = arith.constant dense<0.000000e+00> : vector<6x320xf32>
    %26 = tpu.matmul %24, %25, %cst_22 {dimension_numbers = #tpu.dot_dimension_numbers<[1], [0], [0], [1], [0, 0, 1, 1], [], []>} : vector<6x256xf32>, vector<256x320xf32>, vector<6x320xf32> -> vector<6x320xf32>
    %c0_23 = arith.constant 0 : index
    %c0_24 = arith.constant 0 : index
    %27 = vector.load %arg9[%c0_23, %c0_24] : memref<6x320xf32, #tpu.memory_space<vmem>>, vector<6x320xf32>
    tpu.vector_store %arg9[%c0_23, %c0_24], %26 {strides = array<i32>} : memref<6x320xf32, #tpu.memory_space<vmem>>, vector<6x320xf32>,
    return
  }
}

module attributes {stable_mosaic.version = 11 : i64} {
  func.func @_edge_kernel(%arg0: memref<16x1xf32, #tpu.memory_space<vmem>>, %arg1: memref<16x8xf32, #tpu.memory_space<vmem>>, %arg2: memref<16x32xf32, #tpu.memory_space<vmem>>, %arg3: memref<64x160xf32, #tpu.memory_space<vmem>>, %arg4: memref<32x160xf32, #tpu.memory_space<vmem>>, %arg5: memref<1x8xf32, #tpu.memory_space<vmem>>, %arg6: memref<8x8xf32, #tpu.memory_space<vmem>>, %arg7: memref<1x8xf32, #tpu.memory_space<vmem>>, %arg8: memref<8x8xf32, #tpu.memory_space<vmem>>, %arg9: memref<1x8xf32, #tpu.memory_space<vmem>>, %arg10: memref<8x32xf32, #tpu.memory_space<vmem>>, %arg11: memref<1x32xf32, #tpu.memory_space<vmem>>, %arg12: memref<8x32xf32, #tpu.memory_space<vmem>>, %arg13: memref<1x32xf32, #tpu.memory_space<vmem>>, %arg14: memref<8x10xf32, #tpu.memory_space<vmem>>, %arg15: memref<32x10xf32, #tpu.memory_space<vmem>>, %arg16: memref<1x10xf32, #tpu.memory_space<vmem>>, %arg17: memref<10x80xf32, #tpu.memory_space<vmem>>, %arg18: memref<1x80xf32, #tpu.memory_space<vmem>>, %arg19: memref<160x32xf32, #tpu.memory_space<vmem>>, %arg20: memref<1x32xf32, #tpu.memory_space<vmem>>, %arg21: memref<32x160xf32, #tpu.memory_space<vmem>>, %arg22: memref<1x160xf32, #tpu.memory_space<vmem>>, %arg23: memref<160x32xf32, #tpu.memory_space<vmem>>, %arg24: memref<1x32xf32, #tpu.memory_space<vmem>>, %arg25: memref<32x160xf32, #tpu.memory_space<vmem>>, %arg26: memref<1x160xf32, #tpu.memory_space<vmem>>, %arg27: memref<80x160xf32, #tpu.memory_space<vmem>>, %arg28: memref<80x160xf32, #tpu.memory_space<vmem>>, %arg29: memref<80x160xf32, #tpu.memory_space<vmem>>, %arg30: memref<160x256xf32, #tpu.memory_space<vmem>>, %arg31: memref<16x256xf32, #tpu.memory_space<vmem>>, %arg32: memref<16x8xf32, #tpu.memory_space<vmem>>) attributes {dimension_semantics = [], scalar_prefetch = 0 : i64, scratch_operands = 0 : i64, tpu.core_type = #tpu.core_type<tc>} {
    %c0 = arith.constant 0 : index
    %c0_0 = arith.constant 0 : index
    %0 = vector.load %arg0[%c0, %c0_0] : memref<16x1xf32, #tpu.memory_space<vmem>>, vector<16x1xf32>
    %c0_1 = arith.constant 0 : index
    %c0_2 = arith.constant 0 : index
    %1 = vector.load %arg5[%c0_1, %c0_2] : memref<1x8xf32, #tpu.memory_space<vmem>>, vector<1x8xf32>
    %2 = vector.broadcast %0 : vector<16x1xf32> to vector<16x8xf32>
    %3 = vector.broadcast %1 : vector<1x8xf32> to vector<16x8xf32>
    %4 = arith.subf %2, %3 : vector<16x8xf32>
    %5 = arith.mulf %4, %4 : vector<16x8xf32>
    %cst = arith.constant -0.680555582 : f32
    %6 = vector.broadcast %cst : f32 to vector<16x8xf32>
    %7 = arith.mulf %6, %5 : vector<16x8xf32>
    %8 = math.exp %7 : vector<16x8xf32>
    %c0_3 = arith.constant 0 : index
    %c0_4 = arith.constant 0 : index
    %9 = vector.load %arg6[%c0_3, %c0_4] : memref<8x8xf32, #tpu.memory_space<vmem>>, vector<8x8xf32>
    %cst_5 = arith.constant dense<0.000000e+00> : vector<16x8xf32>
    %10 = tpu.matmul %8, %9, %cst_5 {dimension_numbers = #tpu.dot_dimension_numbers<[1], [0], [0], [1], [0, 0, 1, 1], [], []>} : vector<16x8xf32>, vector<8x8xf32>, vector<16x8xf32> -> vector<16x8xf32>
    %c0_6 = arith.constant 0 : index
    %c0_7 = arith.constant 0 : index
    %11 = vector.load %arg7[%c0_6, %c0_7] : memref<1x8xf32, #tpu.memory_space<vmem>>, vector<1x8xf32>
    %12 = vector.broadcast %11 : vector<1x8xf32> to vector<16x8xf32>
    %13 = arith.addf %10, %12 : vector<16x8xf32>
    %c0_8 = arith.constant 0 : index
    %c0_9 = arith.constant 0 : index
    %14 = vector.load %arg1[%c0_8, %c0_9] : memref<16x8xf32, #tpu.memory_space<vmem>>, vector<16x8xf32>
    %15 = arith.addf %14, %13 : vector<16x8xf32>
    %16 = arith.negf %15 : vector<16x8xf32>
    %17 = math.exp %16 : vector<16x8xf32>
    %cst_10 = arith.constant 1.000000e+00 : f32
    %18 = vector.broadcast %cst_10 : f32 to vector<16x8xf32>
    %19 = arith.addf %18, %17 : vector<16x8xf32>
    %20 = arith.divf %18, %19 : vector<16x8xf32>
    %21 = arith.mulf %15, %20 : vector<16x8xf32>
    %c0_11 = arith.constant 0 : index
    %c0_12 = arith.constant 0 : index
    %22 = vector.load %arg8[%c0_11, %c0_12] : memref<8x8xf32, #tpu.memory_space<vmem>>, vector<8x8xf32>
    %cst_13 = arith.constant dense<0.000000e+00> : vector<16x8xf32>
    %23 = tpu.matmul %21, %22, %cst_13 {dimension_numbers = #tpu.dot_dimension_numbers<[1], [0], [0], [1], [0, 0, 1, 1], [], []>} : vector<16x8xf32>, vector<8x8xf32>, vector<16x8xf32> -> vector<16x8xf32>
    %c0_14 = arith.constant 0 : index
    %c0_15 = arith.constant 0 : index
    %24 = vector.load %arg9[%c0_14, %c0_15] : memref<1x8xf32, #tpu.memory_space<vmem>>, vector<1x8xf32>
    %25 = vector.broadcast %24 : vector<1x8xf32> to vector<16x8xf32>
    %26 = arith.addf %23, %25 : vector<16x8xf32>
    %27 = arith.negf %26 : vector<16x8xf32>
    %28 = math.exp %27 : vector<16x8xf32>
    %cst_16 = arith.constant 1.000000e+00 : f32
    %29 = vector.broadcast %cst_16 : f32 to vector<16x8xf32>
    %30 = arith.addf %29, %28 : vector<16x8xf32>
    %31 = arith.divf %29, %30 : vector<16x8xf32>
    %32 = arith.mulf %26, %31 : vector<16x8xf32>
    %c0_17 = arith.constant 0 : index
    %c0_18 = arith.constant 0 : index
    %33 = vector.load %arg32[%c0_17, %c0_18] : memref<16x8xf32, #tpu.memory_space<vmem>>, vector<16x8xf32>
    tpu.vector_store %arg32[%c0_17, %c0_18], %32 {strides = array<i32>} : memref<16x8xf32, #tpu.memory_space<vmem>>, vector<16x8xf32>,
    %c0_19 = arith.constant 0 : index
    %c0_20 = arith.constant 0 : index
    %34 = vector.load %arg10[%c0_19, %c0_20] : memref<8x32xf32, #tpu.memory_space<vmem>>, vector<8x32xf32>
    %cst_21 = arith.constant dense<0.000000e+00> : vector<16x32xf32>
    %35 = tpu.matmul %32, %34, %cst_21 {dimension_numbers = #tpu.dot_dimension_numbers<[1], [0], [0], [1], [0, 0, 1, 1], [], []>} : vector<16x8xf32>, vector<8x32xf32>, vector<16x32xf32> -> vector<16x32xf32>
    %c0_22 = arith.constant 0 : index
    %c0_23 = arith.constant 0 : index
    %36 = vector.load %arg11[%c0_22, %c0_23] : memref<1x32xf32, #tpu.memory_space<vmem>>, vector<1x32xf32>
    %37 = vector.broadcast %36 : vector<1x32xf32> to vector<16x32xf32>
    %38 = arith.addf %35, %37 : vector<16x32xf32>
    %39 = arith.negf %38 : vector<16x32xf32>
    %40 = math.exp %39 : vector<16x32xf32>
    %cst_24 = arith.constant 1.000000e+00 : f32
    %41 = vector.broadcast %cst_24 : f32 to vector<16x32xf32>
    %42 = arith.addf %41, %40 : vector<16x32xf32>
    %43 = arith.divf %41, %42 : vector<16x32xf32>
    %44 = arith.mulf %38, %43 : vector<16x32xf32>
    %c0_25 = arith.constant 0 : index
    %c0_26 = arith.constant 0 : index
    %45 = vector.load %arg12[%c0_25, %c0_26] : memref<8x32xf32, #tpu.memory_space<vmem>>, vector<8x32xf32>
    %cst_27 = arith.constant dense<0.000000e+00> : vector<16x32xf32>
    %46 = tpu.matmul %32, %45, %cst_27 {dimension_numbers = #tpu.dot_dimension_numbers<[1], [0], [0], [1], [0, 0, 1, 1], [], []>} : vector<16x8xf32>, vector<8x32xf32>, vector<16x32xf32> -> vector<16x32xf32>
    %c0_28 = arith.constant 0 : index
    %c0_29 = arith.constant 0 : index
    %47 = vector.load %arg13[%c0_28, %c0_29] : memref<1x32xf32, #tpu.memory_space<vmem>>, vector<1x32xf32>
    %48 = vector.broadcast %47 : vector<1x32xf32> to vector<16x32xf32>
    %49 = arith.addf %46, %48 : vector<16x32xf32>
    %50 = arith.negf %49 : vector<16x32xf32>
    %51 = math.exp %50 : vector<16x32xf32>
    %cst_30 = arith.constant 1.000000e+00 : f32
    %52 = vector.broadcast %cst_30 : f32 to vector<16x32xf32>
    %53 = arith.addf %52, %51 : vector<16x32xf32>
    %54 = arith.divf %52, %53 : vector<16x32xf32>
    %55 = arith.mulf %49, %54 : vector<16x32xf32>
    %c0_31 = arith.constant 0 : index
    %c0_32 = arith.constant 0 : index
    %56 = vector.load %arg14[%c0_31, %c0_32] : memref<8x10xf32, #tpu.memory_space<vmem>>, vector<8x10xf32>
    %cst_33 = arith.constant dense<0.000000e+00> : vector<16x10xf32>
    %57 = tpu.matmul %32, %56, %cst_33 {dimension_numbers = #tpu.dot_dimension_numbers<[1], [0], [0], [1], [0, 0, 1, 1], [], []>} : vector<16x8xf32>, vector<8x10xf32>, vector<16x10xf32> -> vector<16x10xf32>
    %c0_34 = arith.constant 0 : index
    %c0_35 = arith.constant 0 : index
    %58 = vector.load %arg2[%c0_34, %c0_35] : memref<16x32xf32, #tpu.memory_space<vmem>>, vector<16x32xf32>
    %c0_36 = arith.constant 0 : index
    %c0_37 = arith.constant 0 : index
    %59 = vector.load %arg15[%c0_36, %c0_37] : memref<32x10xf32, #tpu.memory_space<vmem>>, vector<32x10xf32>
    %cst_38 = arith.constant dense<0.000000e+00> : vector<16x10xf32>
    %60 = tpu.matmul %58, %59, %cst_38 {dimension_numbers = #tpu.dot_dimension_numbers<[1], [0], [0], [1], [0, 0, 1, 1], [], []>} : vector<16x32xf32>, vector<32x10xf32>, vector<16x10xf32> -> vector<16x10xf32>
    %61 = arith.addf %57, %60 : vector<16x10xf32>
    %c0_39 = arith.constant 0 : index
    %c0_40 = arith.constant 0 : index
    %62 = vector.load %arg16[%c0_39, %c0_40] : memref<1x10xf32, #tpu.memory_space<vmem>>, vector<1x10xf32>
    %63 = vector.broadcast %62 : vector<1x10xf32> to vector<16x10xf32>
    %64 = arith.addf %61, %63 : vector<16x10xf32>
    %cst_41 = arith.constant 0.000000e+00 : f32
    %65 = vector.broadcast %cst_41 : f32 to vector<16x10xf32>
    %66 = arith.maximumf %64, %65 : vector<16x10xf32>
    %c0_42 = arith.constant 0 : index
    %c0_43 = arith.constant 0 : index
    %67 = vector.load %arg17[%c0_42, %c0_43] : memref<10x80xf32, #tpu.memory_space<vmem>>, vector<10x80xf32>
    %cst_44 = arith.constant dense<0.000000e+00> : vector<16x80xf32>
    %68 = tpu.matmul %66, %67, %cst_44 {dimension_numbers = #tpu.dot_dimension_numbers<[1], [0], [0], [1], [0, 0, 1, 1], [], []>} : vector<16x10xf32>, vector<10x80xf32>, vector<16x80xf32> -> vector<16x80xf32>
    %c0_45 = arith.constant 0 : index
    %c0_46 = arith.constant 0 : index
    %69 = vector.load %arg18[%c0_45, %c0_46] : memref<1x80xf32, #tpu.memory_space<vmem>>, vector<1x80xf32>
    %70 = vector.broadcast %69 : vector<1x80xf32> to vector<16x80xf32>
    %71 = arith.addf %68, %70 : vector<16x80xf32>
    %72 = arith.negf %71 : vector<16x80xf32>
    %73 = math.exp %72 : vector<16x80xf32>
    %cst_47 = arith.constant 1.000000e+00 : f32
    %74 = vector.broadcast %cst_47 : f32 to vector<16x80xf32>
    %75 = arith.addf %74, %73 : vector<16x80xf32>
    %76 = arith.divf %74, %75 : vector<16x80xf32>
    %c0_48 = arith.constant 0 : index
    %c0_49 = arith.constant 0 : index
    %77 = vector.load %arg3[%c0_48, %c0_49] : memref<64x160xf32, #tpu.memory_space<vmem>>, vector<64x160xf32>
    %c0_50 = arith.constant 0 : index
    %c0_51 = arith.constant 0 : index
    %78 = vector.load %arg19[%c0_50, %c0_51] : memref<160x32xf32, #tpu.memory_space<vmem>>, vector<160x32xf32>
    %cst_52 = arith.constant dense<0.000000e+00> : vector<64x32xf32>
    %79 = tpu.matmul %77, %78, %cst_52 {dimension_numbers = #tpu.dot_dimension_numbers<[1], [0], [0], [1], [0, 0, 1, 1], [], []>} : vector<64x160xf32>, vector<160x32xf32>, vector<64x32xf32> -> vector<64x32xf32>
    %c0_53 = arith.constant 0 : index
    %c0_54 = arith.constant 0 : index
    %80 = vector.load %arg20[%c0_53, %c0_54] : memref<1x32xf32, #tpu.memory_space<vmem>>, vector<1x32xf32>
    %81 = vector.broadcast %80 : vector<1x32xf32> to vector<64x32xf32>
    %82 = arith.addf %79, %81 : vector<64x32xf32>
    %83 = arith.negf %82 : vector<64x32xf32>
    %84 = math.exp %83 : vector<64x32xf32>
    %cst_55 = arith.constant 1.000000e+00 : f32
    %85 = vector.broadcast %cst_55 : f32 to vector<64x32xf32>
    %86 = arith.addf %85, %84 : vector<64x32xf32>
    %87 = arith.divf %85, %86 : vector<64x32xf32>
    %88 = arith.mulf %82, %87 : vector<64x32xf32>
    %89 = tpu.concatenate %55, %55, %55, %55 in 0 : vector<16x32xf32>, vector<16x32xf32>, vector<16x32xf32>, vector<16x32xf32> -> vector<64x32xf32>
    %90 = arith.mulf %88, %89 : vector<64x32xf32>
    %c0_56 = arith.constant 0 : index
    %c0_57 = arith.constant 0 : index
    %91 = vector.load %arg21[%c0_56, %c0_57] : memref<32x160xf32, #tpu.memory_space<vmem>>, vector<32x160xf32>
    %cst_58 = arith.constant dense<0.000000e+00> : vector<64x160xf32>
    %92 = tpu.matmul %90, %91, %cst_58 {dimension_numbers = #tpu.dot_dimension_numbers<[1], [0], [0], [1], [0, 0, 1, 1], [], []>} : vector<64x32xf32>, vector<32x160xf32>, vector<64x160xf32> -> vector<64x160xf32>
    %c0_59 = arith.constant 0 : index
    %c0_60 = arith.constant 0 : index
    %93 = vector.load %arg22[%c0_59, %c0_60] : memref<1x160xf32, #tpu.memory_space<vmem>>, vector<1x160xf32>
    %94 = vector.broadcast %93 : vector<1x160xf32> to vector<64x160xf32>
    %95 = arith.addf %92, %94 : vector<64x160xf32>
    %96 = arith.negf %95 : vector<64x160xf32>
    %97 = math.exp %96 : vector<64x160xf32>
    %cst_61 = arith.constant 1.000000e+00 : f32
    %98 = vector.broadcast %cst_61 : f32 to vector<64x160xf32>
    %99 = arith.addf %98, %97 : vector<64x160xf32>
    %100 = arith.divf %98, %99 : vector<64x160xf32>
    %101 = arith.mulf %95, %100 : vector<64x160xf32>
    %102 = vector.extract_strided_slice %101 {offsets = [0, 0], sizes = [16, 160], strides = [1, 1]} : vector<64x160xf32> to vector<16x160xf32>
    %103 = vector.extract_strided_slice %101 {offsets = [32, 0], sizes = [16, 160], strides = [1, 1]} : vector<64x160xf32> to vector<16x160xf32>
    %104 = arith.addf %102, %103 : vector<16x160xf32>
    %105 = vector.extract_strided_slice %101 {offsets = [16, 0], sizes = [16, 160], strides = [1, 1]} : vector<64x160xf32> to vector<16x160xf32>
    %106 = vector.extract_strided_slice %101 {offsets = [48, 0], sizes = [16, 160], strides = [1, 1]} : vector<64x160xf32> to vector<16x160xf32>
    %107 = arith.addf %105, %106 : vector<16x160xf32>
    %c0_62 = arith.constant 0 : index
    %c0_63 = arith.constant 0 : index
    %108 = vector.load %arg4[%c0_62, %c0_63] : memref<32x160xf32, #tpu.memory_space<vmem>>, vector<32x160xf32>
    %c0_64 = arith.constant 0 : index
    %c0_65 = arith.constant 0 : index
    %109 = vector.load %arg23[%c0_64, %c0_65] : memref<160x32xf32, #tpu.memory_space<vmem>>, vector<160x32xf32>
    %cst_66 = arith.constant dense<0.000000e+00> : vector<32x32xf32>
    %110 = tpu.matmul %108, %109, %cst_66 {dimension_numbers = #tpu.dot_dimension_numbers<[1], [0], [0], [1], [0, 0, 1, 1], [], []>} : vector<32x160xf32>, vector<160x32xf32>, vector<32x32xf32> -> vector<32x32xf32>
    %c0_67 = arith.constant 0 : index
    %c0_68 = arith.constant 0 : index
    %111 = vector.load %arg24[%c0_67, %c0_68] : memref<1x32xf32, #tpu.memory_space<vmem>>, vector<1x32xf32>
    %112 = vector.broadcast %111 : vector<1x32xf32> to vector<32x32xf32>
    %113 = arith.addf %110, %112 : vector<32x32xf32>
    %114 = arith.negf %113 : vector<32x32xf32>
    %115 = math.exp %114 : vector<32x32xf32>
    %cst_69 = arith.constant 1.000000e+00 : f32
    %116 = vector.broadcast %cst_69 : f32 to vector<32x32xf32>
    %117 = arith.addf %116, %115 : vector<32x32xf32>
    %118 = arith.divf %116, %117 : vector<32x32xf32>
    %119 = arith.mulf %113, %118 : vector<32x32xf32>
    %120 = tpu.concatenate %44, %44 in 0 : vector<16x32xf32>, vector<16x32xf32> -> vector<32x32xf32>
    %121 = arith.mulf %119, %120 : vector<32x32xf32>
    %c0_70 = arith.constant 0 : index
    %c0_71 = arith.constant 0 : index
    %122 = vector.load %arg25[%c0_70, %c0_71] : memref<32x160xf32, #tpu.memory_space<vmem>>, vector<32x160xf32>
    %cst_72 = arith.constant dense<0.000000e+00> : vector<32x160xf32>
    %123 = tpu.matmul %121, %122, %cst_72 {dimension_numbers = #tpu.dot_dimension_numbers<[1], [0], [0], [1], [0, 0, 1, 1], [], []>} : vector<32x32xf32>, vector<32x160xf32>, vector<32x160xf32> -> vector<32x160xf32>
    %c0_73 = arith.constant 0 : index
    %c0_74 = arith.constant 0 : index
    %124 = vector.load %arg26[%c0_73, %c0_74] : memref<1x160xf32, #tpu.memory_space<vmem>>, vector<1x160xf32>
    %125 = vector.broadcast %124 : vector<1x160xf32> to vector<32x160xf32>
    %126 = arith.addf %123, %125 : vector<32x160xf32>
    %127 = arith.negf %126 : vector<32x160xf32>
    %128 = math.exp %127 : vector<32x160xf32>
    %cst_75 = arith.constant 1.000000e+00 : f32
    %129 = vector.broadcast %cst_75 : f32 to vector<32x160xf32>
    %130 = arith.addf %129, %128 : vector<32x160xf32>
    %131 = arith.divf %129, %130 : vector<32x160xf32>
    %132 = arith.mulf %126, %131 : vector<32x160xf32>
    %133 = vector.extract_strided_slice %132 {offsets = [0, 0], sizes = [16, 160], strides = [1, 1]} : vector<32x160xf32> to vector<16x160xf32>
    %134 = vector.extract_strided_slice %132 {offsets = [16, 0], sizes = [16, 160], strides = [1, 1]} : vector<32x160xf32> to vector<16x160xf32>
    %135 = arith.addf %133, %134 : vector<16x160xf32>
    %c0_76 = arith.constant 0 : index
    %c0_77 = arith.constant 0 : index
    %136 = vector.load %arg27[%c0_76, %c0_77] : memref<80x160xf32, #tpu.memory_space<vmem>>, vector<80x160xf32>
    %cst_78 = arith.constant dense<0.000000e+00> : vector<16x160xf32>
    %137 = tpu.matmul %76, %136, %cst_78 {dimension_numbers = #tpu.dot_dimension_numbers<[1], [0], [0], [1], [0, 0, 1, 1], [], []>} : vector<16x80xf32>, vector<80x160xf32>, vector<16x160xf32> -> vector<16x160xf32>
    %c0_79 = arith.constant 0 : index
    %c0_80 = arith.constant 0 : index
    %138 = vector.load %arg28[%c0_79, %c0_80] : memref<80x160xf32, #tpu.memory_space<vmem>>, vector<80x160xf32>
    %cst_81 = arith.constant dense<0.000000e+00> : vector<16x160xf32>
    %139 = tpu.matmul %76, %138, %cst_81 {dimension_numbers = #tpu.dot_dimension_numbers<[1], [0], [0], [1], [0, 0, 1, 1], [], []>} : vector<16x80xf32>, vector<80x160xf32>, vector<16x160xf32> -> vector<16x160xf32>
    %c0_82 = arith.constant 0 : index
    %c0_83 = arith.constant 0 : index
    %140 = vector.load %arg29[%c0_82, %c0_83] : memref<80x160xf32, #tpu.memory_space<vmem>>, vector<80x160xf32>
    %cst_84 = arith.constant dense<0.000000e+00> : vector<16x160xf32>
    %141 = tpu.matmul %76, %140, %cst_84 {dimension_numbers = #tpu.dot_dimension_numbers<[1], [0], [0], [1], [0, 0, 1, 1], [], []>} : vector<16x80xf32>, vector<80x160xf32>, vector<16x160xf32> -> vector<16x160xf32>
    %142 = arith.mulf %104, %137 : vector<16x160xf32>
    %143 = arith.mulf %107, %139 : vector<16x160xf32>
    %144 = arith.addf %142, %143 : vector<16x160xf32>
    %145 = arith.mulf %141, %135 : vector<16x160xf32>
    %146 = arith.addf %144, %145 : vector<16x160xf32>
    %c0_85 = arith.constant 0 : index
    %c0_86 = arith.constant 0 : index
    %147 = vector.load %arg30[%c0_85, %c0_86] : memref<160x256xf32, #tpu.memory_space<vmem>>, vector<160x256xf32>
    %cst_87 = arith.constant dense<0.000000e+00> : vector<16x256xf32>
    %148 = tpu.matmul %146, %147, %cst_87 {dimension_numbers = #tpu.dot_dimension_numbers<[1], [0], [0], [1], [0, 0, 1, 1], [], []>} : vector<16x160xf32>, vector<160x256xf32>, vector<16x256xf32> -> vector<16x256xf32>
    %c0_88 = arith.constant 0 : index
    %c0_89 = arith.constant 0 : index
    %149 = vector.load %arg31[%c0_88, %c0_89] : memref<16x256xf32, #tpu.memory_space<vmem>>, vector<16x256xf32>
    tpu.vector_store %arg31[%c0_88, %c0_89], %148 {strides = array<i32>} : memref<16x256xf32, #tpu.memory_space<vmem>>, vector<16x256xf32>,
    return
  }
}

module attributes {stable_mosaic.version = 11 : i64} {
  func.func @_grid_time_kernel(%arg0: memref<192x128xf32, #tpu.memory_space<vmem>>, %arg1: memref<6x8xf32, #tpu.memory_space<vmem>>, %arg2: memref<6x16xf32, #tpu.memory_space<vmem>>, %arg3: memref<128x64xf32, #tpu.memory_space<vmem>>, %arg4: memref<1x64xf32, #tpu.memory_space<vmem>>, %arg5: memref<64x32xf32, #tpu.memory_space<vmem>>, %arg6: memref<1x32xf32, #tpu.memory_space<vmem>>, %arg7: memref<32x2xf32, #tpu.memory_space<vmem>>, %arg8: memref<1x2xf32, #tpu.memory_space<vmem>>, %arg9: memref<2x32xf32, #tpu.memory_space<vmem>>, %arg10: memref<1x32xf32, #tpu.memory_space<vmem>>, %arg11: memref<32x16xf32, #tpu.memory_space<vmem>>, %arg12: memref<1x16xf32, #tpu.memory_space<vmem>>, %arg13: memref<6x192xf32, #tpu.memory_space<vmem>>, %arg14: memref<192x6xf32, #tpu.memory_space<vmem>>, %arg15: memref<96x192xf32, #tpu.memory_space<vmem>>, %arg16: memref<16x32xf32, #tpu.memory_space<vmem>>, %arg17: memref<8x16xf32, #tpu.memory_space<vmem>>, %arg18: memref<1x16xf32, #tpu.memory_space<vmem>>, %arg19: memref<96x32xf32, #tpu.memory_space<vmem>>, %arg20: memref<6x16xf32, #tpu.memory_space<vmem>>) attributes {dimension_semantics = [], scalar_prefetch = 0 : i64, scratch_operands = 0 : i64, tpu.core_type = #tpu.core_type<tc>} {
    %c0 = arith.constant 0 : index
    %c0_0 = arith.constant 0 : index
    %0 = vector.load %arg0[%c0, %c0_0] : memref<192x128xf32, #tpu.memory_space<vmem>>, vector<192x128xf32>
    %c0_1 = arith.constant 0 : index
    %c0_2 = arith.constant 0 : index
    %1 = vector.load %arg3[%c0_1, %c0_2] : memref<128x64xf32, #tpu.memory_space<vmem>>, vector<128x64xf32>
    %cst = arith.constant dense<0.000000e+00> : vector<192x64xf32>
    %2 = tpu.matmul %0, %1, %cst {dimension_numbers = #tpu.dot_dimension_numbers<[1], [0], [0], [1], [0, 0, 1, 1], [], []>} : vector<192x128xf32>, vector<128x64xf32>, vector<192x64xf32> -> vector<192x64xf32>
    %c0_3 = arith.constant 0 : index
    %c0_4 = arith.constant 0 : index
    %3 = vector.load %arg4[%c0_3, %c0_4] : memref<1x64xf32, #tpu.memory_space<vmem>>, vector<1x64xf32>
    %4 = vector.broadcast %3 : vector<1x64xf32> to vector<192x64xf32>
    %5 = arith.addf %2, %4 : vector<192x64xf32>
    %6 = arith.negf %5 : vector<192x64xf32>
    %7 = math.exp %6 : vector<192x64xf32>
    %cst_5 = arith.constant 1.000000e+00 : f32
    %8 = vector.broadcast %cst_5 : f32 to vector<192x64xf32>
    %9 = arith.addf %8, %7 : vector<192x64xf32>
    %10 = arith.divf %8, %9 : vector<192x64xf32>
    %11 = arith.mulf %5, %10 : vector<192x64xf32>
    %c0_6 = arith.constant 0 : index
    %c0_7 = arith.constant 0 : index
    %12 = vector.load %arg5[%c0_6, %c0_7] : memref<64x32xf32, #tpu.memory_space<vmem>>, vector<64x32xf32>
    %cst_8 = arith.constant dense<0.000000e+00> : vector<192x32xf32>
    %13 = tpu.matmul %11, %12, %cst_8 {dimension_numbers = #tpu.dot_dimension_numbers<[1], [0], [0], [1], [0, 0, 1, 1], [], []>} : vector<192x64xf32>, vector<64x32xf32>, vector<192x32xf32> -> vector<192x32xf32>
    %c0_9 = arith.constant 0 : index
    %c0_10 = arith.constant 0 : index
    %14 = vector.load %arg6[%c0_9, %c0_10] : memref<1x32xf32, #tpu.memory_space<vmem>>, vector<1x32xf32>
    %15 = vector.broadcast %14 : vector<1x32xf32> to vector<192x32xf32>
    %16 = arith.addf %13, %15 : vector<192x32xf32>
    %17 = arith.negf %16 : vector<192x32xf32>
    %18 = math.exp %17 : vector<192x32xf32>
    %cst_11 = arith.constant 1.000000e+00 : f32
    %19 = vector.broadcast %cst_11 : f32 to vector<192x32xf32>
    %20 = arith.addf %19, %18 : vector<192x32xf32>
    %21 = arith.divf %19, %20 : vector<192x32xf32>
    %22 = arith.mulf %16, %21 : vector<192x32xf32>
    %c0_12 = arith.constant 0 : index
    %c0_13 = arith.constant 0 : index
    %23 = vector.load %arg13[%c0_12, %c0_13] : memref<6x192xf32, #tpu.memory_space<vmem>>, vector<6x192xf32>
    %cst_14 = arith.constant dense<0.000000e+00> : vector<6x32xf32>
    %24 = tpu.matmul %23, %22, %cst_14 {dimension_numbers = #tpu.dot_dimension_numbers<[1], [0], [0], [1], [0, 0, 1, 1], [], []>} : vector<6x192xf32>, vector<192x32xf32>, vector<6x32xf32> -> vector<6x32xf32>
    %c0_15 = arith.constant 0 : index
    %c0_16 = arith.constant 0 : index
    %25 = vector.load %arg7[%c0_15, %c0_16] : memref<32x2xf32, #tpu.memory_space<vmem>>, vector<32x2xf32>
    %cst_17 = arith.constant dense<0.000000e+00> : vector<6x2xf32>
    %26 = tpu.matmul %24, %25, %cst_17 {dimension_numbers = #tpu.dot_dimension_numbers<[1], [0], [0], [1], [0, 0, 1, 1], [], []>} : vector<6x32xf32>, vector<32x2xf32>, vector<6x2xf32> -> vector<6x2xf32>
    %c0_18 = arith.constant 0 : index
    %c0_19 = arith.constant 0 : index
    %27 = vector.load %arg8[%c0_18, %c0_19] : memref<1x2xf32, #tpu.memory_space<vmem>>, vector<1x2xf32>
    %28 = vector.broadcast %27 : vector<1x2xf32> to vector<6x2xf32>
    %29 = arith.addf %26, %28 : vector<6x2xf32>
    %cst_20 = arith.constant 0.000000e+00 : f32
    %30 = vector.broadcast %cst_20 : f32 to vector<6x2xf32>
    %31 = arith.maximumf %29, %30 : vector<6x2xf32>
    %c0_21 = arith.constant 0 : index
    %c0_22 = arith.constant 0 : index
    %32 = vector.load %arg9[%c0_21, %c0_22] : memref<2x32xf32, #tpu.memory_space<vmem>>, vector<2x32xf32>
    %cst_23 = arith.constant dense<0.000000e+00> : vector<6x32xf32>
    %33 = tpu.matmul %31, %32, %cst_23 {dimension_numbers = #tpu.dot_dimension_numbers<[1], [0], [0], [1], [0, 0, 1, 1], [], []>} : vector<6x2xf32>, vector<2x32xf32>, vector<6x32xf32> -> vector<6x32xf32>
    %c0_24 = arith.constant 0 : index
    %c0_25 = arith.constant 0 : index
    %34 = vector.load %arg10[%c0_24, %c0_25] : memref<1x32xf32, #tpu.memory_space<vmem>>, vector<1x32xf32>
    %35 = vector.broadcast %34 : vector<1x32xf32> to vector<6x32xf32>
    %36 = arith.addf %33, %35 : vector<6x32xf32>
    %37 = arith.negf %36 : vector<6x32xf32>
    %38 = math.exp %37 : vector<6x32xf32>
    %cst_26 = arith.constant 1.000000e+00 : f32
    %39 = vector.broadcast %cst_26 : f32 to vector<6x32xf32>
    %40 = arith.addf %39, %38 : vector<6x32xf32>
    %41 = arith.divf %39, %40 : vector<6x32xf32>
    %c0_27 = arith.constant 0 : index
    %c0_28 = arith.constant 0 : index
    %42 = vector.load %arg14[%c0_27, %c0_28] : memref<192x6xf32, #tpu.memory_space<vmem>>, vector<192x6xf32>
    %cst_29 = arith.constant dense<0.000000e+00> : vector<192x32xf32>
    %43 = tpu.matmul %42, %41, %cst_29 {dimension_numbers = #tpu.dot_dimension_numbers<[1], [0], [0], [1], [0, 0, 1, 1], [], []>} : vector<192x6xf32>, vector<6x32xf32>, vector<192x32xf32> -> vector<192x32xf32>
    %44 = arith.mulf %22, %43 : vector<192x32xf32>
    %c0_30 = arith.constant 0 : index
    %c0_31 = arith.constant 0 : index
    %45 = vector.load %arg11[%c0_30, %c0_31] : memref<32x16xf32, #tpu.memory_space<vmem>>, vector<32x16xf32>
    %cst_32 = arith.constant dense<0.000000e+00> : vector<192x16xf32>
    %46 = tpu.matmul %44, %45, %cst_32 {dimension_numbers = #tpu.dot_dimension_numbers<[1], [0], [0], [1], [0, 0, 1, 1], [], []>} : vector<192x32xf32>, vector<32x16xf32>, vector<192x16xf32> -> vector<192x16xf32>
    %c0_33 = arith.constant 0 : index
    %c0_34 = arith.constant 0 : index
    %47 = vector.load %arg12[%c0_33, %c0_34] : memref<1x16xf32, #tpu.memory_space<vmem>>, vector<1x16xf32>
    %48 = vector.broadcast %47 : vector<1x16xf32> to vector<192x16xf32>
    %49 = arith.addf %46, %48 : vector<192x16xf32>
    %c0_35 = arith.constant 0 : index
    %c0_36 = arith.constant 0 : index
    %50 = vector.load %arg15[%c0_35, %c0_36] : memref<96x192xf32, #tpu.memory_space<vmem>>, vector<96x192xf32>
    %cst_37 = arith.constant dense<0.000000e+00> : vector<96x16xf32>
    %51 = tpu.matmul %50, %49, %cst_37 {dimension_numbers = #tpu.dot_dimension_numbers<[1], [0], [0], [1], [0, 0, 1, 1], [], []>} : vector<96x192xf32>, vector<192x16xf32>, vector<96x16xf32> -> vector<96x16xf32>
    %c0_38 = arith.constant 0 : index
    %c0_39 = arith.constant 0 : index
    %52 = vector.load %arg16[%c0_38, %c0_39] : memref<16x32xf32, #tpu.memory_space<vmem>>, vector<16x32xf32>
    %cst_40 = arith.constant dense<0.000000e+00> : vector<96x32xf32>
    %53 = tpu.matmul %51, %52, %cst_40 {dimension_numbers = #tpu.dot_dimension_numbers<[1], [0], [0], [1], [0, 0, 1, 1], [], []>} : vector<96x16xf32>, vector<16x32xf32>, vector<96x32xf32> -> vector<96x32xf32>
    %c0_41 = arith.constant 0 : index
    %c0_42 = arith.constant 0 : index
    %54 = vector.load %arg19[%c0_41, %c0_42] : memref<96x32xf32, #tpu.memory_space<vmem>>, vector<96x32xf32>
    tpu.vector_store %arg19[%c0_41, %c0_42], %53 {strides = array<i32>} : memref<96x32xf32, #tpu.memory_space<vmem>>, vector<96x32xf32>,
    %c0_43 = arith.constant 0 : index
    %c0_44 = arith.constant 0 : index
    %55 = vector.load %arg1[%c0_43, %c0_44] : memref<6x8xf32, #tpu.memory_space<vmem>>, vector<6x8xf32>
    %c0_45 = arith.constant 0 : index
    %c0_46 = arith.constant 0 : index
    %56 = vector.load %arg17[%c0_45, %c0_46] : memref<8x16xf32, #tpu.memory_space<vmem>>, vector<8x16xf32>
    %cst_47 = arith.constant dense<0.000000e+00> : vector<6x16xf32>
    %57 = tpu.matmul %55, %56, %cst_47 {dimension_numbers = #tpu.dot_dimension_numbers<[1], [0], [0], [1], [0, 0, 1, 1], [], []>} : vector<6x8xf32>, vector<8x16xf32>, vector<6x16xf32> -> vector<6x16xf32>
    %c0_48 = arith.constant 0 : index
    %c0_49 = arith.constant 0 : index
    %58 = vector.load %arg18[%c0_48, %c0_49] : memref<1x16xf32, #tpu.memory_space<vmem>>, vector<1x16xf32>
    %59 = vector.broadcast %58 : vector<1x16xf32> to vector<6x16xf32>
    %60 = arith.addf %57, %59 : vector<6x16xf32>
    %cst_50 = arith.constant 0.666666686 : f32
    %61 = vector.broadcast %cst_50 : f32 to vector<6x16xf32>
    %62 = arith.mulf %60, %61 : vector<6x16xf32>
    %c0_51 = arith.constant 0 : index
    %c0_52 = arith.constant 0 : index
    %63 = vector.load %arg2[%c0_51, %c0_52] : memref<6x16xf32, #tpu.memory_space<vmem>>, vector<6x16xf32>
    %64 = arith.addf %62, %63 : vector<6x16xf32>
    %65 = arith.negf %64 : vector<6x16xf32>
    %66 = math.exp %65 : vector<6x16xf32>
    %cst_53 = arith.constant 1.000000e+00 : f32
    %67 = vector.broadcast %cst_53 : f32 to vector<6x16xf32>
    %68 = arith.addf %67, %66 : vector<6x16xf32>
    %69 = arith.divf %67, %68 : vector<6x16xf32>
    %70 = arith.mulf %64, %69 : vector<6x16xf32>
    %c0_54 = arith.constant 0 : index
    %c0_55 = arith.constant 0 : index
    %71 = vector.load %arg20[%c0_54, %c0_55] : memref<6x16xf32, #tpu.memory_space<vmem>>, vector<6x16xf32>
    tpu.vector_store %arg20[%c0_54, %c0_55], %70 {strides = array<i32>} : memref<6x16xf32, #tpu.memory_space<vmem>>, vector<6x16xf32>,
    return
  }
}

</mosaic_0001>

<llo_original>
// kernel: edge_block_forward.3
$region0: #{edge_block_forward.3}
  #allocation0 [shape = 'u32[]', space=smem, size = 0x4, offset = 0x4, fixed_abs, tag = 'smem constant byte address 0x4 - core index']
  #allocation1 [shape = 'u32[72,128]{1,0:T(1,128)}', space=vmem, size = 0x9000, scoped, tag = 'internal scratch']
  %s0 = inlined_call_operand.vmem [shape: f32[6,512], index: 0, kind: input, shape index: {}]
  %s1 = inlined_call_operand.vmem [shape: f32[512,256], index: 1, kind: input, shape index: {}]
  %s2 = inlined_call_operand.vmem [shape: f32[256,1], index: 2, kind: input, shape index: {}]
  %s3 = inlined_call_operand.vmem [shape: f32[1,256], index: 3, kind: input, shape index: {}]
  %s4 = inlined_call_operand.vmem [shape: f32[256,4], index: 4, kind: input, shape index: {}]
  %s5 = inlined_call_operand.vmem [shape: f32[4,256], index: 5, kind: input, shape index: {}]
  %s6 = inlined_call_operand.vmem [shape: f32[1,256], index: 6, kind: input, shape index: {}]
  %s7 = inlined_call_operand.vmem [shape: f32[256,320], index: 7, kind: input, shape index: {}]
  %s8 = inlined_call_operand.vmem [shape: f32[6,256], index: 8, kind: output, shape index: {0}]
  %s9 = inlined_call_operand.vmem [shape: f32[6,320], index: 9, kind: output, shape index: {1}]
  %10 = xla_tuple %s8, %s9
  %s11 = sld [smem:[#allocation0]]
  $region50: #{edge_block_forward.3} parent=0
    _
  %s13 = ssub.s32 1, %s11
  %s14 = scalar_select 0, %s13, %s11
  // Predicated region
  $region2: #{edge_block_forward.3} parent=0 // pred_check
    _
  $region3: #{edge_block_forward.3} parent=0 // pred_check_branch
    %16 = sbr.rel (0) target = $region5
  $region4: #{edge_block_forward.3} parent=0 // pred_region
    _
  $region5: #{edge_block_forward.3} parent=0 // pred_fallthru
    _
  // Predicated region
  $region6: #{edge_block_forward.3} parent=0 // pred_check
    _
  $region7: #{edge_block_forward.3} parent=0 // pred_check_branch
    %18 = sbr.rel (0) target = $region9
  $region8: #{edge_block_forward.3} parent=0 // pred_region
    _
  $region9: #{edge_block_forward.3} parent=0 // pred_fallthru
    _
  // Predicated region
  $region10: #{edge_block_forward.3} parent=0 // pred_check
    _
  $region11: #{edge_block_forward.3} parent=0 // pred_check_branch
    %20 = sbr.rel (0) target = $region13
  $region12: #{edge_block_forward.3} parent=0 // pred_region
    _
  $region13: #{edge_block_forward.3} parent=0 // pred_fallthru
    _
  // Predicated region
  $region14: #{edge_block_forward.3} parent=0 // pred_check
    _
  $region15: #{edge_block_forward.3} parent=0 // pred_check_branch
    %22 = sbr.rel (0) target = $region17
  $region16: #{edge_block_forward.3} parent=0 // pred_region
    _
  $region17: #{edge_block_forward.3} parent=0 // pred_fallthru
    _
  // Predicated region
  $region18: #{edge_block_forward.3} parent=0 // pred_check
    _
  $region19: #{edge_block_forward.3} parent=0 // pred_check_branch
    %24 = sbr.rel (0) target = $region21
  $region20: #{edge_block_forward.3} parent=0 // pred_region
    _
  $region21: #{edge_block_forward.3} parent=0 // pred_fallthru
    _
  // Predicated region
  $region22: #{edge_block_forward.3} parent=0 // pred_check
    _
  $region23: #{edge_block_forward.3} parent=0 // pred_check_branch
    %26 = sbr.rel (0) target = $region25
  $region24: #{edge_block_forward.3} parent=0 // pred_region
    _
  $region25: #{edge_block_forward.3} parent=0 // pred_fallthru
    _
  // Predicated region
  $region26: #{edge_block_forward.3} parent=0 // pred_check
    _
  $region27: #{edge_block_forward.3} parent=0 // pred_check_branch
    %28 = sbr.rel (0) target = $region29
  $region28: #{edge_block_forward.3} parent=0 // pred_region
    _
  $region29: #{edge_block_forward.3} parent=0 // pred_fallthru
    _
  // Predicated region
  $region30: #{edge_block_forward.3} parent=0 // pred_check
    _
  $region31: #{edge_block_forward.3} parent=0 // pred_check_branch
    %30 = sbr.rel (0) target = $region33
  $region32: #{edge_block_forward.3} parent=0 // pred_region
    _
  $region33: #{edge_block_forward.3} parent=0 // pred_fallthru
    _
  %v31 = vld [vmem:[%s0] sm:$0x3f]
  %v32 = vld [vmem:[%s0 + $0x8] sm:$0x3f]
  %v33 = vld [vmem:[%s0 + $0x10] sm:$0x3f]
  %v34 = vld [vmem:[%s0 + $0x18] sm:$0x3f]
  %v35 = vld [vmem:[%s1] sm:$0xff]
  %v36 = vld [vmem:[%s1 + $0x8] sm:$0xff]
  %v37 = vld [vmem:[%s1 + $0x10] sm:$0xff]
  %v38 = vld [vmem:[%s1 + $0x18] sm:$0xff]
  %v39 = vld [vmem:[%s1 + $0x20] sm:$0xff]
  %v40 = vld [vmem:[%s1 + $0x28] sm:$0xff]
  %v41 = vld [vmem:[%s1 + $0x30] sm:$0xff]
  %v42 = vld [vmem:[%s1 + $0x38] sm:$0xff]
  %v43 = vld [vmem:[%s1 + $0x40] sm:$0xff]
  %v44 = vld [vmem:[%s1 + $0x48] sm:$0xff]
  %v45 = vld [vmem:[%s1 + $0x50] sm:$0xff]
  %v46 = vld [vmem:[%s1 + $0x58] sm:$0xff]
  %v47 = vld [vmem:[%s1 + $0x60] sm:$0xff]
  %v48 = vld [vmem:[%s1 + $0x68] sm:$0xff]
  %v49 = vld [vmem:[%s1 + $0x70] sm:$0xff]
  %v50 = vld [vmem:[%s1 + $0x78] sm:$0xff]
  %v51 = vld [vmem:[%s1 + $0x80] sm:$0xff]
  %v52 = vld [vmem:[%s1 + $0x88] sm:$0xff]
  %v53 = vld [vmem:[%s1 + $0x90] sm:$0xff]
  %v54 = vld [vmem:[%s1 + $0x98] sm:$0xff]
  %v55 = vld [vmem:[%s1 + $0xa0] sm:$0xff]
  %v56 = vld [vmem:[%s1 + $0xa8] sm:$0xff]
  %v57 = vld [vmem:[%s1 + $0xb0] sm:$0xff]
  %v58 = vld [vmem:[%s1 + $0xb8] sm:$0xff]
  %v59 = vld [vmem:[%s1 + $0xc0] sm:$0xff]
  %v60 = vld [vmem:[%s1 + $0xc8] sm:$0xff]
  %v61 = vld [vmem:[%s1 + $0xd0] sm:$0xff]
  %v62 = vld [vmem:[%s1 + $0xd8] sm:$0xff]
  %v63 = vld [vmem:[%s1 + $0xe0] sm:$0xff]
  %v64 = vld [vmem:[%s1 + $0xe8] sm:$0xff]
  %v65 = vld [vmem:[%s1 + $0xf0] sm:$0xff]
  %v66 = vld [vmem:[%s1 + $0xf8] sm:$0xff]
  %v67 = vld [vmem:[%s1 + $0x100] sm:$0xff]
  %v68 = vld [vmem:[%s1 + $0x108] sm:$0xff]
  %v69 = vld [vmem:[%s1 + $0x110] sm:$0xff]
  %v70 = vld [vmem:[%s1 + $0x118] sm:$0xff]
  %v71 = vld [vmem:[%s1 + $0x120] sm:$0xff]
  %v72 = vld [vmem:[%s1 + $0x128] sm:$0xff]
  %v73 = vld [vmem:[%s1 + $0x130] sm:$0xff]
  %v74 = vld [vmem:[%s1 + $0x138] sm:$0xff]
  %v75 = vld [vmem:[%s1 + $0x140] sm:$0xff]
  %v76 = vld [vmem:[%s1 + $0x148] sm:$0xff]
  %v77 = vld [vmem:[%s1 + $0x150] sm:$0xff]
  %v78 = vld [vmem:[%s1 + $0x158] sm:$0xff]
  %v79 = vld [vmem:[%s1 + $0x160] sm:$0xff]
  %v80 = vld [vmem:[%s1 + $0x168] sm:$0xff]
  %v81 = vld [vmem:[%s1 + $0x170] sm:$0xff]
  %v82 = vld [vmem:[%s1 + $0x178] sm:$0xff]
  %v83 = vld [vmem:[%s1 + $0x180] sm:$0xff]
  %v84 = vld [vmem:[%s1 + $0x188] sm:$0xff]
  %v85 = vld [vmem:[%s1 + $0x190] sm:$0xff]
  %v86 = vld [vmem:[%s1 + $0x198] sm:$0xff]
  %v87 = vld [vmem:[%s1 + $0x1a0] sm:$0xff]
  %v88 = vld [vmem:[%s1 + $0x1a8] sm:$0xff]
  %v89 = vld [vmem:[%s1 + $0x1b0] sm:$0xff]
  %v90 = vld [vmem:[%s1 + $0x1b8] sm:$0xff]
  %v91 = vld [vmem:[%s1 + $0x1c0] sm:$0xff]
  %v92 = vld [vmem:[%s1 + $0x1c8] sm:$0xff]
  %v93 = vld [vmem:[%s1 + $0x1d0] sm:$0xff]
  %v94 = vld [vmem:[%s1 + $0x1d8] sm:$0xff]
  %v95 = vld [vmem:[%s1 + $0x1e0] sm:$0xff]
  %v96 = vld [vmem:[%s1 + $0x1e8] sm:$0xff]
  %v97 = vld [vmem:[%s1 + $0x1f0] sm:$0xff]
  %v98 = vld [vmem:[%s1 + $0x1f8] sm:$0xff]
  %v99 = vld [vmem:[%s1 + $0x200] sm:$0xff]
  %v100 = vld [vmem:[%s1 + $0x208] sm:$0xff]
  %v101 = vld [vmem:[%s1 + $0x210] sm:$0xff]
  %v102 = vld [vmem:[%s1 + $0x218] sm:$0xff]
  %v103 = vld [vmem:[%s1 + $0x220] sm:$0xff]
  %v104 = vld [vmem:[%s1 + $0x228] sm:$0xff]
  %v105 = vld [vmem:[%s1 + $0x230] sm:$0xff]
  %v106 = vld [vmem:[%s1 + $0x238] sm:$0xff]
  %v107 = vld [vmem:[%s1 + $0x240] sm:$0xff]
  %v108 = vld [vmem:[%s1 + $0x248] sm:$0xff]
  %v109 = vld [vmem:[%s1 + $0x250] sm:$0xff]
  %v110 = vld [vmem:[%s1 + $0x258] sm:$0xff]
  %v111 = vld [vmem:[%s1 + $0x260] sm:$0xff]
  %v112 = vld [vmem:[%s1 + $0x268] sm:$0xff]
  %v113 = vld [vmem:[%s1 + $0x270] sm:$0xff]
  %v114 = vld [vmem:[%s1 + $0x278] sm:$0xff]
  %v115 = vld [vmem:[%s1 + $0x280] sm:$0xff]
  %v116 = vld [vmem:[%s1 + $0x288] sm:$0xff]
  %v117 = vld [vmem:[%s1 + $0x290] sm:$0xff]
  %v118 = vld [vmem:[%s1 + $0x298] sm:$0xff]
  %v119 = vld [vmem:[%s1 + $0x2a0] sm:$0xff]
  %v120 = vld [vmem:[%s1 + $0x2a8] sm:$0xff]
  %v121 = vld [vmem:[%s1 + $0x2b0] sm:$0xff]
  %v122 = vld [vmem:[%s1 + $0x2b8] sm:$0xff]
  %v123 = vld [vmem:[%s1 + $0x2c0] sm:$0xff]
  %v124 = vld [vmem:[%s1 + $0x2c8] sm:$0xff]
  %v125 = vld [vmem:[%s1 + $0x2d0] sm:$0xff]
  %v126 = vld [vmem:[%s1 + $0x2d8] sm:$0xff]
  %v127 = vld [vmem:[%s1 + $0x2e0] sm:$0xff]
  %v128 = vld [vmem:[%s1 + $0x2e8] sm:$0xff]
  %v129 = vld [vmem:[%s1 + $0x2f0] sm:$0xff]
  %v130 = vld [vmem:[%s1 + $0x2f8] sm:$0xff]
  %v131 = vld [vmem:[%s1 + $0x300] sm:$0xff]
  %v132 = vld [vmem:[%s1 + $0x308] sm:$0xff]
  %v133 = vld [vmem:[%s1 + $0x310] sm:$0xff]
  %v134 = vld [vmem:[%s1 + $0x318] sm:$0xff]
  %v135 = vld [vmem:[%s1 + $0x320] sm:$0xff]
  %v136 = vld [vmem:[%s1 + $0x328] sm:$0xff]
  %v137 = vld [vmem:[%s1 + $0x330] sm:$0xff]
  %v138 = vld [vmem:[%s1 + $0x338] sm:$0xff]
  %v139 = vld [vmem:[%s1 + $0x340] sm:$0xff]
  %v140 = vld [vmem:[%s1 + $0x348] sm:$0xff]
  %v141 = vld [vmem:[%s1 + $0x350] sm:$0xff]
  %v142 = vld [vmem:[%s1 + $0x358] sm:$0xff]
  %v143 = vld [vmem:[%s1 + $0x360] sm:$0xff]
  %v144 = vld [vmem:[%s1 + $0x368] sm:$0xff]
  %v145 = vld [vmem:[%s1 + $0x370] sm:$0xff]
  %v146 = vld [vmem:[%s1 + $0x378] sm:$0xff]
  %v147 = vld [vmem:[%s1 + $0x380] sm:$0xff]
  %v148 = vld [vmem:[%s1 + $0x388] sm:$0xff]
  %v149 = vld [vmem:[%s1 + $0x390] sm:$0xff]
  %v150 = vld [vmem:[%s1 + $0x398] sm:$0xff]
  %v151 = vld [vmem:[%s1 + $0x3a0] sm:$0xff]
  %v152 = vld [vmem:[%s1 + $0x3a8] sm:$0xff]
  %v153 = vld [vmem:[%s1 + $0x3b0] sm:$0xff]
  %v154 = vld [vmem:[%s1 + $0x3b8] sm:$0xff]
  %v155 = vld [vmem:[%s1 + $0x3c0] sm:$0xff]
  %v156 = vld [vmem:[%s1 + $0x3c8] sm:$0xff]
  %v157 = vld [vmem:[%s1 + $0x3d0] sm:$0xff]
  %v158 = vld [vmem:[%s1 + $0x3d8] sm:$0xff]
  %v159 = vld [vmem:[%s1 + $0x3e0] sm:$0xff]
  %v160 = vld [vmem:[%s1 + $0x3e8] sm:$0xff]
  %v161 = vld [vmem:[%s1 + $0x3f0] sm:$0xff]
  %v162 = vld [vmem:[%s1 + $0x3f8] sm:$0xff]
  %163 = vmatpush.msra.mxu0 %v65
  %164 = vmatpush.msra.mxu0 %v63
  %165 = vmatpush.msra.mxu0 %v61
  %166 = vmatpush.msra.mxu0 %v59
  %167 = vmatpush.msra.mxu0 %v57
  %168 = vmatpush.msra.mxu0 %v55
  %169 = vmatpush.msra.mxu0 %v53
  %170 = vmatpush.msra.mxu0 %v51
  %171 = vmatpush.msra.mxu0 %v49
  %172 = vmatpush.msra.mxu0 %v47
  %173 = vmatpush.msra.mxu0 %v45
  %174 = vmatpush.msra.mxu0 %v43
  %175 = vmatpush.msra.mxu0 %v41
  %176 = vmatpush.msra.mxu0 %v39
  %177 = vmatpush.msra.mxu0 %v37
  %178 = vmatpush.msra.mxu0 %v35
  %179 = vmatmul.f32.gmra.mxu0 %v31
  %v180 = vpop.f32.mrf.mxu0
  %v181 = vadd.f32 0.0, %v180
  %182 = vdwg.mxu0
  %183 = vmatpush.msra.mxu0 %v97
  %184 = vmatpush.msra.mxu0 %v95
  %185 = vmatpush.msra.mxu0 %v93
  %186 = vmatpush.msra.mxu0 %v91
  %187 = vmatpush.msra.mxu0 %v89
  %188 = vmatpush.msra.mxu0 %v87
  %189 = vmatpush.msra.mxu0 %v85
  %190 = vmatpush.msra.mxu0 %v83
  %191 = vmatpush.msra.mxu0 %v81
  %192 = vmatpush.msra.mxu0 %v79
  %193 = vmatpush.msra.mxu0 %v77
  %194 = vmatpush.msra.mxu0 %v75
  %195 = vmatpush.msra.mxu0 %v73
  %196 = vmatpush.msra.mxu0 %v71
  %197 = vmatpush.msra.mxu0 %v69
  %198 = vmatpush.msra.mxu0 %v67
  %199 = vmatmul.f32.gmra.mxu0 %v32
  %v200 = vpop.f32.mrf.mxu0
  %v201 = vadd.f32 %v181, %v200
  %202 = vdwg.mxu0
  %203 = vmatpush.msra.mxu0 %v129
  %204 = vmatpush.msra.mxu0 %v127
  %205 = vmatpush.msra.mxu0 %v125
  %206 = vmatpush.msra.mxu0 %v123
  %207 = vmatpush.msra.mxu0 %v121
  %208 = vmatpush.msra.mxu0 %v119
  %209 = vmatpush.msra.mxu0 %v117
  %210 = vmatpush.msra.mxu0 %v115
  %211 = vmatpush.msra.mxu0 %v113
  %212 = vmatpush.msra.mxu0 %v111
  %213 = vmatpush.msra.mxu0 %v109
  %214 = vmatpush.msra.mxu0 %v107
  %215 = vmatpush.msra.mxu0 %v105
  %216 = vmatpush.msra.mxu0 %v103
  %217 = vmatpush.msra.mxu0 %v101
  %218 = vmatpush.msra.mxu0 %v99
  %219 = vmatmul.f32.gmra.mxu0 %v33
  %v220 = vpop.f32.mrf.mxu0
  %v221 = vadd.f32 %v201, %v220
  %222 = vdwg.mxu0
  %223 = vmatpush.msra.mxu0 %v161
  %224 = vmatpush.msra.mxu0 %v159
  %225 = vmatpush.msra.mxu0 %v157
  %226 = vmatpush.msra.mxu0 %v155
  %227 = vmatpush.msra.mxu0 %v153
  %228 = vmatpush.msra.mxu0 %v151
  %229 = vmatpush.msra.mxu0 %v149
  %230 = vmatpush.msra.mxu0 %v147
  %231 = vmatpush.msra.mxu0 %v145
  %232 = vmatpush.msra.mxu0 %v143
  %233 = vmatpush.msra.mxu0 %v141
  %234 = vmatpush.msra.mxu0 %v139
  %235 = vmatpush.msra.mxu0 %v137
  %236 = vmatpush.msra.mxu0 %v135
  %237 = vmatpush.msra.mxu0 %v133
  %238 = vmatpush.msra.mxu0 %v131
  %239 = vmatmul.f32.gmra.mxu0 %v34
  %v240 = vpop.f32.mrf.mxu0
  %v241 = vadd.f32 %v221, %v240
  %242 = vdwg.mxu0
  %243 = vmatpush.msra.mxu0 %v66
  %244 = vmatpush.msra.mxu0 %v64
  %245 = vmatpush.msra.mxu0 %v62
  %246 = vmatpush.msra.mxu0 %v60
  %247 = vmatpush.msra.mxu0 %v58
  %248 = vmatpush.msra.mxu0 %v56
  %249 = vmatpush.msra.mxu0 %v54
  %250 = vmatpush.msra.mxu0 %v52
  %251 = vmatpush.msra.mxu0 %v50
  %252 = vmatpush.msra.mxu0 %v48
  %253 = vmatpush.msra.mxu0 %v46
  %254 = vmatpush.msra.mxu0 %v44
  %255 = vmatpush.msra.mxu0 %v42
  %256 = vmatpush.msra.mxu0 %v40
  %257 = vmatpush.msra.mxu0 %v38
  %258 = vmatpush.msra.mxu0 %v36
  %259 = vmatmul.f32.gmra.mxu0 %v31
  %v260 = vpop.f32.mrf.mxu0
  %v261 = vadd.f32 0.0, %v260
  %262 = vdwg.mxu0
  %263 = vmatpush.msra.mxu0 %v98
  %264 = vmatpush.msra.mxu0 %v96
  %265 = vmatpush.msra.mxu0 %v94
  %266 = vmatpush.msra.mxu0 %v92
  %267 = vmatpush.msra.mxu0 %v90
  %268 = vmatpush.msra.mxu0 %v88
  %269 = vmatpush.msra.mxu0 %v86
  %270 = vmatpush.msra.mxu0 %v84
  %271 = vmatpush.msra.mxu0 %v82
  %272 = vmatpush.msra.mxu0 %v80
  %273 = vmatpush.msra.mxu0 %v78
  %274 = vmatpush.msra.mxu0 %v76
  %275 = vmatpush.msra.mxu0 %v74
  %276 = vmatpush.msra.mxu0 %v72
  %277 = vmatpush.msra.mxu0 %v70
  %278 = vmatpush.msra.mxu0 %v68
  %279 = vmatmul.f32.gmra.mxu0 %v32
  %v280 = vpop.f32.mrf.mxu0
  %v281 = vadd.f32 %v261, %v280
  %282 = vdwg.mxu0
  %283 = vmatpush.msra.mxu0 %v130
  %284 = vmatpush.msra.mxu0 %v128
  %285 = vmatpush.msra.mxu0 %v126
  %286 = vmatpush.msra.mxu0 %v124
  %287 = vmatpush.msra.mxu0 %v122
  %288 = vmatpush.msra.mxu0 %v120
  %289 = vmatpush.msra.mxu0 %v118
  %290 = vmatpush.msra.mxu0 %v116
  %291 = vmatpush.msra.mxu0 %v114
  %292 = vmatpush.msra.mxu0 %v112
  %293 = vmatpush.msra.mxu0 %v110
  %294 = vmatpush.msra.mxu0 %v108
  %295 = vmatpush.msra.mxu0 %v106
  %296 = vmatpush.msra.mxu0 %v104
  %297 = vmatpush.msra.mxu0 %v102
  %298 = vmatpush.msra.mxu0 %v100
  %299 = vmatmul.f32.gmra.mxu0 %v33
  %v300 = vpop.f32.mrf.mxu0
  %v301 = vadd.f32 %v281, %v300
  %302 = vdwg.mxu0
  %303 = vmatpush.msra.mxu0 %v162
  %304 = vmatpush.msra.mxu0 %v160
  %305 = vmatpush.msra.mxu0 %v158
  %306 = vmatpush.msra.mxu0 %v156
  %307 = vmatpush.msra.mxu0 %v154
  %308 = vmatpush.msra.mxu0 %v152
  %309 = vmatpush.msra.mxu0 %v150
  %310 = vmatpush.msra.mxu0 %v148
  %311 = vmatpush.msra.mxu0 %v146
  %312 = vmatpush.msra.mxu0 %v144
  %313 = vmatpush.msra.mxu0 %v142
  %314 = vmatpush.msra.mxu0 %v140
  %315 = vmatpush.msra.mxu0 %v138
  %316 = vmatpush.msra.mxu0 %v136
  %317 = vmatpush.msra.mxu0 %v134
  %318 = vmatpush.msra.mxu0 %v132
  %319 = vmatmul.f32.gmra.mxu0 %v34
  %v320 = vpop.f32.mrf.mxu0
  %v321 = vadd.f32 %v301, %v320
  %322 = vdwg.mxu0
  %323 = vst [vmem:[%s8] sm:$0x3f] %v241
  %324 = vst [vmem:[%s8 + $0x8] sm:$0x3f] %v321
  %v325 = vld [vmem:[%s2] sm:$0xff]
  %v326 = vld [vmem:[%s2 + $0x8] sm:$0xff]
  %v327 = vld [vmem:[%s2 + $0x10] sm:$0xff]
  %v328 = vld [vmem:[%s2 + $0x18] sm:$0xff]
  %v329 = vld [vmem:[%s2 + $0x20] sm:$0xff]
  %v330 = vld [vmem:[%s2 + $0x28] sm:$0xff]
  %v331 = vld [vmem:[%s2 + $0x30] sm:$0xff]
  %v332 = vld [vmem:[%s2 + $0x38] sm:$0xff]
  %v333 = vld [vmem:[%s2 + $0x40] sm:$0xff]
  %v334 = vld [vmem:[%s2 + $0x48] sm:$0xff]
  %v335 = vld [vmem:[%s2 + $0x50] sm:$0xff]
  %v336 = vld [vmem:[%s2 + $0x58] sm:$0xff]
  %v337 = vld [vmem:[%s2 + $0x60] sm:$0xff]
  %v338 = vld [vmem:[%s2 + $0x68] sm:$0xff]
  %v339 = vld [vmem:[%s2 + $0x70] sm:$0xff]
  %v340 = vld [vmem:[%s2 + $0x78] sm:$0xff]
  %v341 = vld [vmem:[%s2 + $0x80] sm:$0xff]
  %v342 = vld [vmem:[%s2 + $0x88] sm:$0xff]
  %v343 = vld [vmem:[%s2 + $0x90] sm:$0xff]
  %v344 = vld [vmem:[%s2 + $0x98] sm:$0xff]
  %v345 = vld [vmem:[%s2 + $0xa0] sm:$0xff]
  %v346 = vld [vmem:[%s2 + $0xa8] sm:$0xff]
  %v347 = vld [vmem:[%s2 + $0xb0] sm:$0xff]
  %v348 = vld [vmem:[%s2 + $0xb8] sm:$0xff]
  %v349 = vld [vmem:[%s2 + $0xc0] sm:$0xff]
  %v350 = vld [vmem:[%s2 + $0xc8] sm:$0xff]
  %v351 = vld [vmem:[%s2 + $0xd0] sm:$0xff]
  %v352 = vld [vmem:[%s2 + $0xd8] sm:$0xff]
  %v353 = vld [vmem:[%s2 + $0xe0] sm:$0xff]
  %v354 = vld [vmem:[%s2 + $0xe8] sm:$0xff]
  %v355 = vld [vmem:[%s2 + $0xf0] sm:$0xff]
  %v356 = vld [vmem:[%s2 + $0xf8] sm:$0xff]
  %357 = vmatpush.msra.mxu0 %v340
  %358 = vmatpush.msra.mxu0 %v339
  %359 = vmatpush.msra.mxu0 %v338
  %360 = vmatpush.msra.mxu0 %v337
  %361 = vmatpush.msra.mxu0 %v336
  %362 = vmatpush.msra.mxu0 %v335
  %363 = vmatpush.msra.mxu0 %v334
  %364 = vmatpush.msra.mxu0 %v333
  %365 = vmatpush.msra.mxu0 %v332
  %366 = vmatpush.msra.mxu0 %v331
  %367 = vmatpush.msra.mxu0 %v330
  %368 = vmatpush.msra.mxu0 %v329
  %369 = vmatpush.msra.mxu0 %v328
  %370 = vmatpush.msra.mxu0 %v327
  %371 = vmatpush.msra.mxu0 %v326
  %372 = vmatpush.msra.mxu0 %v325
  %373 = vmatmul.f32.gmra.mxu0 %v241
  %v374 = vpop.f32.mrf.mxu0
  %v375 = vadd.f32 0.0, %v374
  %376 = vdwg.mxu0
  %377 = vmatpush.msra.mxu0 %v356
  %378 = vmatpush.msra.mxu0 %v355
  %379 = vmatpush.msra.mxu0 %v354
  %380 = vmatpush.msra.mxu0 %v353
  %381 = vmatpush.msra.mxu0 %v352
  %382 = vmatpush.msra.mxu0 %v351
  %383 = vmatpush.msra.mxu0 %v350
  %384 = vmatpush.msra.mxu0 %v349
  %385 = vmatpush.msra.mxu0 %v348
  %386 = vmatpush.msra.mxu0 %v347
  %387 = vmatpush.msra.mxu0 %v346
  %388 = vmatpush.msra.mxu0 %v345
  %389 = vmatpush.msra.mxu0 %v344
  %390 = vmatpush.msra.mxu0 %v343
  %391 = vmatpush.msra.mxu0 %v342
  %392 = vmatpush.msra.mxu0 %v341
  %393 = vmatmul.f32.gmra.mxu0 %v321
  %v394 = vpop.f32.mrf.mxu0
  %v395 = vadd.f32 %v375, %v394
  %396 = vdwg.mxu0
  %v397 = vld [vmem:[%s3] sm:$0x3]
  %399 = vset.pattern.permute.xlu0 0
  %400 = vperm.xlu0 %399, %v395
  %v401 = vpop.permute.xlu0 %400
  %v404 = vperm.slane %v397, 0
  %v405 = vperm.slane %v397, 1
  %v408 = vmul.f32 %v401, %v404
  %v409 = vmul.f32 %v401, %v405
  %v410 = vsub.f32 %v241, %v408
  %v411 = vsub.f32 %v321, %v409
  %v412 = vmul.f32 %v410, %v410
  %v413 = vmul.f32 %v411, %v411
  %v414 = vld [vmem:[%s4] sm:$0xff]
  %v415 = vld [vmem:[%s4 + $0x8] sm:$0xff]
  %v416 = vld [vmem:[%s4 + $0x10] sm:$0xff]
  %v417 = vld [vmem:[%s4 + $0x18] sm:$0xff]
  %v418 = vld [vmem:[%s4 + $0x20] sm:$0xff]
  %v419 = vld [vmem:[%s4 + $0x28] sm:$0xff]
  %v420 = vld [vmem:[%s4 + $0x30] sm:$0xff]
  %v421 = vld [vmem:[%s4 + $0x38] sm:$0xff]
  %v422 = vld [vmem:[%s4 + $0x40] sm:$0xff]
  %v423 = vld [vmem:[%s4 + $0x48] sm:$0xff]
  %v424 = vld [vmem:[%s4 + $0x50] sm:$0xff]
  %v425 = vld [vmem:[%s4 + $0x58] sm:$0xff]
  %v426 = vld [vmem:[%s4 + $0x60] sm:$0xff]
  %v427 = vld [vmem:[%s4 + $0x68] sm:$0xff]
  %v428 = vld [vmem:[%s4 + $0x70] sm:$0xff]
  %v429 = vld [vmem:[%s4 + $0x78] sm:$0xff]
  %v430 = vld [vmem:[%s4 + $0x80] sm:$0xff]
  %v431 = vld [vmem:[%s4 + $0x88] sm:$0xff]
  %v432 = vld [vmem:[%s4 + $0x90] sm:$0xff]
  %v433 = vld [vmem:[%s4 + $0x98] sm:$0xff]
  %v434 = vld [vmem:[%s4 + $0xa0] sm:$0xff]
  %v435 = vld [vmem:[%s4 + $0xa8] sm:$0xff]
  %v436 = vld [vmem:[%s4 + $0xb0] sm:$0xff]
  %v437 = vld [vmem:[%s4 + $0xb8] sm:$0xff]
  %v438 = vld [vmem:[%s4 + $0xc0] sm:$0xff]
  %v439 = vld [vmem:[%s4 + $0xc8] sm:$0xff]
  %v440 = vld [vmem:[%s4 + $0xd0] sm:$0xff]
  %v441 = vld [vmem:[%s4 + $0xd8] sm:$0xff]
  %v442 = vld [vmem:[%s4 + $0xe0] sm:$0xff]
  %v443 = vld [vmem:[%s4 + $0xe8] sm:$0xff]
  %v444 = vld [vmem:[%s4 + $0xf0] sm:$0xff]
  %v445 = vld [vmem:[%s4 + $0xf8] sm:$0xff]
  %446 = vmatpush.msra.mxu0 %v429
  %447 = vmatpush.msra.mxu0 %v428
  %448 = vmatpush.msra.mxu0 %v427
  %449 = vmatpush.msra.mxu0 %v426
  %450 = vmatpush.msra.mxu0 %v425
  %451 = vmatpush.msra.mxu0 %v424
  %452 = vmatpush.msra.mxu0 %v423
  %453 = vmatpush.msra.mxu0 %v422
  %454 = vmatpush.msra.mxu0 %v421
  %455 = vmatpush.msra.mxu0 %v420
  %456 = vmatpush.msra.mxu0 %v419
  %457 = vmatpush.msra.mxu0 %v418
  %458 = vmatpush.msra.mxu0 %v417
  %459 = vmatpush.msra.mxu0 %v416
  %460 = vmatpush.msra.mxu0 %v415
  %461 = vmatpush.msra.mxu0 %v414
  %462 = vmatmul.f32.gmra.mxu0 %v412
  %v463 = vpop.f32.mrf.mxu0
  %v464 = vadd.f32 1e-05, %v463
  %465 = vdwg.mxu0
  %466 = vmatpush.msra.mxu0 %v445
  %467 = vmatpush.msra.mxu0 %v444
  %468 = vmatpush.msra.mxu0 %v443
  %469 = vmatpush.msra.mxu0 %v442
  %470 = vmatpush.msra.mxu0 %v441
  %471 = vmatpush.msra.mxu0 %v440
  %472 = vmatpush.msra.mxu0 %v439
  %473 = vmatpush.msra.mxu0 %v438
  %474 = vmatpush.msra.mxu0 %v437
  %475 = vmatpush.msra.mxu0 %v436
  %476 = vmatpush.msra.mxu0 %v435
  %477 = vmatpush.msra.mxu0 %v434
  %478 = vmatpush.msra.mxu0 %v433
  %479 = vmatpush.msra.mxu0 %v432
  %480 = vmatpush.msra.mxu0 %v431
  %481 = vmatpush.msra.mxu0 %v430
  %482 = vmatmul.f32.gmra.mxu0 %v413
  %v483 = vpop.f32.mrf.mxu0
  %v484 = vadd.f32 %v464, %v483
  %485 = vdwg.mxu0
  %v486 = vrsqrt.pop %v484
  %v487 = vmul.f32 %v486, %v484
  %v488 = vmul.f32 %v487, %v486
  %v489 = vmul.f32 0.5, %v488
  %v490 = vsub.f32 1.5, %v489
  %v491 = vmul.f32 %v486, %v490
  %vm492 = vweird.f32 %v484
  %vm493 = vweird.f32 %v486
  %vm494 = vmor %vm492, %vm493
  %v495 = vsel %vm494, %v486, %v491
  %v496 = vld [vmem:[%s5] sm:$0xff]
  %498 = vst [vmem:[#allocation1] ss:$2 sm:$0xff] %v496
  %v499 = vld.sshfl [vmem:[#allocation1] sm:$0xff pattern:$0x75316420]
  %v500 = vld.sshfl [vmem:[#allocation1 + $0x8] sm:$0xff pattern:$0x75316420]
  %vm501 = vcmask 31744
  %v503 = vsel %vm501, %v495, 0
  %vm505 = vcmask 1043456
  %v506 = vsel %vm505, %v499, 0
  %v508 = vsel %vm505, %v500, 0
  %510 = vmatpush.msra.mxu0 0.0
  %511 = vmatpush.msra.mxu0 0.0
  %512 = vmatpush.msra.mxu0 0.0
  %513 = vmatpush.msra.mxu0 0.0
  %514 = vmatpush.msra.mxu0 0.0
  %515 = vmatpush.msra.mxu0 0.0
  %516 = vmatpush.msra.mxu0 0.0
  %517 = vmatpush.msra.mxu0 0.0
  %518 = vmatpush.msra.mxu0 0.0
  %519 = vmatpush.msra.mxu0 0.0
  %520 = vmatpush.msra.mxu0 0.0
  %521 = vmatpush.msra.mxu0 0.0
  %522 = vmatpush.msra.mxu0 0.0
  %523 = vmatpush.msra.mxu0 0.0
  %524 = vmatpush.msra.mxu0 0.0
  %525 = vmatpush.msra.mxu0 %v506
  %526 = vmatmul.f32.gmra.mxu0 %v503
  %v527 = vpop.f32.mrf.mxu0
  %v528 = vadd.f32 0.0, %v527
  %529 = vdwg.mxu0
  %530 = vmatpush.msra.mxu0 0.0
  %531 = vmatpush.msra.mxu0 0.0
  %532 = vmatpush.msra.mxu0 0.0
  %533 = vmatpush.msra.mxu0 0.0
  %534 = vmatpush.msra.mxu0 0.0
  %535 = vmatpush.msra.mxu0 0.0
  %536 = vmatpush.msra.mxu0 0.0
  %537 = vmatpush.msra.mxu0 0.0
  %538 = vmatpush.msra.mxu0 0.0
  %539 = vmatpush.msra.mxu0 0.0
  %540 = vmatpush.msra.mxu0 0.0
  %541 = vmatpush.msra.mxu0 0.0
  %542 = vmatpush.msra.mxu0 0.0
  %543 = vmatpush.msra.mxu0 0.0
  %544 = vmatpush.msra.mxu0 0.0
  %545 = vmatpush.msra.mxu0 %v508
  %546 = vmatmul.f32.gmra.mxu0 %v503
  %v547 = vpop.f32.mrf.mxu0
  %v548 = vadd.f32 0.0, %v547
  %549 = vdwg.mxu0
  %v550 = vmul.f32 %v410, %v528
  %v551 = vmul.f32 %v411, %v548
  %v552 = vld [vmem:[%s6] sm:$0x3]
  %v554 = vperm.slane %v552, 0
  %v555 = vperm.slane %v552, 1
  %v558 = vmul.f32 %v550, %v554
  %v559 = vmul.f32 %v551, %v555
  %v560 = vmul.f32 %v558, 0.57735026
  %v561 = vmul.f32 %v559, 0.57735026
  %v562 = vld [vmem:[%s7] sm:$0xff]
  %v563 = vld [vmem:[%s7 + $0x8] sm:$0xff]
  %v564 = vld [vmem:[%s7 + $0x10] sm:$0xff]
  %v565 = vld [vmem:[%s7 + $0x18] sm:$0xff]
  %v566 = vld [vmem:[%s7 + $0x20] sm:$0xff]
  %v567 = vld [vmem:[%s7 + $0x28] sm:$0xff]
  %v568 = vld [vmem:[%s7 + $0x30] sm:$0xff]
  %v569 = vld [vmem:[%s7 + $0x38] sm:$0xff]
  %v570 = vld [vmem:[%s7 + $0x40] sm:$0xff]
  %v571 = vld [vmem:[%s7 + $0x48] sm:$0xff]
  %v572 = vld [vmem:[%s7 + $0x50] sm:$0xff]
  %v573 = vld [vmem:[%s7 + $0x58] sm:$0xff]
  %v574 = vld [vmem:[%s7 + $0x60] sm:$0xff]
  %v575 = vld [vmem:[%s7 + $0x68] sm:$0xff]
  %v576 = vld [vmem:[%s7 + $0x70] sm:$0xff]
  %v577 = vld [vmem:[%s7 + $0x78] sm:$0xff]
  %v578 = vld [vmem:[%s7 + $0x80] sm:$0xff]
  %v579 = vld [vmem:[%s7 + $0x88] sm:$0xff]
  %v580 = vld [vmem:[%s7 + $0x90] sm:$0xff]
  %v581 = vld [vmem:[%s7 + $0x98] sm:$0xff]
  %v582 = vld [vmem:[%s7 + $0xa0] sm:$0xff]
  %v583 = vld [vmem:[%s7 + $0xa8] sm:$0xff]
  %v584 = vld [vmem:[%s7 + $0xb0] sm:$0xff]
  %v585 = vld [vmem:[%s7 + $0xb8] sm:$0xff]
  %v586 = vld [vmem:[%s7 + $0xc0] sm:$0xff]
  %v587 = vld [vmem:[%s7 + $0xc8] sm:$0xff]
  %v588 = vld [vmem:[%s7 + $0xd0] sm:$0xff]
  %v589 = vld [vmem:[%s7 + $0xd8] sm:$0xff]
  %v590 = vld [vmem:[%s7 + $0xe0] sm:$0xff]
  %v591 = vld [vmem:[%s7 + $0xe8] sm:$0xff]
  %v592 = vld [vmem:[%s7 + $0xf0] sm:$0xff]
  %v593 = vld [vmem:[%s7 + $0xf8] sm:$0xff]
  %v594 = vld [vmem:[%s7 + $0x100] sm:$0xff]
  %v595 = vld [vmem:[%s7 + $0x108] sm:$0xff]
  %v596 = vld [vmem:[%s7 + $0x110] sm:$0xff]
  %v597 = vld [vmem:[%s7 + $0x118] sm:$0xff]
  %v598 = vld [vmem:[%s7 + $0x120] sm:$0xff]
  %v599 = vld [vmem:[%s7 + $0x128] sm:$0xff]
  %v600 = vld [vmem:[%s7 + $0x130] sm:$0xff]
  %v601 = vld [vmem:[%s7 + $0x138] sm:$0xff]
  %v602 = vld [vmem:[%s7 + $0x140] sm:$0xff]
  %v603 = vld [vmem:[%s7 + $0x148] sm:$0xff]
  %v604 = vld [vmem:[%s7 + $0x150] sm:$0xff]
  %v605 = vld [vmem:[%s7 + $0x158] sm:$0xff]
  %v606 = vld [vmem:[%s7 + $0x160] sm:$0xff]
  %v607 = vld [vmem:[%s7 + $0x168] sm:$0xff]
  %v608 = vld [vmem:[%s7 + $0x170] sm:$0xff]
  %v609 = vld [vmem:[%s7 + $0x178] sm:$0xff]
  %v610 = vld [vmem:[%s7 + $0x180] sm:$0xff]
  %v611 = vld [vmem:[%s7 + $0x188] sm:$0xff]
  %v612 = vld [vmem:[%s7 + $0x190] sm:$0xff]
  %v613 = vld [vmem:[%s7 + $0x198] sm:$0xff]
  %v614 = vld [vmem:[%s7 + $0x1a0] sm:$0xff]
  %v615 = vld [vmem:[%s7 + $0x1a8] sm:$0xff]
  %v616 = vld [vmem:[%s7 + $0x1b0] sm:$0xff]
  %v617 = vld [vmem:[%s7 + $0x1b8] sm:$0xff]
  %v618 = vld [vmem:[%s7 + $0x1c0] sm:$0xff]
  %v619 = vld [vmem:[%s7 + $0x1c8] sm:$0xff]
  %v620 = vld [vmem:[%s7 + $0x1d0] sm:$0xff]
  %v621 = vld [vmem:[%s7 + $0x1d8] sm:$0xff]
  %v622 = vld [vmem:[%s7 + $0x1e0] sm:$0xff]
  %v623 = vld [vmem:[%s7 + $0x1e8] sm:$0xff]
  %v624 = vld [vmem:[%s7 + $0x1f0] sm:$0xff]
  %v625 = vld [vmem:[%s7 + $0x1f8] sm:$0xff]
  %v626 = vld [vmem:[%s7 + $0x200] sm:$0xff]
  %v627 = vld [vmem:[%s7 + $0x208] sm:$0xff]
  %v628 = vld [vmem:[%s7 + $0x210] sm:$0xff]
  %v629 = vld [vmem:[%s7 + $0x218] sm:$0xff]
  %v630 = vld [vmem:[%s7 + $0x220] sm:$0xff]
  %v631 = vld [vmem:[%s7 + $0x228] sm:$0xff]
  %v632 = vld [vmem:[%s7 + $0x230] sm:$0xff]
  %v633 = vld [vmem:[%s7 + $0x238] sm:$0xff]
  %v634 = vld [vmem:[%s7 + $0x240] sm:$0xff]
  %v635 = vld [vmem:[%s7 + $0x248] sm:$0xff]
  %v636 = vld [vmem:[%s7 + $0x250] sm:$0xff]
  %v637 = vld [vmem:[%s7 + $0x258] sm:$0xff]
  %v638 = vld [vmem:[%s7 + $0x260] sm:$0xff]
  %v639 = vld [vmem:[%s7 + $0x268] sm:$0xff]
  %v640 = vld [vmem:[%s7 + $0x270] sm:$0xff]
  %v641 = vld [vmem:[%s7 + $0x278] sm:$0xff]
  %v642 = vld [vmem:[%s7 + $0x280] sm:$0xff]
  %v643 = vld [vmem:[%s7 + $0x288] sm:$0xff]
  %v644 = vld [vmem:[%s7 + $0x290] sm:$0xff]
  %v645 = vld [vmem:[%s7 + $0x298] sm:$0xff]
  %v646 = vld [vmem:[%s7 + $0x2a0] sm:$0xff]
  %v647 = vld [vmem:[%s7 + $0x2a8] sm:$0xff]
  %v648 = vld [vmem:[%s7 + $0x2b0] sm:$0xff]
  %v649 = vld [vmem:[%s7 + $0x2b8] sm:$0xff]
  %v650 = vld [vmem:[%s7 + $0x2c0] sm:$0xff]
  %v651 = vld [vmem:[%s7 + $0x2c8] sm:$0xff]
  %v652 = vld [vmem:[%s7 + $0x2d0] sm:$0xff]
  %v653 = vld [vmem:[%s7 + $0x2d8] sm:$0xff]
  %v654 = vld [vmem:[%s7 + $0x2e0] sm:$0xff]
  %v655 = vld [vmem:[%s7 + $0x2e8] sm:$0xff]
  %v656 = vld [vmem:[%s7 + $0x2f0] sm:$0xff]
  %v657 = vld [vmem:[%s7 + $0x2f8] sm:$0xff]
  %658 = vmatpush.msra.mxu0 %v607
  %659 = vmatpush.msra.mxu0 %v604
  %660 = vmatpush.msra.mxu0 %v601
  %661 = vmatpush.msra.mxu0 %v598
  %662 = vmatpush.msra.mxu0 %v595
  %663 = vmatpush.msra.mxu0 %v592
  %664 = vmatpush.msra.mxu0 %v589
  %665 = vmatpush.msra.mxu0 %v586
  %666 = vmatpush.msra.mxu0 %v583
  %667 = vmatpush.msra.mxu0 %v580
  %668 = vmatpush.msra.mxu0 %v577
  %669 = vmatpush.msra.mxu0 %v574
  %670 = vmatpush.msra.mxu0 %v571
  %671 = vmatpush.msra.mxu0 %v568
  %672 = vmatpush.msra.mxu0 %v565
  %673 = vmatpush.msra.mxu0 %v562
  %674 = vmatmul.f32.gmra.mxu0 %v560
  %v675 = vpop.f32.mrf.mxu0
  %v676 = vadd.f32 0.0, %v675
  %677 = vdwg.mxu0
  %678 = vmatpush.msra.mxu0 %v655
  %679 = vmatpush.msra.mxu0 %v652
  %680 = vmatpush.msra.mxu0 %v649
  %681 = vmatpush.msra.mxu0 %v646
  %682 = vmatpush.msra.mxu0 %v643
  %683 = vmatpush.msra.mxu0 %v640
  %684 = vmatpush.msra.mxu0 %v637
  %685 = vmatpush.msra.mxu0 %v634
  %686 = vmatpush.msra.mxu0 %v631
  %687 = vmatpush.msra.mxu0 %v628
  %688 = vmatpush.msra.mxu0 %v625
  %689 = vmatpush.msra.mxu0 %v622
  %690 = vmatpush.msra.mxu0 %v619
  %691 = vmatpush.msra.mxu0 %v616
  %692 = vmatpush.msra.mxu0 %v613
  %693 = vmatpush.msra.mxu0 %v610
  %694 = vmatmul.f32.gmra.mxu0 %v561
  %v695 = vpop.f32.mrf.mxu0
  %v696 = vadd.f32 %v676, %v695
  %697 = vdwg.mxu0
  %698 = vmatpush.msra.mxu0 %v608
  %699 = vmatpush.msra.mxu0 %v605
  %700 = vmatpush.msra.mxu0 %v602
  %701 = vmatpush.msra.mxu0 %v599
  %702 = vmatpush.msra.mxu0 %v596
  %703 = vmatpush.msra.mxu0 %v593
  %704 = vmatpush.msra.mxu0 %v590
  %705 = vmatpush.msra.mxu0 %v587
  %706 = vmatpush.msra.mxu0 %v584
  %707 = vmatpush.msra.mxu0 %v581
  %708 = vmatpush.msra.mxu0 %v578
  %709 = vmatpush.msra.mxu0 %v575
  %710 = vmatpush.msra.mxu0 %v572
  %711 = vmatpush.msra.mxu0 %v569
  %712 = vmatpush.msra.mxu0 %v566
  %713 = vmatpush.msra.mxu0 %v563
  %714 = vmatmul.f32.gmra.mxu0 %v560
  %v715 = vpop.f32.mrf.mxu0
  %v716 = vadd.f32 0.0, %v715
  %717 = vdwg.mxu0
  %718 = vmatpush.msra.mxu0 %v656
  %719 = vmatpush.msra.mxu0 %v653
  %720 = vmatpush.msra.mxu0 %v650
  %721 = vmatpush.msra.mxu0 %v647
  %722 = vmatpush.msra.mxu0 %v644
  %723 = vmatpush.msra.mxu0 %v641
  %724 = vmatpush.msra.mxu0 %v638
  %725 = vmatpush.msra.mxu0 %v635
  %726 = vmatpush.msra.mxu0 %v632
  %727 = vmatpush.msra.mxu0 %v629
  %728 = vmatpush.msra.mxu0 %v626
  %729 = vmatpush.msra.mxu0 %v623
  %730 = vmatpush.msra.mxu0 %v620
  %731 = vmatpush.msra.mxu0 %v617
  %732 = vmatpush.msra.mxu0 %v614
  %733 = vmatpush.msra.mxu0 %v611
  %734 = vmatmul.f32.gmra.mxu0 %v561
  %v735 = vpop.f32.mrf.mxu0
  %v736 = vadd.f32 %v716, %v735
  %737 = vdwg.mxu0
  %738 = vmatpush.msra.mxu0 %v609
  %739 = vmatpush.msra.mxu0 %v606
  %740 = vmatpush.msra.mxu0 %v603
  %741 = vmatpush.msra.mxu0 %v600
  %742 = vmatpush.msra.mxu0 %v597
  %743 = vmatpush.msra.mxu0 %v594
  %744 = vmatpush.msra.mxu0 %v591
  %745 = vmatpush.msra.mxu0 %v588
  %746 = vmatpush.msra.mxu0 %v585
  %747 = vmatpush.msra.mxu0 %v582
  %748 = vmatpush.msra.mxu0 %v579
  %749 = vmatpush.msra.mxu0 %v576
  %750 = vmatpush.msra.mxu0 %v573
  %751 = vmatpush.msra.mxu0 %v570
  %752 = vmatpush.msra.mxu0 %v567
  %753 = vmatpush.msra.mxu0 %v564
  %754 = vmatmul.f32.gmra.mxu0 %v560
  %v755 = vpop.f32.mrf.mxu0
  %v756 = vadd.f32 0.0, %v755
  %757 = vdwg.mxu0
  %758 = vmatpush.msra.mxu0 %v657
  %759 = vmatpush.msra.mxu0 %v654
  %760 = vmatpush.msra.mxu0 %v651
  %761 = vmatpush.msra.mxu0 %v648
  %762 = vmatpush.msra.mxu0 %v645
  %763 = vmatpush.msra.mxu0 %v642
  %764 = vmatpush.msra.mxu0 %v639
  %765 = vmatpush.msra.mxu0 %v636
  %766 = vmatpush.msra.mxu0 %v633
  %767 = vmatpush.msra.mxu0 %v630
  %768 = vmatpush.msra.mxu0 %v627
  %769 = vmatpush.msra.mxu0 %v624
  %770 = vmatpush.msra.mxu0 %v621
  %771 = vmatpush.msra.mxu0 %v618
  %772 = vmatpush.msra.mxu0 %v615
  %773 = vmatpush.msra.mxu0 %v612
  %774 = vmatmul.f32.gmra.mxu0 %v561
  %v775 = vpop.f32.mrf.mxu0
  %v776 = vadd.f32 %v756, %v775
  %777 = vdwg.mxu0
  %778 = vst [vmem:[%s9] sm:$0x3f] %v696
  %779 = vst [vmem:[%s9 + $0x8] sm:$0x3f] %v736
  %vm780 = vcmask 521216
  %781 = vst.msk [vmem:[%s9 + $0x10] sm:$0x3f] %vm780, %v776
  // Predicated region
  $region34: #{edge_block_forward.3} parent=0 // pred_check
    _
  $region35: #{edge_block_forward.3} parent=0 // pred_check_branch
    %783 = sbr.rel (0) target = $region37
  $region36: #{edge_block_forward.3} parent=0 // pred_region
    _
  $region37: #{edge_block_forward.3} parent=0 // pred_fallthru
    _
  // Predicated region
  $region38: #{edge_block_forward.3} parent=0 // pred_check
    _
  $region39: #{edge_block_forward.3} parent=0 // pred_check_branch
    %785 = sbr.rel (0) target = $region41
  $region40: #{edge_block_forward.3} parent=0 // pred_region
    _
  $region41: #{edge_block_forward.3} parent=0 // pred_fallthru
    _
  // Predicated region
  $region42: #{edge_block_forward.3} parent=0 // pred_check
    _
  $region43: #{edge_block_forward.3} parent=0 // pred_check_branch
    %787 = sbr.rel (0) target = $region45
  $region44: #{edge_block_forward.3} parent=0 // pred_region
    _
  $region45: #{edge_block_forward.3} parent=0 // pred_fallthru
    _
  // Predicated region
  $region46: #{edge_block_forward.3} parent=0 // pred_check
    _
  $region47: #{edge_block_forward.3} parent=0 // pred_check_branch
    %789 = sbr.rel (0) target = $region49
  $region48: #{edge_block_forward.3} parent=0 // pred_region
    _
  $region49: #{edge_block_forward.3} parent=0 // pred_fallthru
    _

// kernel: edge_block_forward.4
$region0: #{edge_block_forward.4}
  #allocation0 [shape = 'u32[]', space=smem, size = 0x4, offset = 0x4, fixed_abs, tag = 'smem constant byte address 0x4 - core index']
  #allocation1 [shape = 'u32[72,128]{1,0:T(1,128)}', space=vmem, size = 0x9000, scoped, tag = 'internal scratch']
  %s0 = inlined_call_operand.smem [shape: u32[33], index: -1, kind: input, shape index: {}]
  %s1 = sld [smem:[%s0]]
  %s2 = scalar_lea.smem %s0, 1
  %s3 = sld [smem:[%s2]]
  %s4 = scalar_lea.smem %s0, 2
  %s5 = sld [smem:[%s4]]
  %s6 = scalar_lea.smem %s0, 3
  %s7 = sld [smem:[%s6]]
  %s8 = scalar_lea.smem %s0, 4
  %s9 = sld [smem:[%s8]]
  %s10 = scalar_lea.smem %s0, 5
  %s11 = sld [smem:[%s10]]
  %s12 = scalar_lea.smem %s0, 6
  %s13 = sld [smem:[%s12]]
  %s14 = scalar_lea.smem %s0, 7
  %s15 = sld [smem:[%s14]]
  %s16 = scalar_lea.smem %s0, 8
  %s17 = sld [smem:[%s16]]
  %s18 = scalar_lea.smem %s0, 9
  %s19 = sld [smem:[%s18]]
  %s20 = scalar_lea.smem %s0, 10
  %s21 = sld [smem:[%s20]]
  %s22 = scalar_lea.smem %s0, 11
  %s23 = sld [smem:[%s22]]
  %s24 = scalar_lea.smem %s0, 12
  %s25 = sld [smem:[%s24]]
  %s26 = scalar_lea.smem %s0, 13
  %s27 = sld [smem:[%s26]]
  %s28 = scalar_lea.smem %s0, 14
  %s29 = sld [smem:[%s28]]
  %s30 = scalar_lea.smem %s0, 15
  %s31 = sld [smem:[%s30]]
  %s32 = scalar_lea.smem %s0, 16
  %s33 = sld [smem:[%s32]]
  %s34 = scalar_lea.smem %s0, 17
  %s35 = sld [smem:[%s34]]
  %s36 = scalar_lea.smem %s0, 18
  %s37 = sld [smem:[%s36]]
  %s38 = scalar_lea.smem %s0, 19
  %s39 = sld [smem:[%s38]]
  %s40 = scalar_lea.smem %s0, 20
  %s41 = sld [smem:[%s40]]
  %s42 = scalar_lea.smem %s0, 21
  %s43 = sld [smem:[%s42]]
  %s44 = scalar_lea.smem %s0, 22
  %s45 = sld [smem:[%s44]]
  %s46 = scalar_lea.smem %s0, 23
  %s47 = sld [smem:[%s46]]
  %s48 = scalar_lea.smem %s0, 24
  %s49 = sld [smem:[%s48]]
  %s50 = scalar_lea.smem %s0, 25
  %s51 = sld [smem:[%s50]]
  %s52 = scalar_lea.smem %s0, 26
  %s53 = sld [smem:[%s52]]
  %s54 = scalar_lea.smem %s0, 27
  %s55 = sld [smem:[%s54]]
  %s56 = scalar_lea.smem %s0, 28
  %s57 = sld [smem:[%s56]]
  %s58 = scalar_lea.smem %s0, 29
  %s59 = sld [smem:[%s58]]
  %s60 = scalar_lea.smem %s0, 30
  %s61 = sld [smem:[%s60]]
  %s62 = scalar_lea.smem %s0, 31
  %s63 = sld [smem:[%s62]]
  %s64 = scalar_lea.smem %s0, 32
  %s65 = sld [smem:[%s64]]
  %66 = xla_tuple %s63, %s65
  %s67 = sld [smem:[#allocation0]]
  $region142: #{edge_block_forward.4} parent=0
    _
  %s69 = ssub.s32 1, %s67
  %s70 = scalar_select 0, %s69, %s67
  // Predicated region
  $region2: #{edge_block_forward.4} parent=0 // pred_check
    _
  $region3: #{edge_block_forward.4} parent=0 // pred_check_branch
    %72 = sbr.rel (0) target = $region5
  $region4: #{edge_block_forward.4} parent=0 // pred_region
    _
  $region5: #{edge_block_forward.4} parent=0 // pred_fallthru
    _
  // Predicated region
  $region6: #{edge_block_forward.4} parent=0 // pred_check
    _
  $region7: #{edge_block_forward.4} parent=0 // pred_check_branch
    %74 = sbr.rel (0) target = $region9
  $region8: #{edge_block_forward.4} parent=0 // pred_region
    _
  $region9: #{edge_block_forward.4} parent=0 // pred_fallthru
    _
  // Predicated region
  $region10: #{edge_block_forward.4} parent=0 // pred_check
    _
  $region11: #{edge_block_forward.4} parent=0 // pred_check_branch
    %76 = sbr.rel (0) target = $region13
  $region12: #{edge_block_forward.4} parent=0 // pred_region
    _
  $region13: #{edge_block_forward.4} parent=0 // pred_fallthru
    _
  // Predicated region
  $region14: #{edge_block_forward.4} parent=0 // pred_check
    _
  $region15: #{edge_block_forward.4} parent=0 // pred_check_branch
    %78 = sbr.rel (0) target = $region17
  $region16: #{edge_block_forward.4} parent=0 // pred_region
    _
  $region17: #{edge_block_forward.4} parent=0 // pred_fallthru
    _
  // Predicated region
  $region18: #{edge_block_forward.4} parent=0 // pred_check
    _
  $region19: #{edge_block_forward.4} parent=0 // pred_check_branch
    %80 = sbr.rel (0) target = $region21
  $region20: #{edge_block_forward.4} parent=0 // pred_region
    _
  $region21: #{edge_block_forward.4} parent=0 // pred_fallthru
    _
  // Predicated region
  $region22: #{edge_block_forward.4} parent=0 // pred_check
    _
  $region23: #{edge_block_forward.4} parent=0 // pred_check_branch
    %82 = sbr.rel (0) target = $region25
  $region24: #{edge_block_forward.4} parent=0 // pred_region
    _
  $region25: #{edge_block_forward.4} parent=0 // pred_fallthru
    _
  // Predicated region
  $region26: #{edge_block_forward.4} parent=0 // pred_check
    _
  $region27: #{edge_block_forward.4} parent=0 // pred_check_branch
    %84 = sbr.rel (0) target = $region29
  $region28: #{edge_block_forward.4} parent=0 // pred_region
    _
  $region29: #{edge_block_forward.4} parent=0 // pred_fallthru
    _
  // Predicated region
  $region30: #{edge_block_forward.4} parent=0 // pred_check
    _
  $region31: #{edge_block_forward.4} parent=0 // pred_check_branch
    %86 = sbr.rel (0) target = $region33
  $region32: #{edge_block_forward.4} parent=0 // pred_region
    _
  $region33: #{edge_block_forward.4} parent=0 // pred_fallthru
    _
  // Predicated region
  $region34: #{edge_block_forward.4} parent=0 // pred_check
    _
  $region35: #{edge_block_forward.4} parent=0 // pred_check_branch
    %88 = sbr.rel (0) target = $region37
  $region36: #{edge_block_forward.4} parent=0 // pred_region
    _
  $region37: #{edge_block_forward.4} parent=0 // pred_fallthru
    _
  // Predicated region
  $region38: #{edge_block_forward.4} parent=0 // pred_check
    _
  $region39: #{edge_block_forward.4} parent=0 // pred_check_branch
    %90 = sbr.rel (0) target = $region41
  $region40: #{edge_block_forward.4} parent=0 // pred_region
    _
  $region41: #{edge_block_forward.4} parent=0 // pred_fallthru
    _
  // Predicated region
  $region42: #{edge_block_forward.4} parent=0 // pred_check
    _
  $region43: #{edge_block_forward.4} parent=0 // pred_check_branch
    %92 = sbr.rel (0) target = $region45
  $region44: #{edge_block_forward.4} parent=0 // pred_region
    _
  $region45: #{edge_block_forward.4} parent=0 // pred_fallthru
    _
  // Predicated region
  $region46: #{edge_block_forward.4} parent=0 // pred_check
    _
  $region47: #{edge_block_forward.4} parent=0 // pred_check_branch
    %94 = sbr.rel (0) target = $region49
  $region48: #{edge_block_forward.4} parent=0 // pred_region
    _
  $region49: #{edge_block_forward.4} parent=0 // pred_fallthru
    _
  // Predicated region
  $region50: #{edge_block_forward.4} parent=0 // pred_check
    _
  $region51: #{edge_block_forward.4} parent=0 // pred_check_branch
    %96 = sbr.rel (0) target = $region53
  $region52: #{edge_block_forward.4} parent=0 // pred_region
    _
  $region53: #{edge_block_forward.4} parent=0 // pred_fallthru
    _
  // Predicated region
  $region54: #{edge_block_forward.4} parent=0 // pred_check
    _
  $region55: #{edge_block_forward.4} parent=0 // pred_check_branch
    %98 = sbr.rel (0) target = $region57
  $region56: #{edge_block_forward.4} parent=0 // pred_region
    _
  $region57: #{edge_block_forward.4} parent=0 // pred_fallthru
    _
  // Predicated region
  $region58: #{edge_block_forward.4} parent=0 // pred_check
    _
  $region59: #{edge_block_forward.4} parent=0 // pred_check_branch
    %100 = sbr.rel (0) target = $region61
  $region60: #{edge_block_forward.4} parent=0 // pred_region
    _
  $region61: #{edge_block_forward.4} parent=0 // pred_fallthru
    _
  // Predicated region
  $region62: #{edge_block_forward.4} parent=0 // pred_check
    _
  $region63: #{edge_block_forward.4} parent=0 // pred_check_branch
    %102 = sbr.rel (0) target = $region65
  $region64: #{edge_block_forward.4} parent=0 // pred_region
    _
  $region65: #{edge_block_forward.4} parent=0 // pred_fallthru
    _
  // Predicated region
  $region66: #{edge_block_forward.4} parent=0 // pred_check
    _
  $region67: #{edge_block_forward.4} parent=0 // pred_check_branch
    %104 = sbr.rel (0) target = $region69
  $region68: #{edge_block_forward.4} parent=0 // pred_region
    _
  $region69: #{edge_block_forward.4} parent=0 // pred_fallthru
    _
  // Predicated region
  $region70: #{edge_block_forward.4} parent=0 // pred_check
    _
  $region71: #{edge_block_forward.4} parent=0 // pred_check_branch
    %106 = sbr.rel (0) target = $region73
  $region72: #{edge_block_forward.4} parent=0 // pred_region
    _
  $region73: #{edge_block_forward.4} parent=0 // pred_fallthru
    _
  // Predicated region
  $region74: #{edge_block_forward.4} parent=0 // pred_check
    _
  $region75: #{edge_block_forward.4} parent=0 // pred_check_branch
    %108 = sbr.rel (0) target = $region77
  $region76: #{edge_block_forward.4} parent=0 // pred_region
    _
  $region77: #{edge_block_forward.4} parent=0 // pred_fallthru
    _
  // Predicated region
  $region78: #{edge_block_forward.4} parent=0 // pred_check
    _
  $region79: #{edge_block_forward.4} parent=0 // pred_check_branch
    %110 = sbr.rel (0) target = $region81
  $region80: #{edge_block_forward.4} parent=0 // pred_region
    _
  $region81: #{edge_block_forward.4} parent=0 // pred_fallthru
    _
  // Predicated region
  $region82: #{edge_block_forward.4} parent=0 // pred_check
    _
  $region83: #{edge_block_forward.4} parent=0 // pred_check_branch
    %112 = sbr.rel (0) target = $region85
  $region84: #{edge_block_forward.4} parent=0 // pred_region
    _
  $region85: #{edge_block_forward.4} parent=0 // pred_fallthru
    _
  // Predicated region
  $region86: #{edge_block_forward.4} parent=0 // pred_check
    _
  $region87: #{edge_block_forward.4} parent=0 // pred_check_branch
    %114 = sbr.rel (0) target = $region89
  $region88: #{edge_block_forward.4} parent=0 // pred_region
    _
  $region89: #{edge_block_forward.4} parent=0 // pred_fallthru
    _
  // Predicated region
  $region90: #{edge_block_forward.4} parent=0 // pred_check
    _
  $region91: #{edge_block_forward.4} parent=0 // pred_check_branch
    %116 = sbr.rel (0) target = $region93
  $region92: #{edge_block_forward.4} parent=0 // pred_region
    _
  $region93: #{edge_block_forward.4} parent=0 // pred_fallthru
    _
  // Predicated region
  $region94: #{edge_block_forward.4} parent=0 // pred_check
    _
  $region95: #{edge_block_forward.4} parent=0 // pred_check_branch
    %118 = sbr.rel (0) target = $region97
  $region96: #{edge_block_forward.4} parent=0 // pred_region
    _
  $region97: #{edge_block_forward.4} parent=0 // pred_fallthru
    _
  // Predicated region
  $region98: #{edge_block_forward.4} parent=0 // pred_check
    _
  $region99: #{edge_block_forward.4} parent=0 // pred_check_branch
    %120 = sbr.rel (0) target = $region101
  $region100: #{edge_block_forward.4} parent=0 // pred_region
    _
  $region101: #{edge_block_forward.4} parent=0 // pred_fallthru
    _
  // Predicated region
  $region102: #{edge_block_forward.4} parent=0 // pred_check
    _
  $region103: #{edge_block_forward.4} parent=0 // pred_check_branch
    %122 = sbr.rel (0) target = $region105
  $region104: #{edge_block_forward.4} parent=0 // pred_region
    _
  $region105: #{edge_block_forward.4} parent=0 // pred_fallthru
    _
  // Predicated region
  $region106: #{edge_block_forward.4} parent=0 // pred_check
    _
  $region107: #{edge_block_forward.4} parent=0 // pred_check_branch
    %124 = sbr.rel (0) target = $region109
  $region108: #{edge_block_forward.4} parent=0 // pred_region
    _
  $region109: #{edge_block_forward.4} parent=0 // pred_fallthru
    _
  // Predicated region
  $region110: #{edge_block_forward.4} parent=0 // pred_check
    _
  $region111: #{edge_block_forward.4} parent=0 // pred_check_branch
    %126 = sbr.rel (0) target = $region113
  $region112: #{edge_block_forward.4} parent=0 // pred_region
    _
  $region113: #{edge_block_forward.4} parent=0 // pred_fallthru
    _
  // Predicated region
  $region114: #{edge_block_forward.4} parent=0 // pred_check
    _
  $region115: #{edge_block_forward.4} parent=0 // pred_check_branch
    %128 = sbr.rel (0) target = $region117
  $region116: #{edge_block_forward.4} parent=0 // pred_region
    _
  $region117: #{edge_block_forward.4} parent=0 // pred_fallthru
    _
  // Predicated region
  $region118: #{edge_block_forward.4} parent=0 // pred_check
    _
  $region119: #{edge_block_forward.4} parent=0 // pred_check_branch
    %130 = sbr.rel (0) target = $region121
  $region120: #{edge_block_forward.4} parent=0 // pred_region
    _
  $region121: #{edge_block_forward.4} parent=0 // pred_fallthru
    _
  // Predicated region
  $region122: #{edge_block_forward.4} parent=0 // pred_check
    _
  $region123: #{edge_block_forward.4} parent=0 // pred_check_branch
    %132 = sbr.rel (0) target = $region125
  $region124: #{edge_block_forward.4} parent=0 // pred_region
    _
  $region125: #{edge_block_forward.4} parent=0 // pred_fallthru
    _
  %v133 = vld [vmem:[%s1] sm:$0xff]
  %v134 = vld [vmem:[%s1 + $0x8] sm:$0xff]
  %v135 = vld [vmem:[%s11] sm:$0x1]
  %137 = vset.pattern.permute.xlu0 0
  %138 = vperm.xlu0 %137, %v133
  %v139 = vpop.permute.xlu0 %138
  %142 = vset.pattern.permute.xlu0 0
  %143 = vperm.xlu0 %142, %v134
  %v144 = vpop.permute.xlu0 %143
  %v147 = vperm.slane %v135, 0
  %v149 = vsub.f32 %v139, %v147
  %v150 = vsub.f32 %v144, %v147
  %v151 = vmul.f32 %v149, %v149
  %v152 = vmul.f32 %v150, %v150
  %v153 = vmul.f32 %v151, -0.6805556
  %v154 = vmul.f32 %v152, -0.6805556
  %v155 = vmul.f32 %v153, 1.442695
  %v156 = vpow.pop %v155
  %v157 = vmul.f32 %v154, 1.442695
  %v158 = vpow.pop %v157
  %v159 = vld [vmem:[%s13] sm:$0xff]
  %v160 = vld [vmem:[%s15] sm:$0x1]
  %v162 = vperm.slane %v160, 0
  %vm164 = vcmask 64512
  %v166 = vsel %vm164, %v156, 0
  %v169 = vsel %vm164, %v158, 0
  %171 = vmatpush.msra.mxu0 0.0
  %172 = vmatpush.msra.mxu0 0.0
  %173 = vmatpush.msra.mxu0 0.0
  %174 = vmatpush.msra.mxu0 0.0
  %175 = vmatpush.msra.mxu0 0.0
  %176 = vmatpush.msra.mxu0 0.0
  %177 = vmatpush.msra.mxu0 0.0
  %178 = vmatpush.msra.mxu0 0.0
  %179 = vmatpush.msra.mxu0 0.0
  %180 = vmatpush.msra.mxu0 0.0
  %181 = vmatpush.msra.mxu0 0.0
  %182 = vmatpush.msra.mxu0 0.0
  %183 = vmatpush.msra.mxu0 0.0
  %184 = vmatpush.msra.mxu0 0.0
  %185 = vmatpush.msra.mxu0 0.0
  %186 = vmatpush.msra.mxu0 %v159
  %187 = vmatmul.f32.gmra.mxu0 %v166
  %v188 = vpop.f32.mrf.mxu0
  %v189 = vadd.f32 %v162, %v188
  %190 = vmatmul.f32.gmra.mxu0 %v169
  %v191 = vpop.f32.mrf.mxu0
  %v192 = vadd.f32 %v162, %v191
  %193 = vdwg.mxu0
  %v194 = vld [vmem:[%s3] sm:$0xff]
  %v195 = vld [vmem:[%s3 + $0x8] sm:$0xff]
  %v196 = vadd.f32 %v194, %v189
  %v197 = vadd.f32 %v195, %v192
  %v198 = vxor.u32 %v196, 2147483648
  %v199 = vxor.u32 %v197, 2147483648
  %v200 = vmul.f32 %v198, 1.442695
  %v201 = vpow.pop %v200
  %v202 = vmul.f32 %v199, 1.442695
  %v203 = vpow.pop %v202
  %v204 = vadd.f32 %v201, 1.0
  %v205 = vadd.f32 %v203, 1.0
  %v206 = vrcp.pop %v204
  %v207 = vmul.f32 %v204, %v206
  %v208 = vsub.f32 1.0, %v207
  %v209 = vmul.f32 %v206, %v208
  %v210 = vadd.f32 %v206, %v209
  %vm211 = vweird.f32 %v204
  %vm212 = vweird.f32 %v206
  %vm213 = vmor %vm211, %vm212
  %v214 = vsel %vm213, %v206, %v210
  %v215 = vand.u32 2147483647, %v204
  %vm216 = vcmp.eq.f32.partialorder %v215, 8.507059e+37
  %v217 = vand.u32 %v204, 2147483648
  %v218 = vor.u32 1.1754944e-38, %v217
  %v219 = vsel %vm216, %v218, %v214
  %v220 = vmul.f32 1.0, %v219
  %v221 = vrcp.pop %v205
  %v222 = vmul.f32 %v205, %v221
  %v223 = vsub.f32 1.0, %v222
  %v224 = vmul.f32 %v221, %v223
  %v225 = vadd.f32 %v221, %v224
  %vm226 = vweird.f32 %v205
  %vm227 = vweird.f32 %v221
  %vm228 = vmor %vm226, %vm227
  %v229 = vsel %vm228, %v221, %v225
  %v230 = vand.u32 2147483647, %v205
  %vm231 = vcmp.eq.f32.partialorder %v230, 8.507059e+37
  %v232 = vand.u32 %v205, 2147483648
  %v233 = vor.u32 1.1754944e-38, %v232
  %v234 = vsel %vm231, %v233, %v229
  %v235 = vmul.f32 1.0, %v234
  %v236 = vmul.f32 %v196, %v220
  %v237 = vmul.f32 %v197, %v235
  %v238 = vld [vmem:[%s17] sm:$0xff]
  %v239 = vld [vmem:[%s19] sm:$0x1]
  %v241 = vperm.slane %v239, 0
  %v244 = vsel %vm164, %v236, 0
  %v247 = vsel %vm164, %v237, 0
  %249 = vmatpush.msra.mxu0 0.0
  %250 = vmatpush.msra.mxu0 0.0
  %251 = vmatpush.msra.mxu0 0.0
  %252 = vmatpush.msra.mxu0 0.0
  %253 = vmatpush.msra.mxu0 0.0
  %254 = vmatpush.msra.mxu0 0.0
  %255 = vmatpush.msra.mxu0 0.0
  %256 = vmatpush.msra.mxu0 0.0
  %257 = vmatpush.msra.mxu0 0.0
  %258 = vmatpush.msra.mxu0 0.0
  %259 = vmatpush.msra.mxu0 0.0
  %260 = vmatpush.msra.mxu0 0.0
  %261 = vmatpush.msra.mxu0 0.0
  %262 = vmatpush.msra.mxu0 0.0
  %263 = vmatpush.msra.mxu0 0.0
  %264 = vmatpush.msra.mxu0 %v238
  %265 = vmatmul.f32.gmra.mxu0 %v244
  %v266 = vpop.f32.mrf.mxu0
  %v267 = vadd.f32 %v241, %v266
  %268 = vmatmul.f32.gmra.mxu0 %v247
  %v269 = vpop.f32.mrf.mxu0
  %v270 = vadd.f32 %v241, %v269
  %271 = vdwg.mxu0
  %v272 = vxor.u32 %v267, 2147483648
  %v273 = vxor.u32 %v270, 2147483648
  %v274 = vmul.f32 %v272, 1.442695
  %v275 = vpow.pop %v274
  %v276 = vmul.f32 %v273, 1.442695
  %v277 = vpow.pop %v276
  %v278 = vadd.f32 %v275, 1.0
  %v279 = vadd.f32 %v277, 1.0
  %v280 = vrcp.pop %v278
  %v281 = vmul.f32 %v278, %v280
  %v282 = vsub.f32 1.0, %v281
  %v283 = vmul.f32 %v280, %v282
  %v284 = vadd.f32 %v280, %v283
  %vm285 = vweird.f32 %v278
  %vm286 = vweird.f32 %v280
  %vm287 = vmor %vm285, %vm286
  %v288 = vsel %vm287, %v280, %v284
  %v289 = vand.u32 2147483647, %v278
  %vm290 = vcmp.eq.f32.partialorder %v289, 8.507059e+37
  %v291 = vand.u32 %v278, 2147483648
  %v292 = vor.u32 1.1754944e-38, %v291
  %v293 = vsel %vm290, %v292, %v288
  %v294 = vmul.f32 1.0, %v293
  %v295 = vrcp.pop %v279
  %v296 = vmul.f32 %v279, %v295
  %v297 = vsub.f32 1.0, %v296
  %v298 = vmul.f32 %v295, %v297
  %v299 = vadd.f32 %v295, %v298
  %vm300 = vweird.f32 %v279
  %vm301 = vweird.f32 %v295
  %vm302 = vmor %vm300, %vm301
  %v303 = vsel %vm302, %v295, %v299
  %v304 = vand.u32 2147483647, %v279
  %vm305 = vcmp.eq.f32.partialorder %v304, 8.507059e+37
  %v306 = vand.u32 %v279, 2147483648
  %v307 = vor.u32 1.1754944e-38, %v306
  %v308 = vsel %vm305, %v307, %v303
  %v309 = vmul.f32 1.0, %v308
  %v310 = vmul.f32 %v267, %v294
  %v311 = vmul.f32 %v270, %v309
  %312 = vst.msk [vmem:[%s65] sm:$0xff] %vm164, %v310
  %313 = vst.msk [vmem:[%s65 + $0x8] sm:$0xff] %vm164, %v311
  %v314 = vld [vmem:[%s21] sm:$0xff]
  %v315 = vld [vmem:[%s23] sm:$0x1]
  %v317 = vperm.slane %v315, 0
  %v320 = vsel %vm164, %v310, 0
  %v323 = vsel %vm164, %v311, 0
  %325 = vmatpush.msra.mxu0 0.0
  %326 = vmatpush.msra.mxu0 0.0
  %327 = vmatpush.msra.mxu0 0.0
  %328 = vmatpush.msra.mxu0 0.0
  %329 = vmatpush.msra.mxu0 0.0
  %330 = vmatpush.msra.mxu0 0.0
  %331 = vmatpush.msra.mxu0 0.0
  %332 = vmatpush.msra.mxu0 0.0
  %333 = vmatpush.msra.mxu0 0.0
  %334 = vmatpush.msra.mxu0 0.0
  %335 = vmatpush.msra.mxu0 0.0
  %336 = vmatpush.msra.mxu0 0.0
  %337 = vmatpush.msra.mxu0 0.0
  %338 = vmatpush.msra.mxu0 0.0
  %339 = vmatpush.msra.mxu0 0.0
  %340 = vmatpush.msra.mxu0 %v314
  %341 = vmatmul.f32.gmra.mxu0 %v320
  %v342 = vpop.f32.mrf.mxu0
  %v343 = vadd.f32 %v317, %v342
  %344 = vmatmul.f32.gmra.mxu0 %v323
  %v345 = vpop.f32.mrf.mxu0
  %v346 = vadd.f32 %v317, %v345
  %347 = vdwg.mxu0
  %v348 = vxor.u32 %v343, 2147483648
  %v349 = vxor.u32 %v346, 2147483648
  %v350 = vmul.f32 %v348, 1.442695
  %v351 = vpow.pop %v350
  %v352 = vmul.f32 %v349, 1.442695
  %v353 = vpow.pop %v352
  %v354 = vadd.f32 %v351, 1.0
  %v355 = vadd.f32 %v353, 1.0
  %v356 = vrcp.pop %v354
  %v357 = vmul.f32 %v354, %v356
  %v358 = vsub.f32 1.0, %v357
  %v359 = vmul.f32 %v356, %v358
  %v360 = vadd.f32 %v356, %v359
  %vm361 = vweird.f32 %v354
  %vm362 = vweird.f32 %v356
  %vm363 = vmor %vm361, %vm362
  %v364 = vsel %vm363, %v356, %v360
  %v365 = vand.u32 2147483647, %v354
  %vm366 = vcmp.eq.f32.partialorder %v365, 8.507059e+37
  %v367 = vand.u32 %v354, 2147483648
  %v368 = vor.u32 1.1754944e-38, %v367
  %v369 = vsel %vm366, %v368, %v364
  %v370 = vmul.f32 1.0, %v369
  %v371 = vrcp.pop %v355
  %v372 = vmul.f32 %v355, %v371
  %v373 = vsub.f32 1.0, %v372
  %v374 = vmul.f32 %v371, %v373
  %v375 = vadd.f32 %v371, %v374
  %vm376 = vweird.f32 %v355
  %vm377 = vweird.f32 %v371
  %vm378 = vmor %vm376, %vm377
  %v379 = vsel %vm378, %v371, %v375
  %v380 = vand.u32 2147483647, %v355
  %vm381 = vcmp.eq.f32.partialorder %v380, 8.507059e+37
  %v382 = vand.u32 %v355, 2147483648
  %v383 = vor.u32 1.1754944e-38, %v382
  %v384 = vsel %vm381, %v383, %v379
  %v385 = vmul.f32 1.0, %v384
  %v386 = vmul.f32 %v343, %v370
  %v387 = vmul.f32 %v346, %v385
  %v388 = vld [vmem:[%s25] sm:$0xff]
  %v389 = vld [vmem:[%s27] sm:$0x1]
  %v391 = vperm.slane %v389, 0
  %393 = vmatpush.msra.mxu0 0.0
  %394 = vmatpush.msra.mxu0 0.0
  %395 = vmatpush.msra.mxu0 0.0
  %396 = vmatpush.msra.mxu0 0.0
  %397 = vmatpush.msra.mxu0 0.0
  %398 = vmatpush.msra.mxu0 0.0
  %399 = vmatpush.msra.mxu0 0.0
  %400 = vmatpush.msra.mxu0 0.0
  %401 = vmatpush.msra.mxu0 0.0
  %402 = vmatpush.msra.mxu0 0.0
  %403 = vmatpush.msra.mxu0 0.0
  %404 = vmatpush.msra.mxu0 0.0
  %405 = vmatpush.msra.mxu0 0.0
  %406 = vmatpush.msra.mxu0 0.0
  %407 = vmatpush.msra.mxu0 0.0
  %408 = vmatpush.msra.mxu0 %v388
  %409 = vmatmul.f32.gmra.mxu0 %v320
  %v410 = vpop.f32.mrf.mxu0
  %v411 = vadd.f32 %v391, %v410
  %412 = vmatmul.f32.gmra.mxu0 %v323
  %v413 = vpop.f32.mrf.mxu0
  %v414 = vadd.f32 %v391, %v413
  %415 = vdwg.mxu0
  %v416 = vxor.u32 %v411, 2147483648
  %v417 = vxor.u32 %v414, 2147483648
  %v418 = vmul.f32 %v416, 1.442695
  %v419 = vpow.pop %v418
  %v420 = vmul.f32 %v417, 1.442695
  %v421 = vpow.pop %v420
  %v422 = vadd.f32 %v419, 1.0
  %v423 = vadd.f32 %v421, 1.0
  %v424 = vrcp.pop %v422
  %v425 = vmul.f32 %v422, %v424
  %v426 = vsub.f32 1.0, %v425
  %v427 = vmul.f32 %v424, %v426
  %v428 = vadd.f32 %v424, %v427
  %vm429 = vweird.f32 %v422
  %vm430 = vweird.f32 %v424
  %vm431 = vmor %vm429, %vm430
  %v432 = vsel %vm431, %v424, %v428
  %v433 = vand.u32 2147483647, %v422
  %vm434 = vcmp.eq.f32.partialorder %v433, 8.507059e+37
  %v435 = vand.u32 %v422, 2147483648
  %v436 = vor.u32 1.1754944e-38, %v435
  %v437 = vsel %vm434, %v436, %v432
  %v438 = vmul.f32 1.0, %v437
  %v439 = vrcp.pop %v423
  %v440 = vmul.f32 %v423, %v439
  %v441 = vsub.f32 1.0, %v440
  %v442 = vmul.f32 %v439, %v441
  %v443 = vadd.f32 %v439, %v442
  %vm444 = vweird.f32 %v423
  %vm445 = vweird.f32 %v439
  %vm446 = vmor %vm444, %vm445
  %v447 = vsel %vm446, %v439, %v443
  %v448 = vand.u32 2147483647, %v423
  %vm449 = vcmp.eq.f32.partialorder %v448, 8.507059e+37
  %v450 = vand.u32 %v423, 2147483648
  %v451 = vor.u32 1.1754944e-38, %v450
  %v452 = vsel %vm449, %v451, %v447
  %v453 = vmul.f32 1.0, %v452
  %v454 = vmul.f32 %v411, %v438
  %v455 = vmul.f32 %v414, %v453
  %v456 = vld [vmem:[%s29] sm:$0xff]
  %v457 = vld [vmem:[%s5] sm:$0xff]
  %v458 = vld [vmem:[%s5 + $0x8] sm:$0xff]
  %v459 = vld [vmem:[%s31] sm:$0xff]
  %v460 = vld [vmem:[%s31 + $0x8] sm:$0xff]
  %v461 = vld [vmem:[%s31 + $0x10] sm:$0xff]
  %v462 = vld [vmem:[%s31 + $0x18] sm:$0xff]
  %vm463 = vcmask 261120
  %v465 = vsel %vm463, %v457, 0
  %v468 = vsel %vm463, %v458, 0
  %470 = vmatpush.msra.mxu0 0.0
  %471 = vmatpush.msra.mxu0 0.0
  %472 = vmatpush.msra.mxu0 0.0
  %473 = vmatpush.msra.mxu0 0.0
  %474 = vmatpush.msra.mxu0 0.0
  %475 = vmatpush.msra.mxu0 0.0
  %476 = vmatpush.msra.mxu0 0.0
  %477 = vmatpush.msra.mxu0 0.0
  %478 = vmatpush.msra.mxu0 0.0
  %479 = vmatpush.msra.mxu0 0.0
  %480 = vmatpush.msra.mxu0 0.0
  %481 = vmatpush.msra.mxu0 0.0
  %482 = vmatpush.msra.mxu0 %v462
  %483 = vmatpush.msra.mxu0 %v461
  %484 = vmatpush.msra.mxu0 %v460
  %485 = vmatpush.msra.mxu0 %v459
  %486 = vmatmul.f32.gmra.mxu0 %v465
  %v487 = vpop.f32.mrf.mxu0
  %v488 = vadd.f32 0.0, %v487
  %489 = vmatmul.f32.gmra.mxu0 %v468
  %v490 = vpop.f32.mrf.mxu0
  %v491 = vadd.f32 0.0, %v490
  %492 = vdwg.mxu0
  %493 = vmatpush.msra.mxu0 0.0
  %494 = vmatpush.msra.mxu0 0.0
  %495 = vmatpush.msra.mxu0 0.0
  %496 = vmatpush.msra.mxu0 0.0
  %497 = vmatpush.msra.mxu0 0.0
  %498 = vmatpush.msra.mxu0 0.0
  %499 = vmatpush.msra.mxu0 0.0
  %500 = vmatpush.msra.mxu0 0.0
  %501 = vmatpush.msra.mxu0 0.0
  %502 = vmatpush.msra.mxu0 0.0
  %503 = vmatpush.msra.mxu0 0.0
  %504 = vmatpush.msra.mxu0 0.0
  %505 = vmatpush.msra.mxu0 0.0
  %506 = vmatpush.msra.mxu0 0.0
  %507 = vmatpush.msra.mxu0 0.0
  %508 = vmatpush.msra.mxu0 %v456
  %509 = vmatmul.f32.gmra.mxu0 %v320
  %v510 = vpop.f32.mrf.mxu0
  %v511 = vadd.f32 %v488, %v510
  %512 = vmatmul.f32.gmra.mxu0 %v323
  %v513 = vpop.f32.mrf.mxu0
  %v514 = vadd.f32 %v491, %v513
  %515 = vdwg.mxu0
  %v516 = vld [vmem:[%s33] sm:$0x1]
  %v518 = vperm.slane %v516, 0
  %v520 = vadd.f32 %v511, %v518
  %v521 = vadd.f32 %v514, %v518
  %v522 = vmax.f32 %v520, 0.0
  %v523 = vmax.f32 %v521, 0.0
  %v524 = vld [vmem:[%s35] sm:$0xff]
  %v525 = vld [vmem:[%s35 + $0x8] sm:$0x3]
  %v526 = vld [vmem:[%s37] sm:$0x1]
  %v528 = vperm.slane %v526, 0
  %vm530 = vcmask 80896
  %v532 = vsel %vm530, %v522, 0
  %v535 = vsel %vm530, %v523, 0
  %vm537 = vcmask 1041408
  %v539 = vsel %vm537, %v525, 0
  %541 = vmatpush.msra.mxu0 0.0
  %542 = vmatpush.msra.mxu0 0.0
  %543 = vmatpush.msra.mxu0 0.0
  %544 = vmatpush.msra.mxu0 0.0
  %545 = vmatpush.msra.mxu0 0.0
  %546 = vmatpush.msra.mxu0 0.0
  %547 = vmatpush.msra.mxu0 0.0
  %548 = vmatpush.msra.mxu0 0.0
  %549 = vmatpush.msra.mxu0 0.0
  %550 = vmatpush.msra.mxu0 0.0
  %551 = vmatpush.msra.mxu0 0.0
  %552 = vmatpush.msra.mxu0 0.0
  %553 = vmatpush.msra.mxu0 0.0
  %554 = vmatpush.msra.mxu0 0.0
  %555 = vmatpush.msra.mxu0 %v539
  %556 = vmatpush.msra.mxu0 %v524
  %557 = vmatmul.f32.gmra.mxu0 %v532
  %v558 = vpop.f32.mrf.mxu0
  %v559 = vadd.f32 %v528, %v558
  %560 = vmatmul.f32.gmra.mxu0 %v535
  %v561 = vpop.f32.mrf.mxu0
  %v562 = vadd.f32 %v528, %v561
  %563 = vdwg.mxu0
  %v564 = vxor.u32 %v559, 2147483648
  %v565 = vxor.u32 %v562, 2147483648
  %v566 = vmul.f32 %v564, 1.442695
  %v567 = vpow.pop %v566
  %v568 = vmul.f32 %v565, 1.442695
  %v569 = vpow.pop %v568
  %v570 = vadd.f32 %v567, 1.0
  %v571 = vadd.f32 %v569, 1.0
  %v572 = vrcp.pop %v570
  %v573 = vmul.f32 %v570, %v572
  %v574 = vsub.f32 1.0, %v573
  %v575 = vmul.f32 %v572, %v574
  %v576 = vadd.f32 %v572, %v575
  %vm577 = vweird.f32 %v570
  %vm578 = vweird.f32 %v572
  %vm579 = vmor %vm577, %vm578
  %v580 = vsel %vm579, %v572, %v576
  %v581 = vand.u32 2147483647, %v570
  %vm582 = vcmp.eq.f32.partialorder %v581, 8.507059e+37
  %v583 = vand.u32 %v570, 2147483648
  %v584 = vor.u32 1.1754944e-38, %v583
  %v585 = vsel %vm582, %v584, %v580
  %v586 = vmul.f32 1.0, %v585
  %v587 = vrcp.pop %v571
  %v588 = vmul.f32 %v571, %v587
  %v589 = vsub.f32 1.0, %v588
  %v590 = vmul.f32 %v587, %v589
  %v591 = vadd.f32 %v587, %v590
  %vm592 = vweird.f32 %v571
  %vm593 = vweird.f32 %v587
  %vm594 = vmor %vm592, %vm593
  %v595 = vsel %vm594, %v587, %v591
  %v596 = vand.u32 2147483647, %v571
  %vm597 = vcmp.eq.f32.partialorder %v596, 8.507059e+37
  %v598 = vand.u32 %v571, 2147483648
  %v599 = vor.u32 1.1754944e-38, %v598
  %v600 = vsel %vm597, %v599, %v595
  %v601 = vmul.f32 1.0, %v600
  %v602 = vld [vmem:[%s7] sm:$0xff]
  %v603 = vld [vmem:[%s7 + $0x8] sm:$0xff]
  %v604 = vld [vmem:[%s7 + $0x10] sm:$0xff]
  %v605 = vld [vmem:[%s7 + $0x18] sm:$0xff]
  %v606 = vld [vmem:[%s7 + $0x20] sm:$0xff]
  %v607 = vld [vmem:[%s7 + $0x28] sm:$0xff]
  %v608 = vld [vmem:[%s7 + $0x30] sm:$0xff]
  %v609 = vld [vmem:[%s7 + $0x38] sm:$0xff]
  %v610 = vld [vmem:[%s7 + $0x40] sm:$0xff]
  %v611 = vld [vmem:[%s7 + $0x48] sm:$0xff]
  %v612 = vld [vmem:[%s7 + $0x50] sm:$0xff]
  %v613 = vld [vmem:[%s7 + $0x58] sm:$0xff]
  %v614 = vld [vmem:[%s7 + $0x60] sm:$0xff]
  %v615 = vld [vmem:[%s7 + $0x68] sm:$0xff]
  %v616 = vld [vmem:[%s7 + $0x70] sm:$0xff]
  %v617 = vld [vmem:[%s7 + $0x78] sm:$0xff]
  %v618 = vld [vmem:[%s39] sm:$0xff]
  %v619 = vld [vmem:[%s39 + $0x8] sm:$0xff]
  %v620 = vld [vmem:[%s39 + $0x10] sm:$0xff]
  %v621 = vld [vmem:[%s39 + $0x18] sm:$0xff]
  %v622 = vld [vmem:[%s39 + $0x20] sm:$0xff]
  %v623 = vld [vmem:[%s39 + $0x28] sm:$0xff]
  %v624 = vld [vmem:[%s39 + $0x30] sm:$0xff]
  %v625 = vld [vmem:[%s39 + $0x38] sm:$0xff]
  %v626 = vld [vmem:[%s39 + $0x40] sm:$0xff]
  %v627 = vld [vmem:[%s39 + $0x48] sm:$0xff]
  %v628 = vld [vmem:[%s39 + $0x50] sm:$0xff]
  %v629 = vld [vmem:[%s39 + $0x58] sm:$0xff]
  %v630 = vld [vmem:[%s39 + $0x60] sm:$0xff]
  %v631 = vld [vmem:[%s39 + $0x68] sm:$0xff]
  %v632 = vld [vmem:[%s39 + $0x70] sm:$0xff]
  %v633 = vld [vmem:[%s39 + $0x78] sm:$0xff]
  %v634 = vld [vmem:[%s39 + $0x80] sm:$0xff]
  %v635 = vld [vmem:[%s39 + $0x88] sm:$0xff]
  %v636 = vld [vmem:[%s39 + $0x90] sm:$0xff]
  %v637 = vld [vmem:[%s39 + $0x98] sm:$0xff]
  %v638 = vld [vmem:[%s41] sm:$0x1]
  %v640 = vperm.slane %v638, 0
  %v643 = vsel %vm463, %v603, 0
  %v646 = vsel %vm463, %v605, 0
  %v649 = vsel %vm463, %v607, 0
  %v652 = vsel %vm463, %v609, 0
  %v655 = vsel %vm463, %v611, 0
  %v658 = vsel %vm463, %v613, 0
  %v661 = vsel %vm463, %v615, 0
  %v664 = vsel %vm463, %v617, 0
  %666 = vmatpush.msra.mxu0 %v633
  %667 = vmatpush.msra.mxu0 %v632
  %668 = vmatpush.msra.mxu0 %v631
  %669 = vmatpush.msra.mxu0 %v630
  %670 = vmatpush.msra.mxu0 %v629
  %671 = vmatpush.msra.mxu0 %v628
  %672 = vmatpush.msra.mxu0 %v627
  %673 = vmatpush.msra.mxu0 %v626
  %674 = vmatpush.msra.mxu0 %v625
  %675 = vmatpush.msra.mxu0 %v624
  %676 = vmatpush.msra.mxu0 %v623
  %677 = vmatpush.msra.mxu0 %v622
  %678 = vmatpush.msra.mxu0 %v621
  %679 = vmatpush.msra.mxu0 %v620
  %680 = vmatpush.msra.mxu0 %v619
  %681 = vmatpush.msra.mxu0 %v618
  %682 = vmatmul.f32.gmra.mxu0 %v602
  %v683 = vpop.f32.mrf.mxu0
  %v684 = vadd.f32 %v640, %v683
  %685 = vmatmul.f32.gmra.mxu0 %v604
  %v686 = vpop.f32.mrf.mxu0
  %v687 = vadd.f32 %v640, %v686
  %688 = vmatmul.f32.gmra.mxu0 %v606
  %v689 = vpop.f32.mrf.mxu0
  %v690 = vadd.f32 %v640, %v689
  %691 = vmatmul.f32.gmra.mxu0 %v608
  %v692 = vpop.f32.mrf.mxu0
  %v693 = vadd.f32 %v640, %v692
  %694 = vmatmul.f32.gmra.mxu0 %v610
  %v695 = vpop.f32.mrf.mxu0
  %v696 = vadd.f32 %v640, %v695
  %697 = vmatmul.f32.gmra.mxu0 %v612
  %v698 = vpop.f32.mrf.mxu0
  %v699 = vadd.f32 %v640, %v698
  %700 = vmatmul.f32.gmra.mxu0 %v614
  %v701 = vpop.f32.mrf.mxu0
  %v702 = vadd.f32 %v640, %v701
  %703 = vmatmul.f32.gmra.mxu0 %v616
  %v704 = vpop.f32.mrf.mxu0
  %v705 = vadd.f32 %v640, %v704
  %706 = vdwg.mxu0
  %707 = vmatpush.msra.mxu0 0.0
  %708 = vmatpush.msra.mxu0 0.0
  %709 = vmatpush.msra.mxu0 0.0
  %710 = vmatpush.msra.mxu0 0.0
  %711 = vmatpush.msra.mxu0 0.0
  %712 = vmatpush.msra.mxu0 0.0
  %713 = vmatpush.msra.mxu0 0.0
  %714 = vmatpush.msra.mxu0 0.0
  %715 = vmatpush.msra.mxu0 0.0
  %716 = vmatpush.msra.mxu0 0.0
  %717 = vmatpush.msra.mxu0 0.0
  %718 = vmatpush.msra.mxu0 0.0
  %719 = vmatpush.msra.mxu0 %v637
  %720 = vmatpush.msra.mxu0 %v636
  %721 = vmatpush.msra.mxu0 %v635
  %722 = vmatpush.msra.mxu0 %v634
  %723 = vmatmul.f32.gmra.mxu0 %v643
  %v724 = vpop.f32.mrf.mxu0
  %v725 = vadd.f32 %v684, %v724
  %726 = vmatmul.f32.gmra.mxu0 %v646
  %v727 = vpop.f32.mrf.mxu0
  %v728 = vadd.f32 %v687, %v727
  %729 = vmatmul.f32.gmra.mxu0 %v649
  %v730 = vpop.f32.mrf.mxu0
  %v731 = vadd.f32 %v690, %v730
  %732 = vmatmul.f32.gmra.mxu0 %v652
  %v733 = vpop.f32.mrf.mxu0
  %v734 = vadd.f32 %v693, %v733
  %735 = vmatmul.f32.gmra.mxu0 %v655
  %v736 = vpop.f32.mrf.mxu0
  %v737 = vadd.f32 %v696, %v736
  %738 = vmatmul.f32.gmra.mxu0 %v658
  %v739 = vpop.f32.mrf.mxu0
  %v740 = vadd.f32 %v699, %v739
  %741 = vmatmul.f32.gmra.mxu0 %v661
  %v742 = vpop.f32.mrf.mxu0
  %v743 = vadd.f32 %v702, %v742
  %744 = vmatmul.f32.gmra.mxu0 %v664
  %v745 = vpop.f32.mrf.mxu0
  %v746 = vadd.f32 %v705, %v745
  %747 = vdwg.mxu0
  %v748 = vxor.u32 %v725, 2147483648
  %v749 = vxor.u32 %v728, 2147483648
  %v750 = vxor.u32 %v731, 2147483648
  %v751 = vxor.u32 %v734, 2147483648
  %v752 = vxor.u32 %v737, 2147483648
  %v753 = vxor.u32 %v740, 2147483648
  %v754 = vxor.u32 %v743, 2147483648
  %v755 = vxor.u32 %v746, 2147483648
  %v756 = vmul.f32 %v748, 1.442695
  %v757 = vpow.pop %v756
  %v758 = vmul.f32 %v749, 1.442695
  %v759 = vpow.pop %v758
  %v760 = vmul.f32 %v750, 1.442695
  %v761 = vpow.pop %v760
  %v762 = vmul.f32 %v751, 1.442695
  %v763 = vpow.pop %v762
  %v764 = vmul.f32 %v752, 1.442695
  %v765 = vpow.pop %v764
  %v766 = vmul.f32 %v753, 1.442695
  %v767 = vpow.pop %v766
  %v768 = vmul.f32 %v754, 1.442695
  %v769 = vpow.pop %v768
  %v770 = vmul.f32 %v755, 1.442695
  %v771 = vpow.pop %v770
  %v772 = vadd.f32 %v757, 1.0
  %v773 = vadd.f32 %v759, 1.0
  %v774 = vadd.f32 %v761, 1.0
  %v775 = vadd.f32 %v763, 1.0
  %v776 = vadd.f32 %v765, 1.0
  %v777 = vadd.f32 %v767, 1.0
  %v778 = vadd.f32 %v769, 1.0
  %v779 = vadd.f32 %v771, 1.0
  %v780 = vrcp.pop %v772
  %v781 = vmul.f32 %v772, %v780
  %v782 = vsub.f32 1.0, %v781
  %v783 = vmul.f32 %v780, %v782
  %v784 = vadd.f32 %v780, %v783
  %vm785 = vweird.f32 %v772
  %vm786 = vweird.f32 %v780
  %vm787 = vmor %vm785, %vm786
  %v788 = vsel %vm787, %v780, %v784
  %v789 = vand.u32 2147483647, %v772
  %vm790 = vcmp.eq.f32.partialorder %v789, 8.507059e+37
  %v791 = vand.u32 %v772, 2147483648
  %v792 = vor.u32 1.1754944e-38, %v791
  %v793 = vsel %vm790, %v792, %v788
  %v794 = vmul.f32 1.0, %v793
  %v795 = vrcp.pop %v773
  %v796 = vmul.f32 %v773, %v795
  %v797 = vsub.f32 1.0, %v796
  %v798 = vmul.f32 %v795, %v797
  %v799 = vadd.f32 %v795, %v798
  %vm800 = vweird.f32 %v773
  %vm801 = vweird.f32 %v795
  %vm802 = vmor %vm800, %vm801
  %v803 = vsel %vm802, %v795, %v799
  %v804 = vand.u32 2147483647, %v773
  %vm805 = vcmp.eq.f32.partialorder %v804, 8.507059e+37
  %v806 = vand.u32 %v773, 2147483648
  %v807 = vor.u32 1.1754944e-38, %v806
  %v808 = vsel %vm805, %v807, %v803
  %v809 = vmul.f32 1.0, %v808
  %v810 = vrcp.pop %v774
  %v811 = vmul.f32 %v774, %v810
  %v812 = vsub.f32 1.0, %v811
  %v813 = vmul.f32 %v810, %v812
  %v814 = vadd.f32 %v810, %v813
  %vm815 = vweird.f32 %v774
  %vm816 = vweird.f32 %v810
  %vm817 = vmor %vm815, %vm816
  %v818 = vsel %vm817, %v810, %v814
  %v819 = vand.u32 2147483647, %v774
  %vm820 = vcmp.eq.f32.partialorder %v819, 8.507059e+37
  %v821 = vand.u32 %v774, 2147483648
  %v822 = vor.u32 1.1754944e-38, %v821
  %v823 = vsel %vm820, %v822, %v818
  %v824 = vmul.f32 1.0, %v823
  %v825 = vrcp.pop %v775
  %v826 = vmul.f32 %v775, %v825
  %v827 = vsub.f32 1.0, %v826
  %v828 = vmul.f32 %v825, %v827
  %v829 = vadd.f32 %v825, %v828
  %vm830 = vweird.f32 %v775
  %vm831 = vweird.f32 %v825
  %vm832 = vmor %vm830, %vm831
  %v833 = vsel %vm832, %v825, %v829
  %v834 = vand.u32 2147483647, %v775
  %vm835 = vcmp.eq.f32.partialorder %v834, 8.507059e+37
  %v836 = vand.u32 %v775, 2147483648
  %v837 = vor.u32 1.1754944e-38, %v836
  %v838 = vsel %vm835, %v837, %v833
  %v839 = vmul.f32 1.0, %v838
  %v840 = vrcp.pop %v776
  %v841 = vmul.f32 %v776, %v840
  %v842 = vsub.f32 1.0, %v841
  %v843 = vmul.f32 %v840, %v842
  %v844 = vadd.f32 %v840, %v843
  %vm845 = vweird.f32 %v776
  %vm846 = vweird.f32 %v840
  %vm847 = vmor %vm845, %vm846
  %v848 = vsel %vm847, %v840, %v844
  %v849 = vand.u32 2147483647, %v776
  %vm850 = vcmp.eq.f32.partialorder %v849, 8.507059e+37
  %v851 = vand.u32 %v776, 2147483648
  %v852 = vor.u32 1.1754944e-38, %v851
  %v853 = vsel %vm850, %v852, %v848
  %v854 = vmul.f32 1.0, %v853
  %v855 = vrcp.pop %v777
  %v856 = vmul.f32 %v777, %v855
  %v857 = vsub.f32 1.0, %v856
  %v858 = vmul.f32 %v855, %v857
  %v859 = vadd.f32 %v855, %v858
  %vm860 = vweird.f32 %v777
  %vm861 = vweird.f32 %v855
  %vm862 = vmor %vm860, %vm861
  %v863 = vsel %vm862, %v855, %v859
  %v864 = vand.u32 2147483647, %v777
  %vm865 = vcmp.eq.f32.partialorder %v864, 8.507059e+37
  %v866 = vand.u32 %v777, 2147483648
  %v867 = vor.u32 1.1754944e-38, %v866
  %v868 = vsel %vm865, %v867, %v863
  %v869 = vmul.f32 1.0, %v868
  %v870 = vrcp.pop %v778
  %v871 = vmul.f32 %v778, %v870
  %v872 = vsub.f32 1.0, %v871
  %v873 = vmul.f32 %v870, %v872
  %v874 = vadd.f32 %v870, %v873
  %vm875 = vweird.f32 %v778
  %vm876 = vweird.f32 %v870
  %vm877 = vmor %vm875, %vm876
  %v878 = vsel %vm877, %v870, %v874
  %v879 = vand.u32 2147483647, %v778
  %vm880 = vcmp.eq.f32.partialorder %v879, 8.507059e+37
  %v881 = vand.u32 %v778, 2147483648
  %v882 = vor.u32 1.1754944e-38, %v881
  %v883 = vsel %vm880, %v882, %v878
  %v884 = vmul.f32 1.0, %v883
  %v885 = vrcp.pop %v779
  %v886 = vmul.f32 %v779, %v885
  %v887 = vsub.f32 1.0, %v886
  %v888 = vmul.f32 %v885, %v887
  %v889 = vadd.f32 %v885, %v888
  %vm890 = vweird.f32 %v779
  %vm891 = vweird.f32 %v885
  %vm892 = vmor %vm890, %vm891
  %v893 = vsel %vm892, %v885, %v889
  %v894 = vand.u32 2147483647, %v779
  %vm895 = vcmp.eq.f32.partialorder %v894, 8.507059e+37
  %v896 = vand.u32 %v779, 2147483648
  %v897 = vor.u32 1.1754944e-38, %v896
  %v898 = vsel %vm895, %v897, %v893
  %v899 = vmul.f32 1.0, %v898
  %v900 = vmul.f32 %v725, %v794
  %v901 = vmul.f32 %v728, %v809
  %v902 = vmul.f32 %v731, %v824
  %v903 = vmul.f32 %v734, %v839
  %v904 = vmul.f32 %v737, %v854
  %v905 = vmul.f32 %v740, %v869
  %v906 = vmul.f32 %v743, %v884
  %v907 = vmul.f32 %v746, %v899
  %v908 = vmul.f32 %v900, %v454
  %v909 = vmul.f32 %v901, %v455
  %v910 = vmul.f32 %v902, %v454
  %v911 = vmul.f32 %v903, %v455
  %v912 = vmul.f32 %v904, %v454
  %v913 = vmul.f32 %v905, %v455
  %v914 = vmul.f32 %v906, %v454
  %v915 = vmul.f32 %v907, %v455
  %v916 = vld [vmem:[%s43] sm:$0xff]
  %v917 = vld [vmem:[%s43 + $0x8] sm:$0xff]
  %v918 = vld [vmem:[%s43 + $0x10] sm:$0xff]
  %v919 = vld [vmem:[%s43 + $0x18] sm:$0xff]
  %v920 = vld [vmem:[%s43 + $0x20] sm:$0xff]
  %v921 = vld [vmem:[%s43 + $0x28] sm:$0xff]
  %v922 = vld [vmem:[%s43 + $0x30] sm:$0xff]
  %v923 = vld [vmem:[%s43 + $0x38] sm:$0xff]
  %v924 = vld [vmem:[%s45] sm:$0x3]
  %v926 = vperm.slane %v924, 0
  %v927 = vperm.slane %v924, 1
  %v931 = vsel %vm463, %v908, 0
  %v934 = vsel %vm463, %v909, 0
  %v937 = vsel %vm463, %v910, 0
  %v940 = vsel %vm463, %v911, 0
  %v943 = vsel %vm463, %v912, 0
  %v946 = vsel %vm463, %v913, 0
  %v949 = vsel %vm463, %v914, 0
  %v952 = vsel %vm463, %v915, 0
  %954 = vmatpush.msra.mxu0 0.0
  %955 = vmatpush.msra.mxu0 0.0
  %956 = vmatpush.msra.mxu0 0.0
  %957 = vmatpush.msra.mxu0 0.0
  %958 = vmatpush.msra.mxu0 0.0
  %959 = vmatpush.msra.mxu0 0.0
  %960 = vmatpush.msra.mxu0 0.0
  %961 = vmatpush.msra.mxu0 0.0
  %962 = vmatpush.msra.mxu0 0.0
  %963 = vmatpush.msra.mxu0 0.0
  %964 = vmatpush.msra.mxu0 0.0
  %965 = vmatpush.msra.mxu0 0.0
  %966 = vmatpush.msra.mxu0 %v922
  %967 = vmatpush.msra.mxu0 %v920
  %968 = vmatpush.msra.mxu0 %v918
  %969 = vmatpush.msra.mxu0 %v916
  %970 = vmatmul.f32.gmra.mxu0 %v931
  %v971 = vpop.f32.mrf.mxu0
  %v972 = vadd.f32 %v926, %v971
  %973 = vmatmul.f32.gmra.mxu0 %v934
  %v974 = vpop.f32.mrf.mxu0
  %v975 = vadd.f32 %v926, %v974
  %976 = vmatmul.f32.gmra.mxu0 %v937
  %v977 = vpop.f32.mrf.mxu0
  %v978 = vadd.f32 %v926, %v977
  %979 = vmatmul.f32.gmra.mxu0 %v940
  %v980 = vpop.f32.mrf.mxu0
  %v981 = vadd.f32 %v926, %v980
  %982 = vmatmul.f32.gmra.mxu0 %v943
  %v983 = vpop.f32.mrf.mxu0
  %v984 = vadd.f32 %v926, %v983
  %985 = vmatmul.f32.gmra.mxu0 %v946
  %v986 = vpop.f32.mrf.mxu0
  %v987 = vadd.f32 %v926, %v986
  %988 = vmatmul.f32.gmra.mxu0 %v949
  %v989 = vpop.f32.mrf.mxu0
  %v990 = vadd.f32 %v926, %v989
  %991 = vmatmul.f32.gmra.mxu0 %v952
  %v992 = vpop.f32.mrf.mxu0
  %v993 = vadd.f32 %v926, %v992
  %994 = vdwg.mxu0
  %995 = vmatpush.msra.mxu0 0.0
  %996 = vmatpush.msra.mxu0 0.0
  %997 = vmatpush.msra.mxu0 0.0
  %998 = vmatpush.msra.mxu0 0.0
  %999 = vmatpush.msra.mxu0 0.0
  %1000 = vmatpush.msra.mxu0 0.0
  %1001 = vmatpush.msra.mxu0 0.0
  %1002 = vmatpush.msra.mxu0 0.0
  %1003 = vmatpush.msra.mxu0 0.0
  %1004 = vmatpush.msra.mxu0 0.0
  %1005 = vmatpush.msra.mxu0 0.0
  %1006 = vmatpush.msra.mxu0 0.0
  %1007 = vmatpush.msra.mxu0 %v923
  %1008 = vmatpush.msra.mxu0 %v921
  %1009 = vmatpush.msra.mxu0 %v919
  %1010 = vmatpush.msra.mxu0 %v917
  %1011 = vmatmul.f32.gmra.mxu0 %v931
  %v1012 = vpop.f32.mrf.mxu0
  %v1013 = vadd.f32 %v927, %v1012
  %1014 = vmatmul.f32.gmra.mxu0 %v934
  %v1015 = vpop.f32.mrf.mxu0
  %v1016 = vadd.f32 %v927, %v1015
  %1017 = vmatmul.f32.gmra.mxu0 %v937
  %v1018 = vpop.f32.mrf.mxu0
  %v1019 = vadd.f32 %v927, %v1018
  %1020 = vmatmul.f32.gmra.mxu0 %v940
  %v1021 = vpop.f32.mrf.mxu0
  %v1022 = vadd.f32 %v927, %v1021
  %1023 = vmatmul.f32.gmra.mxu0 %v943
  %v1024 = vpop.f32.mrf.mxu0
  %v1025 = vadd.f32 %v927, %v1024
  %1026 = vmatmul.f32.gmra.mxu0 %v946
  %v1027 = vpop.f32.mrf.mxu0
  %v1028 = vadd.f32 %v927, %v1027
  %1029 = vmatmul.f32.gmra.mxu0 %v949
  %v1030 = vpop.f32.mrf.mxu0
  %v1031 = vadd.f32 %v927, %v1030
  %1032 = vmatmul.f32.gmra.mxu0 %v952
  %v1033 = vpop.f32.mrf.mxu0
  %v1034 = vadd.f32 %v927, %v1033
  %1035 = vdwg.mxu0
  %v1036 = vxor.u32 %v972, 2147483648
  %v1037 = vxor.u32 %v1013, 2147483648
  %v1038 = vxor.u32 %v975, 2147483648
  %v1039 = vxor.u32 %v1016, 2147483648
  %v1040 = vxor.u32 %v978, 2147483648
  %v1041 = vxor.u32 %v1019, 2147483648
  %v1042 = vxor.u32 %v981, 2147483648
  %v1043 = vxor.u32 %v1022, 2147483648
  %v1044 = vxor.u32 %v984, 2147483648
  %v1045 = vxor.u32 %v1025, 2147483648
  %v1046 = vxor.u32 %v987, 2147483648
  %v1047 = vxor.u32 %v1028, 2147483648
  %v1048 = vxor.u32 %v990, 2147483648
  %v1049 = vxor.u32 %v1031, 2147483648
  %v1050 = vxor.u32 %v993, 2147483648
  %v1051 = vxor.u32 %v1034, 2147483648
  %v1052 = vmul.f32 %v1036, 1.442695
  %v1053 = vpow.pop %v1052
  %v1054 = vmul.f32 %v1037, 1.442695
  %v1055 = vpow.pop %v1054
  %v1056 = vmul.f32 %v1038, 1.442695
  %v1057 = vpow.pop %v1056
  %v1058 = vmul.f32 %v1039, 1.442695
  %v1059 = vpow.pop %v1058
  %v1060 = vmul.f32 %v1040, 1.442695
  %v1061 = vpow.pop %v1060
  %v1062 = vmul.f32 %v1041, 1.442695
  %v1063 = vpow.pop %v1062
  %v1064 = vmul.f32 %v1042, 1.442695
  %v1065 = vpow.pop %v1064
  %v1066 = vmul.f32 %v1043, 1.442695
  %v1067 = vpow.pop %v1066
  %v1068 = vmul.f32 %v1044, 1.442695
  %v1069 = vpow.pop %v1068
  %v1070 = vmul.f32 %v1045, 1.442695
  %v1071 = vpow.pop %v1070
  %v1072 = vmul.f32 %v1046, 1.442695
  %v1073 = vpow.pop %v1072
  %v1074 = vmul.f32 %v1047, 1.442695
  %v1075 = vpow.pop %v1074
  %v1076 = vmul.f32 %v1048, 1.442695
  %v1077 = vpow.pop %v1076
  %v1078 = vmul.f32 %v1049, 1.442695
  %v1079 = vpow.pop %v1078
  %v1080 = vmul.f32 %v1050, 1.442695
  %v1081 = vpow.pop %v1080
  %v1082 = vmul.f32 %v1051, 1.442695
  %v1083 = vpow.pop %v1082
  %v1084 = vadd.f32 %v1053, 1.0
  %v1085 = vadd.f32 %v1055, 1.0
  %v1086 = vadd.f32 %v1057, 1.0
  %v1087 = vadd.f32 %v1059, 1.0
  %v1088 = vadd.f32 %v1061, 1.0
  %v1089 = vadd.f32 %v1063, 1.0
  %v1090 = vadd.f32 %v1065, 1.0
  %v1091 = vadd.f32 %v1067, 1.0
  %v1092 = vadd.f32 %v1069, 1.0
  %v1093 = vadd.f32 %v1071, 1.0
  %v1094 = vadd.f32 %v1073, 1.0
  %v1095 = vadd.f32 %v1075, 1.0
  %v1096 = vadd.f32 %v1077, 1.0
  %v1097 = vadd.f32 %v1079, 1.0
  %v1098 = vadd.f32 %v1081, 1.0
  %v1099 = vadd.f32 %v1083, 1.0
  %v1100 = vrcp.pop %v1084
  %v1101 = vmul.f32 %v1084, %v1100
  %v1102 = vsub.f32 1.0, %v1101
  %v1103 = vmul.f32 %v1100, %v1102
  %v1104 = vadd.f32 %v1100, %v1103
  %vm1105 = vweird.f32 %v1084
  %vm1106 = vweird.f32 %v1100
  %vm1107 = vmor %vm1105, %vm1106
  %v1108 = vsel %vm1107, %v1100, %v1104
  %v1109 = vand.u32 2147483647, %v1084
  %vm1110 = vcmp.eq.f32.partialorder %v1109, 8.507059e+37
  %v1111 = vand.u32 %v1084, 2147483648
  %v1112 = vor.u32 1.1754944e-38, %v1111
  %v1113 = vsel %vm1110, %v1112, %v1108
  %v1114 = vmul.f32 1.0, %v1113
  %v1115 = vrcp.pop %v1085
  %v1116 = vmul.f32 %v1085, %v1115
  %v1117 = vsub.f32 1.0, %v1116
  %v1118 = vmul.f32 %v1115, %v1117
  %v1119 = vadd.f32 %v1115, %v1118
  %vm1120 = vweird.f32 %v1085
  %vm1121 = vweird.f32 %v1115
  %vm1122 = vmor %vm1120, %vm1121
  %v1123 = vsel %vm1122, %v1115, %v1119
  %v1124 = vand.u32 2147483647, %v1085
  %vm1125 = vcmp.eq.f32.partialorder %v1124, 8.507059e+37
  %v1126 = vand.u32 %v1085, 2147483648
  %v1127 = vor.u32 1.1754944e-38, %v1126
  %v1128 = vsel %vm1125, %v1127, %v1123
  %v1129 = vmul.f32 1.0, %v1128
  %v1130 = vrcp.pop %v1086
  %v1131 = vmul.f32 %v1086, %v1130
  %v1132 = vsub.f32 1.0, %v1131
  %v1133 = vmul.f32 %v1130, %v1132
  %v1134 = vadd.f32 %v1130, %v1133
  %vm1135 = vweird.f32 %v1086
  %vm1136 = vweird.f32 %v1130
  %vm1137 = vmor %vm1135, %vm1136
  %v1138 = vsel %vm1137, %v1130, %v1134
  %v1139 = vand.u32 2147483647, %v1086
  %vm1140 = vcmp.eq.f32.partialorder %v1139, 8.507059e+37
  %v1141 = vand.u32 %v1086, 2147483648
  %v1142 = vor.u32 1.1754944e-38, %v1141
  %v1143 = vsel %vm1140, %v1142, %v1138
  %v1144 = vmul.f32 1.0, %v1143
  %v1145 = vrcp.pop %v1087
  %v1146 = vmul.f32 %v1087, %v1145
  %v1147 = vsub.f32 1.0, %v1146
  %v1148 = vmul.f32 %v1145, %v1147
  %v1149 = vadd.f32 %v1145, %v1148
  %vm1150 = vweird.f32 %v1087
  %vm1151 = vweird.f32 %v1145
  %vm1152 = vmor %vm1150, %vm1151
  %v1153 = vsel %vm1152, %v1145, %v1149
  %v1154 = vand.u32 2147483647, %v1087
  %vm1155 = vcmp.eq.f32.partialorder %v1154, 8.507059e+37
  %v1156 = vand.u32 %v1087, 2147483648
  %v1157 = vor.u32 1.1754944e-38, %v1156
  %v1158 = vsel %vm1155, %v1157, %v1153
  %v1159 = vmul.f32 1.0, %v1158
  %v1160 = vrcp.pop %v1088
  %v1161 = vmul.f32 %v1088, %v1160
  %v1162 = vsub.f32 1.0, %v1161
  %v1163 = vmul.f32 %v1160, %v1162
  %v1164 = vadd.f32 %v1160, %v1163
  %vm1165 = vweird.f32 %v1088
  %vm1166 = vweird.f32 %v1160
  %vm1167 = vmor %vm1165, %vm1166
  %v1168 = vsel %vm1167, %v1160, %v1164
  %v1169 = vand.u32 2147483647, %v1088
  %vm1170 = vcmp.eq.f32.partialorder %v1169, 8.507059e+37
  %v1171 = vand.u32 %v1088, 2147483648
  %v1172 = vor.u32 1.1754944e-38, %v1171
  %v1173 = vsel %vm1170, %v1172, %v1168
  %v1174 = vmul.f32 1.0, %v1173
  %v1175 = vrcp.pop %v1089
  %v1176 = vmul.f32 %v1089, %v1175
  %v1177 = vsub.f32 1.0, %v1176
  %v1178 = vmul.f32 %v1175, %v1177
  %v1179 = vadd.f32 %v1175, %v1178
  %vm1180 = vweird.f32 %v1089
  %vm1181 = vweird.f32 %v1175
  %vm1182 = vmor %vm1180, %vm1181
  %v1183 = vsel %vm1182, %v1175, %v1179
  %v1184 = vand.u32 2147483647, %v1089
  %vm1185 = vcmp.eq.f32.partialorder %v1184, 8.507059e+37
  %v1186 = vand.u32 %v1089, 2147483648
  %v1187 = vor.u32 1.1754944e-38, %v1186
  %v1188 = vsel %vm1185, %v1187, %v1183
  %v1189 = vmul.f32 1.0, %v1188
  %v1190 = vrcp.pop %v1090
  %v1191 = vmul.f32 %v1090, %v1190
  %v1192 = vsub.f32 1.0, %v1191
  %v1193 = vmul.f32 %v1190, %v1192
  %v1194 = vadd.f32 %v1190, %v1193
  %vm1195 = vweird.f32 %v1090
  %vm1196 = vweird.f32 %v1190
  %vm1197 = vmor %vm1195, %vm1196
  %v1198 = vsel %vm1197, %v1190, %v1194
  %v1199 = vand.u32 2147483647, %v1090
  %vm1200 = vcmp.eq.f32.partialorder %v1199, 8.507059e+37
  %v1201 = vand.u32 %v1090, 2147483648
  %v1202 = vor.u32 1.1754944e-38, %v1201
  %v1203 = vsel %vm1200, %v1202, %v1198
  %v1204 = vmul.f32 1.0, %v1203
  %v1205 = vrcp.pop %v1091
  %v1206 = vmul.f32 %v1091, %v1205
  %v1207 = vsub.f32 1.0, %v1206
  %v1208 = vmul.f32 %v1205, %v1207
  %v1209 = vadd.f32 %v1205, %v1208
  %vm1210 = vweird.f32 %v1091
  %vm1211 = vweird.f32 %v1205
  %vm1212 = vmor %vm1210, %vm1211
  %v1213 = vsel %vm1212, %v1205, %v1209
  %v1214 = vand.u32 2147483647, %v1091
  %vm1215 = vcmp.eq.f32.partialorder %v1214, 8.507059e+37
  %v1216 = vand.u32 %v1091, 2147483648
  %v1217 = vor.u32 1.1754944e-38, %v1216
  %v1218 = vsel %vm1215, %v1217, %v1213
  %v1219 = vmul.f32 1.0, %v1218
  %v1220 = vrcp.pop %v1092
  %v1221 = vmul.f32 %v1092, %v1220
  %v1222 = vsub.f32 1.0, %v1221
  %v1223 = vmul.f32 %v1220, %v1222
  %v1224 = vadd.f32 %v1220, %v1223
  %vm1225 = vweird.f32 %v1092
  %vm1226 = vweird.f32 %v1220
  %vm1227 = vmor %vm1225, %vm1226
  %v1228 = vsel %vm1227, %v1220, %v1224
  %v1229 = vand.u32 2147483647, %v1092
  %vm1230 = vcmp.eq.f32.partialorder %v1229, 8.507059e+37
  %v1231 = vand.u32 %v1092, 2147483648
  %v1232 = vor.u32 1.1754944e-38, %v1231
  %v1233 = vsel %vm1230, %v1232, %v1228
  %v1234 = vmul.f32 1.0, %v1233
  %v1235 = vrcp.pop %v1093
  %v1236 = vmul.f32 %v1093, %v1235
  %v1237 = vsub.f32 1.0, %v1236
  %v1238 = vmul.f32 %v1235, %v1237
  %v1239 = vadd.f32 %v1235, %v1238
  %vm1240 = vweird.f32 %v1093
  %vm1241 = vweird.f32 %v1235
  %vm1242 = vmor %vm1240, %vm1241
  %v1243 = vsel %vm1242, %v1235, %v1239
  %v1244 = vand.u32 2147483647, %v1093
  %vm1245 = vcmp.eq.f32.partialorder %v1244, 8.507059e+37
  %v1246 = vand.u32 %v1093, 2147483648
  %v1247 = vor.u32 1.1754944e-38, %v1246
  %v1248 = vsel %vm1245, %v1247, %v1243
  %v1249 = vmul.f32 1.0, %v1248
  %v1250 = vrcp.pop %v1094
  %v1251 = vmul.f32 %v1094, %v1250
  %v1252 = vsub.f32 1.0, %v1251
  %v1253 = vmul.f32 %v1250, %v1252
  %v1254 = vadd.f32 %v1250, %v1253
  %vm1255 = vweird.f32 %v1094
  %vm1256 = vweird.f32 %v1250
  %vm1257 = vmor %vm1255, %vm1256
  %v1258 = vsel %vm1257, %v1250, %v1254
  %v1259 = vand.u32 2147483647, %v1094
  %vm1260 = vcmp.eq.f32.partialorder %v1259, 8.507059e+37
  %v1261 = vand.u32 %v1094, 2147483648
  %v1262 = vor.u32 1.1754944e-38, %v1261
  %v1263 = vsel %vm1260, %v1262, %v1258
  %v1264 = vmul.f32 1.0, %v1263
  %v1265 = vrcp.pop %v1095
  %v1266 = vmul.f32 %v1095, %v1265
  %v1267 = vsub.f32 1.0, %v1266
  %v1268 = vmul.f32 %v1265, %v1267
  %v1269 = vadd.f32 %v1265, %v1268
  %vm1270 = vweird.f32 %v1095
  %vm1271 = vweird.f32 %v1265
  %vm1272 = vmor %vm1270, %vm1271
  %v1273 = vsel %vm1272, %v1265, %v1269
  %v1274 = vand.u32 2147483647, %v1095
  %vm1275 = vcmp.eq.f32.partialorder %v1274, 8.507059e+37
  %v1276 = vand.u32 %v1095, 2147483648
  %v1277 = vor.u32 1.1754944e-38, %v1276
  %v1278 = vsel %vm1275, %v1277, %v1273
  %v1279 = vmul.f32 1.0, %v1278
  %v1280 = vrcp.pop %v1096
  %v1281 = vmul.f32 %v1096, %v1280
  %v1282 = vsub.f32 1.0, %v1281
  %v1283 = vmul.f32 %v1280, %v1282
  %v1284 = vadd.f32 %v1280, %v1283
  %vm1285 = vweird.f32 %v1096
  %vm1286 = vweird.f32 %v1280
  %vm1287 = vmor %vm1285, %vm1286
  %v1288 = vsel %vm1287, %v1280, %v1284
  %v1289 = vand.u32 2147483647, %v1096
  %vm1290 = vcmp.eq.f32.partialorder %v1289, 8.507059e+37
  %v1291 = vand.u32 %v1096, 2147483648
  %v1292 = vor.u32 1.1754944e-38, %v1291
  %v1293 = vsel %vm1290, %v1292, %v1288
  %v1294 = vmul.f32 1.0, %v1293
  %v1295 = vrcp.pop %v1097
  %v1296 = vmul.f32 %v1097, %v1295
  %v1297 = vsub.f32 1.0, %v1296
  %v1298 = vmul.f32 %v1295, %v1297
  %v1299 = vadd.f32 %v1295, %v1298
  %vm1300 = vweird.f32 %v1097
  %vm1301 = vweird.f32 %v1295
  %vm1302 = vmor %vm1300, %vm1301
  %v1303 = vsel %vm1302, %v1295, %v1299
  %v1304 = vand.u32 2147483647, %v1097
  %vm1305 = vcmp.eq.f32.partialorder %v1304, 8.507059e+37
  %v1306 = vand.u32 %v1097, 2147483648
  %v1307 = vor.u32 1.1754944e-38, %v1306
  %v1308 = vsel %vm1305, %v1307, %v1303
  %v1309 = vmul.f32 1.0, %v1308
  %v1310 = vrcp.pop %v1098
  %v1311 = vmul.f32 %v1098, %v1310
  %v1312 = vsub.f32 1.0, %v1311
  %v1313 = vmul.f32 %v1310, %v1312
  %v1314 = vadd.f32 %v1310, %v1313
  %vm1315 = vweird.f32 %v1098
  %vm1316 = vweird.f32 %v1310
  %vm1317 = vmor %vm1315, %vm1316
  %v1318 = vsel %vm1317, %v1310, %v1314
  %v1319 = vand.u32 2147483647, %v1098
  %vm1320 = vcmp.eq.f32.partialorder %v1319, 8.507059e+37
  %v1321 = vand.u32 %v1098, 2147483648
  %v1322 = vor.u32 1.1754944e-38, %v1321
  %v1323 = vsel %vm1320, %v1322, %v1318
  %v1324 = vmul.f32 1.0, %v1323
  %v1325 = vrcp.pop %v1099
  %v1326 = vmul.f32 %v1099, %v1325
  %v1327 = vsub.f32 1.0, %v1326
  %v1328 = vmul.f32 %v1325, %v1327
  %v1329 = vadd.f32 %v1325, %v1328
  %vm1330 = vweird.f32 %v1099
  %vm1331 = vweird.f32 %v1325
  %vm1332 = vmor %vm1330, %vm1331
  %v1333 = vsel %vm1332, %v1325, %v1329
  %v1334 = vand.u32 2147483647, %v1099
  %vm1335 = vcmp.eq.f32.partialorder %v1334, 8.507059e+37
  %v1336 = vand.u32 %v1099, 2147483648
  %v1337 = vor.u32 1.1754944e-38, %v1336
  %v1338 = vsel %vm1335, %v1337, %v1333
  %v1339 = vmul.f32 1.0, %v1338
  %v1340 = vmul.f32 %v972, %v1114
  %v1341 = vmul.f32 %v1013, %v1129
  %v1342 = vmul.f32 %v975, %v1144
  %v1343 = vmul.f32 %v1016, %v1159
  %v1344 = vmul.f32 %v978, %v1174
  %v1345 = vmul.f32 %v1019, %v1189
  %v1346 = vmul.f32 %v981, %v1204
  %v1347 = vmul.f32 %v1022, %v1219
  %v1348 = vmul.f32 %v984, %v1234
  %v1349 = vmul.f32 %v1025, %v1249
  %v1350 = vmul.f32 %v987, %v1264
  %v1351 = vmul.f32 %v1028, %v1279
  %v1352 = vmul.f32 %v990, %v1294
  %v1353 = vmul.f32 %v1031, %v1309
  %v1354 = vmul.f32 %v993, %v1324
  %v1355 = vmul.f32 %v1034, %v1339
  %v1356 = vadd.f32 %v1340, %v1348
  %v1357 = vadd.f32 %v1341, %v1349
  %v1358 = vadd.f32 %v1342, %v1350
  %v1359 = vadd.f32 %v1343, %v1351
  %v1360 = vadd.f32 %v1344, %v1352
  %v1361 = vadd.f32 %v1345, %v1353
  %v1362 = vadd.f32 %v1346, %v1354
  %v1363 = vadd.f32 %v1347, %v1355
  %v1364 = vld [vmem:[%s9] sm:$0xff]
  %v1365 = vld [vmem:[%s9 + $0x8] sm:$0xff]
  %v1366 = vld [vmem:[%s9 + $0x10] sm:$0xff]
  %v1367 = vld [vmem:[%s9 + $0x18] sm:$0xff]
  %v1368 = vld [vmem:[%s9 + $0x20] sm:$0xff]
  %v1369 = vld [vmem:[%s9 + $0x28] sm:$0xff]
  %v1370 = vld [vmem:[%s9 + $0x30] sm:$0xff]
  %v1371 = vld [vmem:[%s9 + $0x38] sm:$0xff]
  %v1372 = vld [vmem:[%s47] sm:$0xff]
  %v1373 = vld [vmem:[%s47 + $0x8] sm:$0xff]
  %v1374 = vld [vmem:[%s47 + $0x10] sm:$0xff]
  %v1375 = vld [vmem:[%s47 + $0x18] sm:$0xff]
  %v1376 = vld [vmem:[%s47 + $0x20] sm:$0xff]
  %v1377 = vld [vmem:[%s47 + $0x28] sm:$0xff]
  %v1378 = vld [vmem:[%s47 + $0x30] sm:$0xff]
  %v1379 = vld [vmem:[%s47 + $0x38] sm:$0xff]
  %v1380 = vld [vmem:[%s47 + $0x40] sm:$0xff]
  %v1381 = vld [vmem:[%s47 + $0x48] sm:$0xff]
  %v1382 = vld [vmem:[%s47 + $0x50] sm:$0xff]
  %v1383 = vld [vmem:[%s47 + $0x58] sm:$0xff]
  %v1384 = vld [vmem:[%s47 + $0x60] sm:$0xff]
  %v1385 = vld [vmem:[%s47 + $0x68] sm:$0xff]
  %v1386 = vld [vmem:[%s47 + $0x70] sm:$0xff]
  %v1387 = vld [vmem:[%s47 + $0x78] sm:$0xff]
  %v1388 = vld [vmem:[%s47 + $0x80] sm:$0xff]
  %v1389 = vld [vmem:[%s47 + $0x88] sm:$0xff]
  %v1390 = vld [vmem:[%s47 + $0x90] sm:$0xff]
  %v1391 = vld [vmem:[%s47 + $0x98] sm:$0xff]
  %v1392 = vld [vmem:[%s49] sm:$0x1]
  %v1394 = vperm.slane %v1392, 0
  %v1397 = vsel %vm463, %v1365, 0
  %v1400 = vsel %vm463, %v1367, 0
  %v1403 = vsel %vm463, %v1369, 0
  %v1406 = vsel %vm463, %v1371, 0
  %1408 = vmatpush.msra.mxu0 %v1387
  %1409 = vmatpush.msra.mxu0 %v1386
  %1410 = vmatpush.msra.mxu0 %v1385
  %1411 = vmatpush.msra.mxu0 %v1384
  %1412 = vmatpush.msra.mxu0 %v1383
  %1413 = vmatpush.msra.mxu0 %v1382
  %1414 = vmatpush.msra.mxu0 %v1381
  %1415 = vmatpush.msra.mxu0 %v1380
  %1416 = vmatpush.msra.mxu0 %v1379
  %1417 = vmatpush.msra.mxu0 %v1378
  %1418 = vmatpush.msra.mxu0 %v1377
  %1419 = vmatpush.msra.mxu0 %v1376
  %1420 = vmatpush.msra.mxu0 %v1375
  %1421 = vmatpush.msra.mxu0 %v1374
  %1422 = vmatpush.msra.mxu0 %v1373
  %1423 = vmatpush.msra.mxu0 %v1372
  %1424 = vmatmul.f32.gmra.mxu0 %v1364
  %v1425 = vpop.f32.mrf.mxu0
  %v1426 = vadd.f32 %v1394, %v1425
  %1427 = vmatmul.f32.gmra.mxu0 %v1366
  %v1428 = vpop.f32.mrf.mxu0
  %v1429 = vadd.f32 %v1394, %v1428
  %1430 = vmatmul.f32.gmra.mxu0 %v1368
  %v1431 = vpop.f32.mrf.mxu0
  %v1432 = vadd.f32 %v1394, %v1431
  %1433 = vmatmul.f32.gmra.mxu0 %v1370
  %v1434 = vpop.f32.mrf.mxu0
  %v1435 = vadd.f32 %v1394, %v1434
  %1436 = vdwg.mxu0
  %1437 = vmatpush.msra.mxu0 0.0
  %1438 = vmatpush.msra.mxu0 0.0
  %1439 = vmatpush.msra.mxu0 0.0
  %1440 = vmatpush.msra.mxu0 0.0
  %1441 = vmatpush.msra.mxu0 0.0
  %1442 = vmatpush.msra.mxu0 0.0
  %1443 = vmatpush.msra.mxu0 0.0
  %1444 = vmatpush.msra.mxu0 0.0
  %1445 = vmatpush.msra.mxu0 0.0
  %1446 = vmatpush.msra.mxu0 0.0
  %1447 = vmatpush.msra.mxu0 0.0
  %1448 = vmatpush.msra.mxu0 0.0
  %1449 = vmatpush.msra.mxu0 %v1391
  %1450 = vmatpush.msra.mxu0 %v1390
  %1451 = vmatpush.msra.mxu0 %v1389
  %1452 = vmatpush.msra.mxu0 %v1388
  %1453 = vmatmul.f32.gmra.mxu0 %v1397
  %v1454 = vpop.f32.mrf.mxu0
  %v1455 = vadd.f32 %v1426, %v1454
  %1456 = vmatmul.f32.gmra.mxu0 %v1400
  %v1457 = vpop.f32.mrf.mxu0
  %v1458 = vadd.f32 %v1429, %v1457
  %1459 = vmatmul.f32.gmra.mxu0 %v1403
  %v1460 = vpop.f32.mrf.mxu0
  %v1461 = vadd.f32 %v1432, %v1460
  %1462 = vmatmul.f32.gmra.mxu0 %v1406
  %v1463 = vpop.f32.mrf.mxu0
  %v1464 = vadd.f32 %v1435, %v1463
  %1465 = vdwg.mxu0
  %v1466 = vxor.u32 %v1455, 2147483648
  %v1467 = vxor.u32 %v1458, 2147483648
  %v1468 = vxor.u32 %v1461, 2147483648
  %v1469 = vxor.u32 %v1464, 2147483648
  %v1470 = vmul.f32 %v1466, 1.442695
  %v1471 = vpow.pop %v1470
  %v1472 = vmul.f32 %v1467, 1.442695
  %v1473 = vpow.pop %v1472
  %v1474 = vmul.f32 %v1468, 1.442695
  %v1475 = vpow.pop %v1474
  %v1476 = vmul.f32 %v1469, 1.442695
  %v1477 = vpow.pop %v1476
  %v1478 = vadd.f32 %v1471, 1.0
  %v1479 = vadd.f32 %v1473, 1.0
  %v1480 = vadd.f32 %v1475, 1.0
  %v1481 = vadd.f32 %v1477, 1.0
  %v1482 = vrcp.pop %v1478
  %v1483 = vmul.f32 %v1478, %v1482
  %v1484 = vsub.f32 1.0, %v1483
  %v1485 = vmul.f32 %v1482, %v1484
  %v1486 = vadd.f32 %v1482, %v1485
  %vm1487 = vweird.f32 %v1478
  %vm1488 = vweird.f32 %v1482
  %vm1489 = vmor %vm1487, %vm1488
  %v1490 = vsel %vm1489, %v1482, %v1486
  %v1491 = vand.u32 2147483647, %v1478
  %vm1492 = vcmp.eq.f32.partialorder %v1491, 8.507059e+37
  %v1493 = vand.u32 %v1478, 2147483648
  %v1494 = vor.u32 1.1754944e-38, %v1493
  %v1495 = vsel %vm1492, %v1494, %v1490
  %v1496 = vmul.f32 1.0, %v1495
  %v1497 = vrcp.pop %v1479
  %v1498 = vmul.f32 %v1479, %v1497
  %v1499 = vsub.f32 1.0, %v1498
  %v1500 = vmul.f32 %v1497, %v1499
  %v1501 = vadd.f32 %v1497, %v1500
  %vm1502 = vweird.f32 %v1479
  %vm1503 = vweird.f32 %v1497
  %vm1504 = vmor %vm1502, %vm1503
  %v1505 = vsel %vm1504, %v1497, %v1501
  %v1506 = vand.u32 2147483647, %v1479
  %vm1507 = vcmp.eq.f32.partialorder %v1506, 8.507059e+37
  %v1508 = vand.u32 %v1479, 2147483648
  %v1509 = vor.u32 1.1754944e-38, %v1508
  %v1510 = vsel %vm1507, %v1509, %v1505
  %v1511 = vmul.f32 1.0, %v1510
  %v1512 = vrcp.pop %v1480
  %v1513 = vmul.f32 %v1480, %v1512
  %v1514 = vsub.f32 1.0, %v1513
  %v1515 = vmul.f32 %v1512, %v1514
  %v1516 = vadd.f32 %v1512, %v1515
  %vm1517 = vweird.f32 %v1480
  %vm1518 = vweird.f32 %v1512
  %vm1519 = vmor %vm1517, %vm1518
  %v1520 = vsel %vm1519, %v1512, %v1516
  %v1521 = vand.u32 2147483647, %v1480
  %vm1522 = vcmp.eq.f32.partialorder %v1521, 8.507059e+37
  %v1523 = vand.u32 %v1480, 2147483648
  %v1524 = vor.u32 1.1754944e-38, %v1523
  %v1525 = vsel %vm1522, %v1524, %v1520
  %v1526 = vmul.f32 1.0, %v1525
  %v1527 = vrcp.pop %v1481
  %v1528 = vmul.f32 %v1481, %v1527
  %v1529 = vsub.f32 1.0, %v1528
  %v1530 = vmul.f32 %v1527, %v1529
  %v1531 = vadd.f32 %v1527, %v1530
  %vm1532 = vweird.f32 %v1481
  %vm1533 = vweird.f32 %v1527
  %vm1534 = vmor %vm1532, %vm1533
  %v1535 = vsel %vm1534, %v1527, %v1531
  %v1536 = vand.u32 2147483647, %v1481
  %vm1537 = vcmp.eq.f32.partialorder %v1536, 8.507059e+37
  %v1538 = vand.u32 %v1481, 2147483648
  %v1539 = vor.u32 1.1754944e-38, %v1538
  %v1540 = vsel %vm1537, %v1539, %v1535
  %v1541 = vmul.f32 1.0, %v1540
  %v1542 = vmul.f32 %v1455, %v1496
  %v1543 = vmul.f32 %v1458, %v1511
  %v1544 = vmul.f32 %v1461, %v1526
  %v1545 = vmul.f32 %v1464, %v1541
  %v1546 = vmul.f32 %v1542, %v386
  %v1547 = vmul.f32 %v1543, %v387
  %v1548 = vmul.f32 %v1544, %v386
  %v1549 = vmul.f32 %v1545, %v387
  %v1550 = vld [vmem:[%s51] sm:$0xff]
  %v1551 = vld [vmem:[%s51 + $0x8] sm:$0xff]
  %v1552 = vld [vmem:[%s51 + $0x10] sm:$0xff]
  %v1553 = vld [vmem:[%s51 + $0x18] sm:$0xff]
  %v1554 = vld [vmem:[%s51 + $0x20] sm:$0xff]
  %v1555 = vld [vmem:[%s51 + $0x28] sm:$0xff]
  %v1556 = vld [vmem:[%s51 + $0x30] sm:$0xff]
  %v1557 = vld [vmem:[%s51 + $0x38] sm:$0xff]
  %v1558 = vld [vmem:[%s53] sm:$0x3]
  %v1560 = vperm.slane %v1558, 0
  %v1561 = vperm.slane %v1558, 1
  %v1565 = vsel %vm463, %v1546, 0
  %v1568 = vsel %vm463, %v1547, 0
  %v1571 = vsel %vm463, %v1548, 0
  %v1574 = vsel %vm463, %v1549, 0
  %1576 = vmatpush.msra.mxu0 0.0
  %1577 = vmatpush.msra.mxu0 0.0
  %1578 = vmatpush.msra.mxu0 0.0
  %1579 = vmatpush.msra.mxu0 0.0
  %1580 = vmatpush.msra.mxu0 0.0
  %1581 = vmatpush.msra.mxu0 0.0
  %1582 = vmatpush.msra.mxu0 0.0
  %1583 = vmatpush.msra.mxu0 0.0
  %1584 = vmatpush.msra.mxu0 0.0
  %1585 = vmatpush.msra.mxu0 0.0
  %1586 = vmatpush.msra.mxu0 0.0
  %1587 = vmatpush.msra.mxu0 0.0
  %1588 = vmatpush.msra.mxu0 %v1556
  %1589 = vmatpush.msra.mxu0 %v1554
  %1590 = vmatpush.msra.mxu0 %v1552
  %1591 = vmatpush.msra.mxu0 %v1550
  %1592 = vmatmul.f32.gmra.mxu0 %v1565
  %v1593 = vpop.f32.mrf.mxu0
  %v1594 = vadd.f32 %v1560, %v1593
  %1595 = vmatmul.f32.gmra.mxu0 %v1568
  %v1596 = vpop.f32.mrf.mxu0
  %v1597 = vadd.f32 %v1560, %v1596
  %1598 = vmatmul.f32.gmra.mxu0 %v1571
  %v1599 = vpop.f32.mrf.mxu0
  %v1600 = vadd.f32 %v1560, %v1599
  %1601 = vmatmul.f32.gmra.mxu0 %v1574
  %v1602 = vpop.f32.mrf.mxu0
  %v1603 = vadd.f32 %v1560, %v1602
  %1604 = vdwg.mxu0
  %1605 = vmatpush.msra.mxu0 0.0
  %1606 = vmatpush.msra.mxu0 0.0
  %1607 = vmatpush.msra.mxu0 0.0
  %1608 = vmatpush.msra.mxu0 0.0
  %1609 = vmatpush.msra.mxu0 0.0
  %1610 = vmatpush.msra.mxu0 0.0
  %1611 = vmatpush.msra.mxu0 0.0
  %1612 = vmatpush.msra.mxu0 0.0
  %1613 = vmatpush.msra.mxu0 0.0
  %1614 = vmatpush.msra.mxu0 0.0
  %1615 = vmatpush.msra.mxu0 0.0
  %1616 = vmatpush.msra.mxu0 0.0
  %1617 = vmatpush.msra.mxu0 %v1557
  %1618 = vmatpush.msra.mxu0 %v1555
  %1619 = vmatpush.msra.mxu0 %v1553
  %1620 = vmatpush.msra.mxu0 %v1551
  %1621 = vmatmul.f32.gmra.mxu0 %v1565
  %v1622 = vpop.f32.mrf.mxu0
  %v1623 = vadd.f32 %v1561, %v1622
  %1624 = vmatmul.f32.gmra.mxu0 %v1568
  %v1625 = vpop.f32.mrf.mxu0
  %v1626 = vadd.f32 %v1561, %v1625
  %1627 = vmatmul.f32.gmra.mxu0 %v1571
  %v1628 = vpop.f32.mrf.mxu0
  %v1629 = vadd.f32 %v1561, %v1628
  %1630 = vmatmul.f32.gmra.mxu0 %v1574
  %v1631 = vpop.f32.mrf.mxu0
  %v1632 = vadd.f32 %v1561, %v1631
  %1633 = vdwg.mxu0
  %v1634 = vxor.u32 %v1594, 2147483648
  %v1635 = vxor.u32 %v1623, 2147483648
  %v1636 = vxor.u32 %v1597, 2147483648
  %v1637 = vxor.u32 %v1626, 2147483648
  %v1638 = vxor.u32 %v1600, 2147483648
  %v1639 = vxor.u32 %v1629, 2147483648
  %v1640 = vxor.u32 %v1603, 2147483648
  %v1641 = vxor.u32 %v1632, 2147483648
  %v1642 = vmul.f32 %v1634, 1.442695
  %v1643 = vpow.pop %v1642
  %v1644 = vmul.f32 %v1635, 1.442695
  %v1645 = vpow.pop %v1644
  %v1646 = vmul.f32 %v1636, 1.442695
  %v1647 = vpow.pop %v1646
  %v1648 = vmul.f32 %v1637, 1.442695
  %v1649 = vpow.pop %v1648
  %v1650 = vmul.f32 %v1638, 1.442695
  %v1651 = vpow.pop %v1650
  %v1652 = vmul.f32 %v1639, 1.442695
  %v1653 = vpow.pop %v1652
  %v1654 = vmul.f32 %v1640, 1.442695
  %v1655 = vpow.pop %v1654
  %v1656 = vmul.f32 %v1641, 1.442695
  %v1657 = vpow.pop %v1656
  %v1658 = vadd.f32 %v1643, 1.0
  %v1659 = vadd.f32 %v1645, 1.0
  %v1660 = vadd.f32 %v1647, 1.0
  %v1661 = vadd.f32 %v1649, 1.0
  %v1662 = vadd.f32 %v1651, 1.0
  %v1663 = vadd.f32 %v1653, 1.0
  %v1664 = vadd.f32 %v1655, 1.0
  %v1665 = vadd.f32 %v1657, 1.0
  %v1666 = vrcp.pop %v1658
  %v1667 = vmul.f32 %v1658, %v1666
  %v1668 = vsub.f32 1.0, %v1667
  %v1669 = vmul.f32 %v1666, %v1668
  %v1670 = vadd.f32 %v1666, %v1669
  %vm1671 = vweird.f32 %v1658
  %vm1672 = vweird.f32 %v1666
  %vm1673 = vmor %vm1671, %vm1672
  %v1674 = vsel %vm1673, %v1666, %v1670
  %v1675 = vand.u32 2147483647, %v1658
  %vm1676 = vcmp.eq.f32.partialorder %v1675, 8.507059e+37
  %v1677 = vand.u32 %v1658, 2147483648
  %v1678 = vor.u32 1.1754944e-38, %v1677
  %v1679 = vsel %vm1676, %v1678, %v1674
  %v1680 = vmul.f32 1.0, %v1679
  %v1681 = vrcp.pop %v1659
  %v1682 = vmul.f32 %v1659, %v1681
  %v1683 = vsub.f32 1.0, %v1682
  %v1684 = vmul.f32 %v1681, %v1683
  %v1685 = vadd.f32 %v1681, %v1684
  %vm1686 = vweird.f32 %v1659
  %vm1687 = vweird.f32 %v1681
  %vm1688 = vmor %vm1686, %vm1687
  %v1689 = vsel %vm1688, %v1681, %v1685
  %v1690 = vand.u32 2147483647, %v1659
  %vm1691 = vcmp.eq.f32.partialorder %v1690, 8.507059e+37
  %v1692 = vand.u32 %v1659, 2147483648
  %v1693 = vor.u32 1.1754944e-38, %v1692
  %v1694 = vsel %vm1691, %v1693, %v1689
  %v1695 = vmul.f32 1.0, %v1694
  %v1696 = vrcp.pop %v1660
  %v1697 = vmul.f32 %v1660, %v1696
  %v1698 = vsub.f32 1.0, %v1697
  %v1699 = vmul.f32 %v1696, %v1698
  %v1700 = vadd.f32 %v1696, %v1699
  %vm1701 = vweird.f32 %v1660
  %vm1702 = vweird.f32 %v1696
  %vm1703 = vmor %vm1701, %vm1702
  %v1704 = vsel %vm1703, %v1696, %v1700
  %v1705 = vand.u32 2147483647, %v1660
  %vm1706 = vcmp.eq.f32.partialorder %v1705, 8.507059e+37
  %v1707 = vand.u32 %v1660, 2147483648
  %v1708 = vor.u32 1.1754944e-38, %v1707
  %v1709 = vsel %vm1706, %v1708, %v1704
  %v1710 = vmul.f32 1.0, %v1709
  %v1711 = vrcp.pop %v1661
  %v1712 = vmul.f32 %v1661, %v1711
  %v1713 = vsub.f32 1.0, %v1712
  %v1714 = vmul.f32 %v1711, %v1713
  %v1715 = vadd.f32 %v1711, %v1714
  %vm1716 = vweird.f32 %v1661
  %vm1717 = vweird.f32 %v1711
  %vm1718 = vmor %vm1716, %vm1717
  %v1719 = vsel %vm1718, %v1711, %v1715
  %v1720 = vand.u32 2147483647, %v1661
  %vm1721 = vcmp.eq.f32.partialorder %v1720, 8.507059e+37
  %v1722 = vand.u32 %v1661, 2147483648
  %v1723 = vor.u32 1.1754944e-38, %v1722
  %v1724 = vsel %vm1721, %v1723, %v1719
  %v1725 = vmul.f32 1.0, %v1724
  %v1726 = vrcp.pop %v1662
  %v1727 = vmul.f32 %v1662, %v1726
  %v1728 = vsub.f32 1.0, %v1727
  %v1729 = vmul.f32 %v1726, %v1728
  %v1730 = vadd.f32 %v1726, %v1729
  %vm1731 = vweird.f32 %v1662
  %vm1732 = vweird.f32 %v1726
  %vm1733 = vmor %vm1731, %vm1732
  %v1734 = vsel %vm1733, %v1726, %v1730
  %v1735 = vand.u32 2147483647, %v1662
  %vm1736 = vcmp.eq.f32.partialorder %v1735, 8.507059e+37
  %v1737 = vand.u32 %v1662, 2147483648
  %v1738 = vor.u32 1.1754944e-38, %v1737
  %v1739 = vsel %vm1736, %v1738, %v1734
  %v1740 = vmul.f32 1.0, %v1739
  %v1741 = vrcp.pop %v1663
  %v1742 = vmul.f32 %v1663, %v1741
  %v1743 = vsub.f32 1.0, %v1742
  %v1744 = vmul.f32 %v1741, %v1743
  %v1745 = vadd.f32 %v1741, %v1744
  %vm1746 = vweird.f32 %v1663
  %vm1747 = vweird.f32 %v1741
  %vm1748 = vmor %vm1746, %vm1747
  %v1749 = vsel %vm1748, %v1741, %v1745
  %v1750 = vand.u32 2147483647, %v1663
  %vm1751 = vcmp.eq.f32.partialorder %v1750, 8.507059e+37
  %v1752 = vand.u32 %v1663, 2147483648
  %v1753 = vor.u32 1.1754944e-38, %v1752
  %v1754 = vsel %vm1751, %v1753, %v1749
  %v1755 = vmul.f32 1.0, %v1754
  %v1756 = vrcp.pop %v1664
  %v1757 = vmul.f32 %v1664, %v1756
  %v1758 = vsub.f32 1.0, %v1757
  %v1759 = vmul.f32 %v1756, %v1758
  %v1760 = vadd.f32 %v1756, %v1759
  %vm1761 = vweird.f32 %v1664
  %vm1762 = vweird.f32 %v1756
  %vm1763 = vmor %vm1761, %vm1762
  %v1764 = vsel %vm1763, %v1756, %v1760
  %v1765 = vand.u32 2147483647, %v1664
  %vm1766 = vcmp.eq.f32.partialorder %v1765, 8.507059e+37
  %v1767 = vand.u32 %v1664, 2147483648
  %v1768 = vor.u32 1.1754944e-38, %v1767
  %v1769 = vsel %vm1766, %v1768, %v1764
  %v1770 = vmul.f32 1.0, %v1769
  %v1771 = vrcp.pop %v1665
  %v1772 = vmul.f32 %v1665, %v1771
  %v1773 = vsub.f32 1.0, %v1772
  %v1774 = vmul.f32 %v1771, %v1773
  %v1775 = vadd.f32 %v1771, %v1774
  %vm1776 = vweird.f32 %v1665
  %vm1777 = vweird.f32 %v1771
  %vm1778 = vmor %vm1776, %vm1777
  %v1779 = vsel %vm1778, %v1771, %v1775
  %v1780 = vand.u32 2147483647, %v1665
  %vm1781 = vcmp.eq.f32.partialorder %v1780, 8.507059e+37
  %v1782 = vand.u32 %v1665, 2147483648
  %v1783 = vor.u32 1.1754944e-38, %v1782
  %v1784 = vsel %vm1781, %v1783, %v1779
  %v1785 = vmul.f32 1.0, %v1784
  %v1786 = vmul.f32 %v1594, %v1680
  %v1787 = vmul.f32 %v1623, %v1695
  %v1788 = vmul.f32 %v1597, %v1710
  %v1789 = vmul.f32 %v1626, %v1725
  %v1790 = vmul.f32 %v1600, %v1740
  %v1791 = vmul.f32 %v1629, %v1755
  %v1792 = vmul.f32 %v1603, %v1770
  %v1793 = vmul.f32 %v1632, %v1785
  %v1794 = vadd.f32 %v1786, %v1790
  %v1795 = vadd.f32 %v1787, %v1791
  %v1796 = vadd.f32 %v1788, %v1792
  %v1797 = vadd.f32 %v1789, %v1793
  %v1798 = vld [vmem:[%s55] sm:$0xff]
  %v1799 = vld [vmem:[%s55 + $0x8] sm:$0xff]
  %v1800 = vld [vmem:[%s55 + $0x10] sm:$0xff]
  %v1801 = vld [vmem:[%s55 + $0x18] sm:$0xff]
  %v1802 = vld [vmem:[%s55 + $0x20] sm:$0xff]
  %v1803 = vld [vmem:[%s55 + $0x28] sm:$0xff]
  %v1804 = vld [vmem:[%s55 + $0x30] sm:$0xff]
  %v1805 = vld [vmem:[%s55 + $0x38] sm:$0xff]
  %v1806 = vld [vmem:[%s55 + $0x40] sm:$0xff]
  %v1807 = vld [vmem:[%s55 + $0x48] sm:$0xff]
  %v1808 = vld [vmem:[%s55 + $0x50] sm:$0xff]
  %v1809 = vld [vmem:[%s55 + $0x58] sm:$0xff]
  %v1810 = vld [vmem:[%s55 + $0x60] sm:$0xff]
  %v1811 = vld [vmem:[%s55 + $0x68] sm:$0xff]
  %v1812 = vld [vmem:[%s55 + $0x70] sm:$0xff]
  %v1813 = vld [vmem:[%s55 + $0x78] sm:$0xff]
  %v1814 = vld [vmem:[%s55 + $0x80] sm:$0xff]
  %v1815 = vld [vmem:[%s55 + $0x88] sm:$0xff]
  %v1816 = vld [vmem:[%s55 + $0x90] sm:$0xff]
  %v1817 = vld [vmem:[%s55 + $0x98] sm:$0xff]
  %vm1818 = vcmask 654336
  %v1820 = vsel %vm1818, %v586, 0
  %v1823 = vsel %vm1818, %v601, 0
  %1825 = vmatpush.msra.mxu0 0.0
  %1826 = vmatpush.msra.mxu0 0.0
  %1827 = vmatpush.msra.mxu0 0.0
  %1828 = vmatpush.msra.mxu0 0.0
  %1829 = vmatpush.msra.mxu0 0.0
  %1830 = vmatpush.msra.mxu0 0.0
  %1831 = vmatpush.msra.mxu0 %v1816
  %1832 = vmatpush.msra.mxu0 %v1814
  %1833 = vmatpush.msra.mxu0 %v1812
  %1834 = vmatpush.msra.mxu0 %v1810
  %1835 = vmatpush.msra.mxu0 %v1808
  %1836 = vmatpush.msra.mxu0 %v1806
  %1837 = vmatpush.msra.mxu0 %v1804
  %1838 = vmatpush.msra.mxu0 %v1802
  %1839 = vmatpush.msra.mxu0 %v1800
  %1840 = vmatpush.msra.mxu0 %v1798
  %1841 = vmatmul.f32.gmra.mxu0 %v1820
  %v1842 = vpop.f32.mrf.mxu0
  %v1843 = vadd.f32 0.0, %v1842
  %1844 = vmatmul.f32.gmra.mxu0 %v1823
  %v1845 = vpop.f32.mrf.mxu0
  %v1846 = vadd.f32 0.0, %v1845
  %1847 = vdwg.mxu0
  %1848 = vmatpush.msra.mxu0 0.0
  %1849 = vmatpush.msra.mxu0 0.0
  %1850 = vmatpush.msra.mxu0 0.0
  %1851 = vmatpush.msra.mxu0 0.0
  %1852 = vmatpush.msra.mxu0 0.0
  %1853 = vmatpush.msra.mxu0 0.0
  %1854 = vmatpush.msra.mxu0 %v1817
  %1855 = vmatpush.msra.mxu0 %v1815
  %1856 = vmatpush.msra.mxu0 %v1813
  %1857 = vmatpush.msra.mxu0 %v1811
  %1858 = vmatpush.msra.mxu0 %v1809
  %1859 = vmatpush.msra.mxu0 %v1807
  %1860 = vmatpush.msra.mxu0 %v1805
  %1861 = vmatpush.msra.mxu0 %v1803
  %1862 = vmatpush.msra.mxu0 %v1801
  %1863 = vmatpush.msra.mxu0 %v1799
  %1864 = vmatmul.f32.gmra.mxu0 %v1820
  %v1865 = vpop.f32.mrf.mxu0
  %v1866 = vadd.f32 0.0, %v1865
  %1867 = vmatmul.f32.gmra.mxu0 %v1823
  %v1868 = vpop.f32.mrf.mxu0
  %v1869 = vadd.f32 0.0, %v1868
  %1870 = vdwg.mxu0
  %v1871 = vld [vmem:[%s57] sm:$0xff]
  %v1872 = vld [vmem:[%s57 + $0x8] sm:$0xff]
  %v1873 = vld [vmem:[%s57 + $0x10] sm:$0xff]
  %v1874 = vld [vmem:[%s57 + $0x18] sm:$0xff]
  %v1875 = vld [vmem:[%s57 + $0x20] sm:$0xff]
  %v1876 = vld [vmem:[%s57 + $0x28] sm:$0xff]
  %v1877 = vld [vmem:[%s57 + $0x30] sm:$0xff]
  %v1878 = vld [vmem:[%s57 + $0x38] sm:$0xff]
  %v1879 = vld [vmem:[%s57 + $0x40] sm:$0xff]
  %v1880 = vld [vmem:[%s57 + $0x48] sm:$0xff]
  %v1881 = vld [vmem:[%s57 + $0x50] sm:$0xff]
  %v1882 = vld [vmem:[%s57 + $0x58] sm:$0xff]
  %v1883 = vld [vmem:[%s57 + $0x60] sm:$0xff]
  %v1884 = vld [vmem:[%s57 + $0x68] sm:$0xff]
  %v1885 = vld [vmem:[%s57 + $0x70] sm:$0xff]
  %v1886 = vld [vmem:[%s57 + $0x78] sm:$0xff]
  %v1887 = vld [vmem:[%s57 + $0x80] sm:$0xff]
  %v1888 = vld [vmem:[%s57 + $0x88] sm:$0xff]
  %v1889 = vld [vmem:[%s57 + $0x90] sm:$0xff]
  %v1890 = vld [vmem:[%s57 + $0x98] sm:$0xff]
  %1891 = vmatpush.msra.mxu0 0.0
  %1892 = vmatpush.msra.mxu0 0.0
  %1893 = vmatpush.msra.mxu0 0.0
  %1894 = vmatpush.msra.mxu0 0.0
  %1895 = vmatpush.msra.mxu0 0.0
  %1896 = vmatpush.msra.mxu0 0.0
  %1897 = vmatpush.msra.mxu0 %v1889
  %1898 = vmatpush.msra.mxu0 %v1887
  %1899 = vmatpush.msra.mxu0 %v1885
  %1900 = vmatpush.msra.mxu0 %v1883
  %1901 = vmatpush.msra.mxu0 %v1881
  %1902 = vmatpush.msra.mxu0 %v1879
  %1903 = vmatpush.msra.mxu0 %v1877
  %1904 = vmatpush.msra.mxu0 %v1875
  %1905 = vmatpush.msra.mxu0 %v1873
  %1906 = vmatpush.msra.mxu0 %v1871
  %1907 = vmatmul.f32.gmra.mxu0 %v1820
  %v1908 = vpop.f32.mrf.mxu0
  %v1909 = vadd.f32 0.0, %v1908
  %1910 = vmatmul.f32.gmra.mxu0 %v1823
  %v1911 = vpop.f32.mrf.mxu0
  %v1912 = vadd.f32 0.0, %v1911
  %1913 = vdwg.mxu0
  %1914 = vmatpush.msra.mxu0 0.0
  %1915 = vmatpush.msra.mxu0 0.0
  %1916 = vmatpush.msra.mxu0 0.0
  %1917 = vmatpush.msra.mxu0 0.0
  %1918 = vmatpush.msra.mxu0 0.0
  %1919 = vmatpush.msra.mxu0 0.0
  %1920 = vmatpush.msra.mxu0 %v1890
  %1921 = vmatpush.msra.mxu0 %v1888
  %1922 = vmatpush.msra.mxu0 %v1886
  %1923 = vmatpush.msra.mxu0 %v1884
  %1924 = vmatpush.msra.mxu0 %v1882
  %1925 = vmatpush.msra.mxu0 %v1880
  %1926 = vmatpush.msra.mxu0 %v1878
  %1927 = vmatpush.msra.mxu0 %v1876
  %1928 = vmatpush.msra.mxu0 %v1874
  %1929 = vmatpush.msra.mxu0 %v1872
  %1930 = vmatmul.f32.gmra.mxu0 %v1820
  %v1931 = vpop.f32.mrf.mxu0
  %v1932 = vadd.f32 0.0, %v1931
  %1933 = vmatmul.f32.gmra.mxu0 %v1823
  %v1934 = vpop.f32.mrf.mxu0
  %v1935 = vadd.f32 0.0, %v1934
  %1936 = vdwg.mxu0
  %v1937 = vld [vmem:[%s59] sm:$0xff]
  %v1938 = vld [vmem:[%s59 + $0x8] sm:$0xff]
  %v1939 = vld [vmem:[%s59 + $0x10] sm:$0xff]
  %v1940 = vld [vmem:[%s59 + $0x18] sm:$0xff]
  %v1941 = vld [vmem:[%s59 + $0x20] sm:$0xff]
  %v1942 = vld [vmem:[%s59 + $0x28] sm:$0xff]
  %v1943 = vld [vmem:[%s59 + $0x30] sm:$0xff]
  %v1944 = vld [vmem:[%s59 + $0x38] sm:$0xff]
  %v1945 = vld [vmem:[%s59 + $0x40] sm:$0xff]
  %v1946 = vld [vmem:[%s59 + $0x48] sm:$0xff]
  %v1947 = vld [vmem:[%s59 + $0x50] sm:$0xff]
  %v1948 = vld [vmem:[%s59 + $0x58] sm:$0xff]
  %v1949 = vld [vmem:[%s59 + $0x60] sm:$0xff]
  %v1950 = vld [vmem:[%s59 + $0x68] sm:$0xff]
  %v1951 = vld [vmem:[%s59 + $0x70] sm:$0xff]
  %v1952 = vld [vmem:[%s59 + $0x78] sm:$0xff]
  %v1953 = vld [vmem:[%s59 + $0x80] sm:$0xff]
  %v1954 = vld [vmem:[%s59 + $0x88] sm:$0xff]
  %v1955 = vld [vmem:[%s59 + $0x90] sm:$0xff]
  %v1956 = vld [vmem:[%s59 + $0x98] sm:$0xff]
  %1957 = vmatpush.msra.mxu0 0.0
  %1958 = vmatpush.msra.mxu0 0.0
  %1959 = vmatpush.msra.mxu0 0.0
  %1960 = vmatpush.msra.mxu0 0.0
  %1961 = vmatpush.msra.mxu0 0.0
  %1962 = vmatpush.msra.mxu0 0.0
  %1963 = vmatpush.msra.mxu0 %v1955
  %1964 = vmatpush.msra.mxu0 %v1953
  %1965 = vmatpush.msra.mxu0 %v1951
  %1966 = vmatpush.msra.mxu0 %v1949
  %1967 = vmatpush.msra.mxu0 %v1947
  %1968 = vmatpush.msra.mxu0 %v1945
  %1969 = vmatpush.msra.mxu0 %v1943
  %1970 = vmatpush.msra.mxu0 %v1941
  %1971 = vmatpush.msra.mxu0 %v1939
  %1972 = vmatpush.msra.mxu0 %v1937
  %1973 = vmatmul.f32.gmra.mxu0 %v1820
  %v1974 = vpop.f32.mrf.mxu0
  %v1975 = vadd.f32 0.0, %v1974
  %1976 = vmatmul.f32.gmra.mxu0 %v1823
  %v1977 = vpop.f32.mrf.mxu0
  %v1978 = vadd.f32 0.0, %v1977
  %1979 = vdwg.mxu0
  %1980 = vmatpush.msra.mxu0 0.0
  %1981 = vmatpush.msra.mxu0 0.0
  %1982 = vmatpush.msra.mxu0 0.0
  %1983 = vmatpush.msra.mxu0 0.0
  %1984 = vmatpush.msra.mxu0 0.0
  %1985 = vmatpush.msra.mxu0 0.0
  %1986 = vmatpush.msra.mxu0 %v1956
  %1987 = vmatpush.msra.mxu0 %v1954
  %1988 = vmatpush.msra.mxu0 %v1952
  %1989 = vmatpush.msra.mxu0 %v1950
  %1990 = vmatpush.msra.mxu0 %v1948
  %1991 = vmatpush.msra.mxu0 %v1946
  %1992 = vmatpush.msra.mxu0 %v1944
  %1993 = vmatpush.msra.mxu0 %v1942
  %1994 = vmatpush.msra.mxu0 %v1940
  %1995 = vmatpush.msra.mxu0 %v1938
  %1996 = vmatmul.f32.gmra.mxu0 %v1820
  %v1997 = vpop.f32.mrf.mxu0
  %v1998 = vadd.f32 0.0, %v1997
  %1999 = vmatmul.f32.gmra.mxu0 %v1823
  %v2000 = vpop.f32.mrf.mxu0
  %v2001 = vadd.f32 0.0, %v2000
  %2002 = vdwg.mxu0
  %v2003 = vmul.f32 %v1356, %v1843
  %v2004 = vmul.f32 %v1357, %v1866
  %v2005 = vmul.f32 %v1358, %v1846
  %v2006 = vmul.f32 %v1359, %v1869
  %v2007 = vmul.f32 %v1360, %v1909
  %v2008 = vmul.f32 %v1361, %v1932
  %v2009 = vmul.f32 %v1362, %v1912
  %v2010 = vmul.f32 %v1363, %v1935
  %v2011 = vadd.f32 %v2003, %v2007
  %v2012 = vadd.f32 %v2004, %v2008
  %v2013 = vadd.f32 %v2005, %v2009
  %v2014 = vadd.f32 %v2006, %v2010
  %v2015 = vmul.f32 %v1975, %v1794
  %v2016 = vmul.f32 %v1998, %v1795
  %v2017 = vmul.f32 %v1978, %v1796
  %v2018 = vmul.f32 %v2001, %v1797
  %v2019 = vadd.f32 %v2011, %v2015
  %v2020 = vadd.f32 %v2012, %v2016
  %v2021 = vadd.f32 %v2013, %v2017
  %v2022 = vadd.f32 %v2014, %v2018
  %v2023 = vld [vmem:[%s61] sm:$0xff]
  %v2024 = vld [vmem:[%s61 + $0x8] sm:$0xff]
  %v2025 = vld [vmem:[%s61 + $0x10] sm:$0xff]
  %v2026 = vld [vmem:[%s61 + $0x18] sm:$0xff]
  %v2027 = vld [vmem:[%s61 + $0x20] sm:$0xff]
  %v2028 = vld [vmem:[%s61 + $0x28] sm:$0xff]
  %v2029 = vld [vmem:[%s61 + $0x30] sm:$0xff]
  %v2030 = vld [vmem:[%s61 + $0x38] sm:$0xff]
  %v2031 = vld [vmem:[%s61 + $0x40] sm:$0xff]
  %v2032 = vld [vmem:[%s61 + $0x48] sm:$0xff]
  %v2033 = vld [vmem:[%s61 + $0x50] sm:$0xff]
  %v2034 = vld [vmem:[%s61 + $0x58] sm:$0xff]
  %v2035 = vld [vmem:[%s61 + $0x60] sm:$0xff]
  %v2036 = vld [vmem:[%s61 + $0x68] sm:$0xff]
  %v2037 = vld [vmem:[%s61 + $0x70] sm:$0xff]
  %v2038 = vld [vmem:[%s61 + $0x78] sm:$0xff]
  %v2039 = vld [vmem:[%s61 + $0x80] sm:$0xff]
  %v2040 = vld [vmem:[%s61 + $0x88] sm:$0xff]
  %v2041 = vld [vmem:[%s61 + $0x90] sm:$0xff]
  %v2042 = vld [vmem:[%s61 + $0x98] sm:$0xff]
  %v2043 = vld [vmem:[%s61 + $0xa0] sm:$0xff]
  %v2044 = vld [vmem:[%s61 + $0xa8] sm:$0xff]
  %v2045 = vld [vmem:[%s61 + $0xb0] sm:$0xff]
  %v2046 = vld [vmem:[%s61 + $0xb8] sm:$0xff]
  %v2047 = vld [vmem:[%s61 + $0xc0] sm:$0xff]
  %v2048 = vld [vmem:[%s61 + $0xc8] sm:$0xff]
  %v2049 = vld [vmem:[%s61 + $0xd0] sm:$0xff]
  %v2050 = vld [vmem:[%s61 + $0xd8] sm:$0xff]
  %v2051 = vld [vmem:[%s61 + $0xe0] sm:$0xff]
  %v2052 = vld [vmem:[%s61 + $0xe8] sm:$0xff]
  %v2053 = vld [vmem:[%s61 + $0xf0] sm:$0xff]
  %v2054 = vld [vmem:[%s61 + $0xf8] sm:$0xff]
  %v2055 = vld [vmem:[%s61 + $0x100] sm:$0xff]
  %v2056 = vld [vmem:[%s61 + $0x108] sm:$0xff]
  %v2057 = vld [vmem:[%s61 + $0x110] sm:$0xff]
  %v2058 = vld [vmem:[%s61 + $0x118] sm:$0xff]
  %v2059 = vld [vmem:[%s61 + $0x120] sm:$0xff]
  %v2060 = vld [vmem:[%s61 + $0x128] sm:$0xff]
  %v2061 = vld [vmem:[%s61 + $0x130] sm:$0xff]
  %v2062 = vld [vmem:[%s61 + $0x138] sm:$0xff]
  %v2064 = vsel %vm463, %v2020, 0
  %v2067 = vsel %vm463, %v2022, 0
  %2069 = vmatpush.msra.mxu0 %v2053
  %2070 = vmatpush.msra.mxu0 %v2051
  %2071 = vmatpush.msra.mxu0 %v2049
  %2072 = vmatpush.msra.mxu0 %v2047
  %2073 = vmatpush.msra.mxu0 %v2045
  %2074 = vmatpush.msra.mxu0 %v2043
  %2075 = vmatpush.msra.mxu0 %v2041
  %2076 = vmatpush.msra.mxu0 %v2039
  %2077 = vmatpush.msra.mxu0 %v2037
  %2078 = vmatpush.msra.mxu0 %v2035
  %2079 = vmatpush.msra.mxu0 %v2033
  %2080 = vmatpush.msra.mxu0 %v2031
  %2081 = vmatpush.msra.mxu0 %v2029
  %2082 = vmatpush.msra.mxu0 %v2027
  %2083 = vmatpush.msra.mxu0 %v2025
  %2084 = vmatpush.msra.mxu0 %v2023
  %2085 = vmatmul.f32.gmra.mxu0 %v2019
  %v2086 = vpop.f32.mrf.mxu0
  %v2087 = vadd.f32 0.0, %v2086
  %2088 = vmatmul.f32.gmra.mxu0 %v2021
  %v2089 = vpop.f32.mrf.mxu0
  %v2090 = vadd.f32 0.0, %v2089
  %2091 = vdwg.mxu0
  %2092 = vmatpush.msra.mxu0 0.0
  %2093 = vmatpush.msra.mxu0 0.0
  %2094 = vmatpush.msra.mxu0 0.0
  %2095 = vmatpush.msra.mxu0 0.0
  %2096 = vmatpush.msra.mxu0 0.0
  %2097 = vmatpush.msra.mxu0 0.0
  %2098 = vmatpush.msra.mxu0 0.0
  %2099 = vmatpush.msra.mxu0 0.0
  %2100 = vmatpush.msra.mxu0 0.0
  %2101 = vmatpush.msra.mxu0 0.0
  %2102 = vmatpush.msra.mxu0 0.0
  %2103 = vmatpush.msra.mxu0 0.0
  %2104 = vmatpush.msra.mxu0 %v2061
  %2105 = vmatpush.msra.mxu0 %v2059
  %2106 = vmatpush.msra.mxu0 %v2057
  %2107 = vmatpush.msra.mxu0 %v2055
  %2108 = vmatmul.f32.gmra.mxu0 %v2064
  %v2109 = vpop.f32.mrf.mxu0
  %v2110 = vadd.f32 %v2087, %v2109
  %2111 = vmatmul.f32.gmra.mxu0 %v2067
  %v2112 = vpop.f32.mrf.mxu0
  %v2113 = vadd.f32 %v2090, %v2112
  %2114 = vdwg.mxu0
  %2115 = vmatpush.msra.mxu0 %v2054
  %2116 = vmatpush.msra.mxu0 %v2052
  %2117 = vmatpush.msra.mxu0 %v2050
  %2118 = vmatpush.msra.mxu0 %v2048
  %2119 = vmatpush.msra.mxu0 %v2046
  %2120 = vmatpush.msra.mxu0 %v2044
  %2121 = vmatpush.msra.mxu0 %v2042
  %2122 = vmatpush.msra.mxu0 %v2040
  %2123 = vmatpush.msra.mxu0 %v2038
  %2124 = vmatpush.msra.mxu0 %v2036
  %2125 = vmatpush.msra.mxu0 %v2034
  %2126 = vmatpush.msra.mxu0 %v2032
  %2127 = vmatpush.msra.mxu0 %v2030
  %2128 = vmatpush.msra.mxu0 %v2028
  %2129 = vmatpush.msra.mxu0 %v2026
  %2130 = vmatpush.msra.mxu0 %v2024
  %2131 = vmatmul.f32.gmra.mxu0 %v2019
  %v2132 = vpop.f32.mrf.mxu0
  %v2133 = vadd.f32 0.0, %v2132
  %2134 = vmatmul.f32.gmra.mxu0 %v2021
  %v2135 = vpop.f32.mrf.mxu0
  %v2136 = vadd.f32 0.0, %v2135
  %2137 = vdwg.mxu0
  %2138 = vmatpush.msra.mxu0 0.0
  %2139 = vmatpush.msra.mxu0 0.0
  %2140 = vmatpush.msra.mxu0 0.0
  %2141 = vmatpush.msra.mxu0 0.0
  %2142 = vmatpush.msra.mxu0 0.0
  %2143 = vmatpush.msra.mxu0 0.0
  %2144 = vmatpush.msra.mxu0 0.0
  %2145 = vmatpush.msra.mxu0 0.0
  %2146 = vmatpush.msra.mxu0 0.0
  %2147 = vmatpush.msra.mxu0 0.0
  %2148 = vmatpush.msra.mxu0 0.0
  %2149 = vmatpush.msra.mxu0 0.0
  %2150 = vmatpush.msra.mxu0 %v2062
  %2151 = vmatpush.msra.mxu0 %v2060
  %2152 = vmatpush.msra.mxu0 %v2058
  %2153 = vmatpush.msra.mxu0 %v2056
  %2154 = vmatmul.f32.gmra.mxu0 %v2064
  %v2155 = vpop.f32.mrf.mxu0
  %v2156 = vadd.f32 %v2133, %v2155
  %2157 = vmatmul.f32.gmra.mxu0 %v2067
  %v2158 = vpop.f32.mrf.mxu0
  %v2159 = vadd.f32 %v2136, %v2158
  %2160 = vdwg.mxu0
  %2161 = vst [vmem:[%s63] sm:$0xff] %v2110
  %2162 = vst [vmem:[%s63 + $0x8] sm:$0xff] %v2156
  %2163 = vst [vmem:[%s63 + $0x10] sm:$0xff] %v2113
  %2164 = vst [vmem:[%s63 + $0x18] sm:$0xff] %v2159
  // Predicated region
  $region126: #{edge_block_forward.4} parent=0 // pred_check
    _
  $region127: #{edge_block_forward.4} parent=0 // pred_check_branch
    %2166 = sbr.rel (0) target = $region129
  $region128: #{edge_block_forward.4} parent=0 // pred_region
    _
  $region129: #{edge_block_forward.4} parent=0 // pred_fallthru
    _
  // Predicated region
  $region130: #{edge_block_forward.4} parent=0 // pred_check
    _
  $region131: #{edge_block_forward.4} parent=0 // pred_check_branch
    %2168 = sbr.rel (0) target = $region133
  $region132: #{edge_block_forward.4} parent=0 // pred_region
    _
  $region133: #{edge_block_forward.4} parent=0 // pred_fallthru
    _
  // Predicated region
  $region134: #{edge_block_forward.4} parent=0 // pred_check
    _
  $region135: #{edge_block_forward.4} parent=0 // pred_check_branch
    %2170 = sbr.rel (0) target = $region137
  $region136: #{edge_block_forward.4} parent=0 // pred_region
    _
  $region137: #{edge_block_forward.4} parent=0 // pred_fallthru
    _
  // Predicated region
  $region138: #{edge_block_forward.4} parent=0 // pred_check
    _
  $region139: #{edge_block_forward.4} parent=0 // pred_check_branch
    %2172 = sbr.rel (0) target = $region141
  $region140: #{edge_block_forward.4} parent=0 // pred_region
    _
  $region141: #{edge_block_forward.4} parent=0 // pred_fallthru
    _

// kernel: edge_block_forward.5
$region0: #{edge_block_forward.5}
  #allocation0 [shape = 'u32[]', space=smem, size = 0x4, offset = 0x4, fixed_abs, tag = 'smem constant byte address 0x4 - core index']
  #allocation1 [shape = 'u32[72,128]{1,0:T(1,128)}', space=vmem, size = 0x9000, scoped, tag = 'internal scratch']
  %s0 = inlined_call_operand.vmem [shape: f32[192,128], index: 0, kind: input, shape index: {}]
  %s1 = inlined_call_operand.vmem [shape: f32[6,8], index: 1, kind: input, shape index: {}]
  %s2 = inlined_call_operand.vmem [shape: f32[6,16], index: 2, kind: input, shape index: {}]
  %s3 = inlined_call_operand.vmem [shape: f32[128,64], index: 3, kind: input, shape index: {}]
  %s4 = inlined_call_operand.vmem [shape: f32[1,64], index: 4, kind: input, shape index: {}]
  %s5 = inlined_call_operand.vmem [shape: f32[64,32], index: 5, kind: input, shape index: {}]
  %s6 = inlined_call_operand.vmem [shape: f32[1,32], index: 6, kind: input, shape index: {}]
  %s7 = inlined_call_operand.vmem [shape: f32[32,2], index: 7, kind: input, shape index: {}]
  %s8 = inlined_call_operand.vmem [shape: f32[1,2], index: 8, kind: input, shape index: {}]
  %s9 = inlined_call_operand.vmem [shape: f32[2,32], index: 9, kind: input, shape index: {}]
  %s10 = inlined_call_operand.vmem [shape: f32[1,32], index: 10, kind: input, shape index: {}]
  %s11 = inlined_call_operand.vmem [shape: f32[32,16], index: 11, kind: input, shape index: {}]
  %s12 = inlined_call_operand.vmem [shape: f32[1,16], index: 12, kind: input, shape index: {}]
  %s13 = inlined_call_operand.vmem [shape: f32[6,192], index: 13, kind: input, shape index: {}]
  %s14 = inlined_call_operand.vmem [shape: f32[192,6], index: 14, kind: input, shape index: {}]
  %s15 = inlined_call_operand.vmem [shape: f32[96,192], index: 15, kind: input, shape index: {}]
  %s16 = inlined_call_operand.vmem [shape: f32[16,32], index: 16, kind: input, shape index: {}]
  %s17 = inlined_call_operand.vmem [shape: f32[8,16], index: 17, kind: input, shape index: {}]
  %s18 = inlined_call_operand.vmem [shape: f32[1,16], index: 18, kind: input, shape index: {}]
  %s19 = inlined_call_operand.hbm [shape: f32[96,32], index: 19, kind: output, shape index: {0}]
  %s20 = inlined_call_operand.hbm [shape: f32[6,16], index: 20, kind: output, shape index: {1}]
  %21 = xla_tuple %s19, %s20
  %s22 = sld [smem:[#allocation0]]
  $region94: #{edge_block_forward.5} parent=0
    _
  %s24 = ssub.s32 1, %s22
  %s25 = scalar_select 0, %s24, %s22
  $region1: #{edge_block_forward.5} parent=0
    #allocation2 [shape = 'u8[49152]{0}', space=vmem, size = 0xc000, scoped, tag = 'output window, operand 0, single buffered']
    #allocation3 [shape = 's32[1]{0}', space=sflag, size = 0x4, scoped, tag = 'scoped memory for edge_block_forward.5']
    #allocation4 [shape = 'u8[4096]{0}', space=vmem, size = 0x1000, scoped, tag = 'output window, operand 1, single buffered']
    #allocation5 [shape = 's32[1]{0}', space=sflag, size = 0x4, scoped, tag = 'scoped memory for edge_block_forward.5']
    %26 = vsyncpa [#allocation3], 0
    %27 = vsyncpa [#allocation5], 0
    // Predicated region
    $region2: #{edge_block_forward.5} parent=1 // pred_check
      _
    $region3: #{edge_block_forward.5} parent=1 // pred_check_branch
      %29 = sbr.rel (0) target = $region5
    $region4: #{edge_block_forward.5} parent=1 // pred_region
      _
    $region5: #{edge_block_forward.5} parent=1 // pred_fallthru
      _
    // Predicated region
    $region6: #{edge_block_forward.5} parent=1 // pred_check
      _
    $region7: #{edge_block_forward.5} parent=1 // pred_check_branch
      %31 = sbr.rel (0) target = $region9
    $region8: #{edge_block_forward.5} parent=1 // pred_region
      _
    $region9: #{edge_block_forward.5} parent=1 // pred_fallthru
      _
    // Predicated region
    $region10: #{edge_block_forward.5} parent=1 // pred_check
      _
    $region11: #{edge_block_forward.5} parent=1 // pred_check_branch
      %33 = sbr.rel (0) target = $region13
    $region12: #{edge_block_forward.5} parent=1 // pred_region
      _
    $region13: #{edge_block_forward.5} parent=1 // pred_fallthru
      _
    // Predicated region
    $region14: #{edge_block_forward.5} parent=1 // pred_check
      _
    $region15: #{edge_block_forward.5} parent=1 // pred_check_branch
      %35 = sbr.rel (0) target = $region17
    $region16: #{edge_block_forward.5} parent=1 // pred_region
      _
    $region17: #{edge_block_forward.5} parent=1 // pred_fallthru
      _
    // Predicated region
    $region18: #{edge_block_forward.5} parent=1 // pred_check
      _
    $region19: #{edge_block_forward.5} parent=1 // pred_check_branch
      %37 = sbr.rel (0) target = $region21
    $region20: #{edge_block_forward.5} parent=1 // pred_region
      _
    $region21: #{edge_block_forward.5} parent=1 // pred_fallthru
      _
    // Predicated region
    $region22: #{edge_block_forward.5} parent=1 // pred_check
      _
    $region23: #{edge_block_forward.5} parent=1 // pred_check_branch
      %39 = sbr.rel (0) target = $region25
    $region24: #{edge_block_forward.5} parent=1 // pred_region
      _
    $region25: #{edge_block_forward.5} parent=1 // pred_fallthru
      _
    // Predicated region
    $region26: #{edge_block_forward.5} parent=1 // pred_check
      _
    $region27: #{edge_block_forward.5} parent=1 // pred_check_branch
      %41 = sbr.rel (0) target = $region29
    $region28: #{edge_block_forward.5} parent=1 // pred_region
      _
    $region29: #{edge_block_forward.5} parent=1 // pred_fallthru
      _
    // Predicated region
    $region30: #{edge_block_forward.5} parent=1 // pred_check
      _
    $region31: #{edge_block_forward.5} parent=1 // pred_check_branch
      %43 = sbr.rel (0) target = $region33
    $region32: #{edge_block_forward.5} parent=1 // pred_region
      _
    $region33: #{edge_block_forward.5} parent=1 // pred_fallthru
      _
    // Predicated region
    $region34: #{edge_block_forward.5} parent=1 // pred_check
      _
    $region35: #{edge_block_forward.5} parent=1 // pred_check_branch
      %45 = sbr.rel (0) target = $region37
    $region36: #{edge_block_forward.5} parent=1 // pred_region
      _
    $region37: #{edge_block_forward.5} parent=1 // pred_fallthru
      _
    // Predicated region
    $region38: #{edge_block_forward.5} parent=1 // pred_check
      _
    $region39: #{edge_block_forward.5} parent=1 // pred_check_branch
      %47 = sbr.rel (0) target = $region41
    $region40: #{edge_block_forward.5} parent=1 // pred_region
      _
    $region41: #{edge_block_forward.5} parent=1 // pred_fallthru
      _
    // Predicated region
    $region42: #{edge_block_forward.5} parent=1 // pred_check
      _
    $region43: #{edge_block_forward.5} parent=1 // pred_check_branch
      %49 = sbr.rel (0) target = $region45
    $region44: #{edge_block_forward.5} parent=1 // pred_region
      _
    $region45: #{edge_block_forward.5} parent=1 // pred_fallthru
      _
    // Predicated region
    $region46: #{edge_block_forward.5} parent=1 // pred_check
      _
    $region47: #{edge_block_forward.5} parent=1 // pred_check_branch
      %51 = sbr.rel (0) target = $region49
    $region48: #{edge_block_forward.5} parent=1 // pred_region
      _
    $region49: #{edge_block_forward.5} parent=1 // pred_fallthru
      _
    // Predicated region
    $region50: #{edge_block_forward.5} parent=1 // pred_check
      _
    $region51: #{edge_block_forward.5} parent=1 // pred_check_branch
      %53 = sbr.rel (0) target = $region53
    $region52: #{edge_block_forward.5} parent=1 // pred_region
      _
    $region53: #{edge_block_forward.5} parent=1 // pred_fallthru
      _
    // Predicated region
    $region54: #{edge_block_forward.5} parent=1 // pred_check
      _
    $region55: #{edge_block_forward.5} parent=1 // pred_check_branch
      %55 = sbr.rel (0) target = $region57
    $region56: #{edge_block_forward.5} parent=1 // pred_region
      _
    $region57: #{edge_block_forward.5} parent=1 // pred_fallthru
      _
    // Predicated region
    $region58: #{edge_block_forward.5} parent=1 // pred_check
      _
    $region59: #{edge_block_forward.5} parent=1 // pred_check_branch
      %57 = sbr.rel (0) target = $region61
    $region60: #{edge_block_forward.5} parent=1 // pred_region
      _
    $region61: #{edge_block_forward.5} parent=1 // pred_fallthru
      _
    // Predicated region
    $region62: #{edge_block_forward.5} parent=1 // pred_check
      _
    $region63: #{edge_block_forward.5} parent=1 // pred_check_branch
      %59 = sbr.rel (0) target = $region65
    $region64: #{edge_block_forward.5} parent=1 // pred_region
      _
    $region65: #{edge_block_forward.5} parent=1 // pred_fallthru
      _
    // Predicated region
    $region66: #{edge_block_forward.5} parent=1 // pred_check
      _
    $region67: #{edge_block_forward.5} parent=1 // pred_check_branch
      %61 = sbr.rel (0) target = $region69
    $region68: #{edge_block_forward.5} parent=1 // pred_region
      _
    $region69: #{edge_block_forward.5} parent=1 // pred_fallthru
      _
    // Predicated region
    $region70: #{edge_block_forward.5} parent=1 // pred_check
      _
    $region71: #{edge_block_forward.5} parent=1 // pred_check_branch
      %63 = sbr.rel (0) target = $region73
    $region72: #{edge_block_forward.5} parent=1 // pred_region
      _
    $region73: #{edge_block_forward.5} parent=1 // pred_fallthru
      _
    // Predicated region
    $region74: #{edge_block_forward.5} parent=1 // pred_check
      _
    $region75: #{edge_block_forward.5} parent=1 // pred_check_branch
      %65 = sbr.rel (0) target = $region77
    $region76: #{edge_block_forward.5} parent=1 // pred_region
      _
    $region77: #{edge_block_forward.5} parent=1 // pred_fallthru
      _
    %v66 = vld [vmem:[%s0] sm:$0xff]
    %v67 = vld [vmem:[%s0 + $0x8] sm:$0xff]
    %v68 = vld [vmem:[%s0 + $0x10] sm:$0xff]
    %v69 = vld [vmem:[%s0 + $0x18] sm:$0xff]
    %v70 = vld [vmem:[%s0 + $0x20] sm:$0xff]
    %v71 = vld [vmem:[%s0 + $0x28] sm:$0xff]
    %v72 = vld [vmem:[%s0 + $0x30] sm:$0xff]
    %v73 = vld [vmem:[%s0 + $0x38] sm:$0xff]
    %v74 = vld [vmem:[%s0 + $0x40] sm:$0xff]
    %v75 = vld [vmem:[%s0 + $0x48] sm:$0xff]
    %v76 = vld [vmem:[%s0 + $0x50] sm:$0xff]
    %v77 = vld [vmem:[%s0 + $0x58] sm:$0xff]
    %v78 = vld [vmem:[%s0 + $0x60] sm:$0xff]
    %v79 = vld [vmem:[%s0 + $0x68] sm:$0xff]
    %v80 = vld [vmem:[%s0 + $0x70] sm:$0xff]
    %v81 = vld [vmem:[%s0 + $0x78] sm:$0xff]
    %v82 = vld [vmem:[%s0 + $0x80] sm:$0xff]
    %v83 = vld [vmem:[%s0 + $0x88] sm:$0xff]
    %v84 = vld [vmem:[%s0 + $0x90] sm:$0xff]
    %v85 = vld [vmem:[%s0 + $0x98] sm:$0xff]
    %v86 = vld [vmem:[%s0 + $0xa0] sm:$0xff]
    %v87 = vld [vmem:[%s0 + $0xa8] sm:$0xff]
    %v88 = vld [vmem:[%s0 + $0xb0] sm:$0xff]
    %v89 = vld [vmem:[%s0 + $0xb8] sm:$0xff]
    %v90 = vld [vmem:[%s3] sm:$0xff]
    %v91 = vld [vmem:[%s3 + $0x8] sm:$0xff]
    %v92 = vld [vmem:[%s3 + $0x10] sm:$0xff]
    %v93 = vld [vmem:[%s3 + $0x18] sm:$0xff]
    %v94 = vld [vmem:[%s3 + $0x20] sm:$0xff]
    %v95 = vld [vmem:[%s3 + $0x28] sm:$0xff]
    %v96 = vld [vmem:[%s3 + $0x30] sm:$0xff]
    %v97 = vld [vmem:[%s3 + $0x38] sm:$0xff]
    %v98 = vld [vmem:[%s3 + $0x40] sm:$0xff]
    %v99 = vld [vmem:[%s3 + $0x48] sm:$0xff]
    %v100 = vld [vmem:[%s3 + $0x50] sm:$0xff]
    %v101 = vld [vmem:[%s3 + $0x58] sm:$0xff]
    %v102 = vld [vmem:[%s3 + $0x60] sm:$0xff]
    %v103 = vld [vmem:[%s3 + $0x68] sm:$0xff]
    %v104 = vld [vmem:[%s3 + $0x70] sm:$0xff]
    %v105 = vld [vmem:[%s3 + $0x78] sm:$0xff]
    %v106 = vld [vmem:[%s4] sm:$0x1]
    %v108 = vperm.slane %v106, 0
    %110 = vmatpush.msra.mxu0 %v105
    %111 = vmatpush.msra.mxu0 %v104
    %112 = vmatpush.msra.mxu0 %v103
    %113 = vmatpush.msra.mxu0 %v102
    %114 = vmatpush.msra.mxu0 %v101
    %115 = vmatpush.msra.mxu0 %v100
    %116 = vmatpush.msra.mxu0 %v99
    %117 = vmatpush.msra.mxu0 %v98
    %118 = vmatpush.msra.mxu0 %v97
    %119 = vmatpush.msra.mxu0 %v96
    %120 = vmatpush.msra.mxu0 %v95
    %121 = vmatpush.msra.mxu0 %v94
    %122 = vmatpush.msra.mxu0 %v93
    %123 = vmatpush.msra.mxu0 %v92
    %124 = vmatpush.msra.mxu0 %v91
    %125 = vmatpush.msra.mxu0 %v90
    %126 = vmatmul.f32.gmra.mxu0 %v66
    %v127 = vpop.f32.mrf.mxu0
    %v128 = vadd.f32 %v108, %v127
    %129 = vmatmul.f32.gmra.mxu0 %v67
    %v130 = vpop.f32.mrf.mxu0
    %v131 = vadd.f32 %v108, %v130
    %132 = vmatmul.f32.gmra.mxu0 %v68
    %v133 = vpop.f32.mrf.mxu0
    %v134 = vadd.f32 %v108, %v133
    %135 = vmatmul.f32.gmra.mxu0 %v69
    %v136 = vpop.f32.mrf.mxu0
    %v137 = vadd.f32 %v108, %v136
    %138 = vmatmul.f32.gmra.mxu0 %v70
    %v139 = vpop.f32.mrf.mxu0
    %v140 = vadd.f32 %v108, %v139
    %141 = vmatmul.f32.gmra.mxu0 %v71
    %v142 = vpop.f32.mrf.mxu0
    %v143 = vadd.f32 %v108, %v142
    %144 = vmatmul.f32.gmra.mxu0 %v72
    %v145 = vpop.f32.mrf.mxu0
    %v146 = vadd.f32 %v108, %v145
    %147 = vmatmul.f32.gmra.mxu0 %v73
    %v148 = vpop.f32.mrf.mxu0
    %v149 = vadd.f32 %v108, %v148
    %150 = vmatmul.f32.gmra.mxu0 %v74
    %v151 = vpop.f32.mrf.mxu0
    %v152 = vadd.f32 %v108, %v151
    %153 = vmatmul.f32.gmra.mxu0 %v75
    %v154 = vpop.f32.mrf.mxu0
    %v155 = vadd.f32 %v108, %v154
    %156 = vmatmul.f32.gmra.mxu0 %v76
    %v157 = vpop.f32.mrf.mxu0
    %v158 = vadd.f32 %v108, %v157
    %159 = vmatmul.f32.gmra.mxu0 %v77
    %v160 = vpop.f32.mrf.mxu0
    %v161 = vadd.f32 %v108, %v160
    %162 = vmatmul.f32.gmra.mxu0 %v78
    %v163 = vpop.f32.mrf.mxu0
    %v164 = vadd.f32 %v108, %v163
    %165 = vmatmul.f32.gmra.mxu0 %v79
    %v166 = vpop.f32.mrf.mxu0
    %v167 = vadd.f32 %v108, %v166
    %168 = vmatmul.f32.gmra.mxu0 %v80
    %v169 = vpop.f32.mrf.mxu0
    %v170 = vadd.f32 %v108, %v169
    %171 = vmatmul.f32.gmra.mxu0 %v81
    %v172 = vpop.f32.mrf.mxu0
    %v173 = vadd.f32 %v108, %v172
    %174 = vmatmul.f32.gmra.mxu0 %v82
    %v175 = vpop.f32.mrf.mxu0
    %v176 = vadd.f32 %v108, %v175
    %177 = vmatmul.f32.gmra.mxu0 %v83
    %v178 = vpop.f32.mrf.mxu0
    %v179 = vadd.f32 %v108, %v178
    %180 = vmatmul.f32.gmra.mxu0 %v84
    %v181 = vpop.f32.mrf.mxu0
    %v182 = vadd.f32 %v108, %v181
    %183 = vmatmul.f32.gmra.mxu0 %v85
    %v184 = vpop.f32.mrf.mxu0
    %v185 = vadd.f32 %v108, %v184
    %186 = vmatmul.f32.gmra.mxu0 %v86
    %v187 = vpop.f32.mrf.mxu0
    %v188 = vadd.f32 %v108, %v187
    %189 = vmatmul.f32.gmra.mxu0 %v87
    %v190 = vpop.f32.mrf.mxu0
    %v191 = vadd.f32 %v108, %v190
    %192 = vmatmul.f32.gmra.mxu0 %v88
    %v193 = vpop.f32.mrf.mxu0
    %v194 = vadd.f32 %v108, %v193
    %195 = vmatmul.f32.gmra.mxu0 %v89
    %v196 = vpop.f32.mrf.mxu0
    %v197 = vadd.f32 %v108, %v196
    %198 = vdwg.mxu0
    %v199 = vxor.u32 %v128, 2147483648
    %v200 = vxor.u32 %v131, 2147483648
    %v201 = vxor.u32 %v134, 2147483648
    %v202 = vxor.u32 %v137, 2147483648
    %v203 = vxor.u32 %v140, 2147483648
    %v204 = vxor.u32 %v143, 2147483648
    %v205 = vxor.u32 %v146, 2147483648
    %v206 = vxor.u32 %v149, 2147483648
    %v207 = vxor.u32 %v152, 2147483648
    %v208 = vxor.u32 %v155, 2147483648
    %v209 = vxor.u32 %v158, 2147483648
    %v210 = vxor.u32 %v161, 2147483648
    %v211 = vxor.u32 %v164, 2147483648
    %v212 = vxor.u32 %v167, 2147483648
    %v213 = vxor.u32 %v170, 2147483648
    %v214 = vxor.u32 %v173, 2147483648
    %v215 = vxor.u32 %v176, 2147483648
    %v216 = vxor.u32 %v179, 2147483648
    %v217 = vxor.u32 %v182, 2147483648
    %v218 = vxor.u32 %v185, 2147483648
    %v219 = vxor.u32 %v188, 2147483648
    %v220 = vxor.u32 %v191, 2147483648
    %v221 = vxor.u32 %v194, 2147483648
    %v222 = vxor.u32 %v197, 2147483648
    %v223 = vmul.f32 %v199, 1.442695
    %v224 = vpow.pop %v223
    %v225 = vmul.f32 %v200, 1.442695
    %v226 = vpow.pop %v225
    %v227 = vmul.f32 %v201, 1.442695
    %v228 = vpow.pop %v227
    %v229 = vmul.f32 %v202, 1.442695
    %v230 = vpow.pop %v229
    %v231 = vmul.f32 %v203, 1.442695
    %v232 = vpow.pop %v231
    %v233 = vmul.f32 %v204, 1.442695
    %v234 = vpow.pop %v233
    %v235 = vmul.f32 %v205, 1.442695
    %v236 = vpow.pop %v235
    %v237 = vmul.f32 %v206, 1.442695
    %v238 = vpow.pop %v237
    %v239 = vmul.f32 %v207, 1.442695
    %v240 = vpow.pop %v239
    %v241 = vmul.f32 %v208, 1.442695
    %v242 = vpow.pop %v241
    %v243 = vmul.f32 %v209, 1.442695
    %v244 = vpow.pop %v243
    %v245 = vmul.f32 %v210, 1.442695
    %v246 = vpow.pop %v245
    %v247 = vmul.f32 %v211, 1.442695
    %v248 = vpow.pop %v247
    %v249 = vmul.f32 %v212, 1.442695
    %v250 = vpow.pop %v249
    %v251 = vmul.f32 %v213, 1.442695
    %v252 = vpow.pop %v251
    %v253 = vmul.f32 %v214, 1.442695
    %v254 = vpow.pop %v253
    %v255 = vmul.f32 %v215, 1.442695
    %v256 = vpow.pop %v255
    %v257 = vmul.f32 %v216, 1.442695
    %v258 = vpow.pop %v257
    %v259 = vmul.f32 %v217, 1.442695
    %v260 = vpow.pop %v259
    %v261 = vmul.f32 %v218, 1.442695
    %v262 = vpow.pop %v261
    %v263 = vmul.f32 %v219, 1.442695
    %v264 = vpow.pop %v263
    %v265 = vmul.f32 %v220, 1.442695
    %v266 = vpow.pop %v265
    %v267 = vmul.f32 %v221, 1.442695
    %v268 = vpow.pop %v267
    %v269 = vmul.f32 %v222, 1.442695
    %v270 = vpow.pop %v269
    %v271 = vadd.f32 %v224, 1.0
    %v272 = vadd.f32 %v226, 1.0
    %v273 = vadd.f32 %v228, 1.0
    %v274 = vadd.f32 %v230, 1.0
    %v275 = vadd.f32 %v232, 1.0
    %v276 = vadd.f32 %v234, 1.0
    %v277 = vadd.f32 %v236, 1.0
    %v278 = vadd.f32 %v238, 1.0
    %v279 = vadd.f32 %v240, 1.0
    %v280 = vadd.f32 %v242, 1.0
    %v281 = vadd.f32 %v244, 1.0
    %v282 = vadd.f32 %v246, 1.0
    %v283 = vadd.f32 %v248, 1.0
    %v284 = vadd.f32 %v250, 1.0
    %v285 = vadd.f32 %v252, 1.0
    %v286 = vadd.f32 %v254, 1.0
    %v287 = vadd.f32 %v256, 1.0
    %v288 = vadd.f32 %v258, 1.0
    %v289 = vadd.f32 %v260, 1.0
    %v290 = vadd.f32 %v262, 1.0
    %v291 = vadd.f32 %v264, 1.0
    %v292 = vadd.f32 %v266, 1.0
    %v293 = vadd.f32 %v268, 1.0
    %v294 = vadd.f32 %v270, 1.0
    %v295 = vrcp.pop %v271
    %v296 = vmul.f32 %v271, %v295
    %v297 = vsub.f32 1.0, %v296
    %v298 = vmul.f32 %v295, %v297
    %v299 = vadd.f32 %v295, %v298
    %vm300 = vweird.f32 %v271
    %vm301 = vweird.f32 %v295
    %vm302 = vmor %vm300, %vm301
    %v303 = vsel %vm302, %v295, %v299
    %v304 = vand.u32 2147483647, %v271
    %vm305 = vcmp.eq.f32.partialorder %v304, 8.507059e+37
    %v306 = vand.u32 %v271, 2147483648
    %v307 = vor.u32 1.1754944e-38, %v306
    %v308 = vsel %vm305, %v307, %v303
    %v309 = vmul.f32 1.0, %v308
    %v310 = vrcp.pop %v272
    %v311 = vmul.f32 %v272, %v310
    %v312 = vsub.f32 1.0, %v311
    %v313 = vmul.f32 %v310, %v312
    %v314 = vadd.f32 %v310, %v313
    %vm315 = vweird.f32 %v272
    %vm316 = vweird.f32 %v310
    %vm317 = vmor %vm315, %vm316
    %v318 = vsel %vm317, %v310, %v314
    %v319 = vand.u32 2147483647, %v272
    %vm320 = vcmp.eq.f32.partialorder %v319, 8.507059e+37
    %v321 = vand.u32 %v272, 2147483648
    %v322 = vor.u32 1.1754944e-38, %v321
    %v323 = vsel %vm320, %v322, %v318
    %v324 = vmul.f32 1.0, %v323
    %v325 = vrcp.pop %v273
    %v326 = vmul.f32 %v273, %v325
    %v327 = vsub.f32 1.0, %v326
    %v328 = vmul.f32 %v325, %v327
    %v329 = vadd.f32 %v325, %v328
    %vm330 = vweird.f32 %v273
    %vm331 = vweird.f32 %v325
    %vm332 = vmor %vm330, %vm331
    %v333 = vsel %vm332, %v325, %v329
    %v334 = vand.u32 2147483647, %v273
    %vm335 = vcmp.eq.f32.partialorder %v334, 8.507059e+37
    %v336 = vand.u32 %v273, 2147483648
    %v337 = vor.u32 1.1754944e-38, %v336
    %v338 = vsel %vm335, %v337, %v333
    %v339 = vmul.f32 1.0, %v338
    %v340 = vrcp.pop %v274
    %v341 = vmul.f32 %v274, %v340
    %v342 = vsub.f32 1.0, %v341
    %v343 = vmul.f32 %v340, %v342
    %v344 = vadd.f32 %v340, %v343
    %vm345 = vweird.f32 %v274
    %vm346 = vweird.f32 %v340
    %vm347 = vmor %vm345, %vm346
    %v348 = vsel %vm347, %v340, %v344
    %v349 = vand.u32 2147483647, %v274
    %vm350 = vcmp.eq.f32.partialorder %v349, 8.507059e+37
    %v351 = vand.u32 %v274, 2147483648
    %v352 = vor.u32 1.1754944e-38, %v351
    %v353 = vsel %vm350, %v352, %v348
    %v354 = vmul.f32 1.0, %v353
    %v355 = vrcp.pop %v275
    %v356 = vmul.f32 %v275, %v355
    %v357 = vsub.f32 1.0, %v356
    %v358 = vmul.f32 %v355, %v357
    %v359 = vadd.f32 %v355, %v358
    %vm360 = vweird.f32 %v275
    %vm361 = vweird.f32 %v355
    %vm362 = vmor %vm360, %vm361
    %v363 = vsel %vm362, %v355, %v359
    %v364 = vand.u32 2147483647, %v275
    %vm365 = vcmp.eq.f32.partialorder %v364, 8.507059e+37
    %v366 = vand.u32 %v275, 2147483648
    %v367 = vor.u32 1.1754944e-38, %v366
    %v368 = vsel %vm365, %v367, %v363
    %v369 = vmul.f32 1.0, %v368
    %v370 = vrcp.pop %v276
    %v371 = vmul.f32 %v276, %v370
    %v372 = vsub.f32 1.0, %v371
    %v373 = vmul.f32 %v370, %v372
    %v374 = vadd.f32 %v370, %v373
    %vm375 = vweird.f32 %v276
    %vm376 = vweird.f32 %v370
    %vm377 = vmor %vm375, %vm376
    %v378 = vsel %vm377, %v370, %v374
    %v379 = vand.u32 2147483647, %v276
    %vm380 = vcmp.eq.f32.partialorder %v379, 8.507059e+37
    %v381 = vand.u32 %v276, 2147483648
    %v382 = vor.u32 1.1754944e-38, %v381
    %v383 = vsel %vm380, %v382, %v378
    %v384 = vmul.f32 1.0, %v383
    %v385 = vrcp.pop %v277
    %v386 = vmul.f32 %v277, %v385
    %v387 = vsub.f32 1.0, %v386
    %v388 = vmul.f32 %v385, %v387
    %v389 = vadd.f32 %v385, %v388
    %vm390 = vweird.f32 %v277
    %vm391 = vweird.f32 %v385
    %vm392 = vmor %vm390, %vm391
    %v393 = vsel %vm392, %v385, %v389
    %v394 = vand.u32 2147483647, %v277
    %vm395 = vcmp.eq.f32.partialorder %v394, 8.507059e+37
    %v396 = vand.u32 %v277, 2147483648
    %v397 = vor.u32 1.1754944e-38, %v396
    %v398 = vsel %vm395, %v397, %v393
    %v399 = vmul.f32 1.0, %v398
    %v400 = vrcp.pop %v278
    %v401 = vmul.f32 %v278, %v400
    %v402 = vsub.f32 1.0, %v401
    %v403 = vmul.f32 %v400, %v402
    %v404 = vadd.f32 %v400, %v403
    %vm405 = vweird.f32 %v278
    %vm406 = vweird.f32 %v400
    %vm407 = vmor %vm405, %vm406
    %v408 = vsel %vm407, %v400, %v404
    %v409 = vand.u32 2147483647, %v278
    %vm410 = vcmp.eq.f32.partialorder %v409, 8.507059e+37
    %v411 = vand.u32 %v278, 2147483648
    %v412 = vor.u32 1.1754944e-38, %v411
    %v413 = vsel %vm410, %v412, %v408
    %v414 = vmul.f32 1.0, %v413
    %v415 = vrcp.pop %v279
    %v416 = vmul.f32 %v279, %v415
    %v417 = vsub.f32 1.0, %v416
    %v418 = vmul.f32 %v415, %v417
    %v419 = vadd.f32 %v415, %v418
    %vm420 = vweird.f32 %v279
    %vm421 = vweird.f32 %v415
    %vm422 = vmor %vm420, %vm421
    %v423 = vsel %vm422, %v415, %v419
    %v424 = vand.u32 2147483647, %v279
    %vm425 = vcmp.eq.f32.partialorder %v424, 8.507059e+37
    %v426 = vand.u32 %v279, 2147483648
    %v427 = vor.u32 1.1754944e-38, %v426
    %v428 = vsel %vm425, %v427, %v423
    %v429 = vmul.f32 1.0, %v428
    %v430 = vrcp.pop %v280
    %v431 = vmul.f32 %v280, %v430
    %v432 = vsub.f32 1.0, %v431
    %v433 = vmul.f32 %v430, %v432
    %v434 = vadd.f32 %v430, %v433
    %vm435 = vweird.f32 %v280
    %vm436 = vweird.f32 %v430
    %vm437 = vmor %vm435, %vm436
    %v438 = vsel %vm437, %v430, %v434
    %v439 = vand.u32 2147483647, %v280
    %vm440 = vcmp.eq.f32.partialorder %v439, 8.507059e+37
    %v441 = vand.u32 %v280, 2147483648
    %v442 = vor.u32 1.1754944e-38, %v441
    %v443 = vsel %vm440, %v442, %v438
    %v444 = vmul.f32 1.0, %v443
    %v445 = vrcp.pop %v281
    %v446 = vmul.f32 %v281, %v445
    %v447 = vsub.f32 1.0, %v446
    %v448 = vmul.f32 %v445, %v447
    %v449 = vadd.f32 %v445, %v448
    %vm450 = vweird.f32 %v281
    %vm451 = vweird.f32 %v445
    %vm452 = vmor %vm450, %vm451
    %v453 = vsel %vm452, %v445, %v449
    %v454 = vand.u32 2147483647, %v281
    %vm455 = vcmp.eq.f32.partialorder %v454, 8.507059e+37
    %v456 = vand.u32 %v281, 2147483648
    %v457 = vor.u32 1.1754944e-38, %v456
    %v458 = vsel %vm455, %v457, %v453
    %v459 = vmul.f32 1.0, %v458
    %v460 = vrcp.pop %v282
    %v461 = vmul.f32 %v282, %v460
    %v462 = vsub.f32 1.0, %v461
    %v463 = vmul.f32 %v460, %v462
    %v464 = vadd.f32 %v460, %v463
    %vm465 = vweird.f32 %v282
    %vm466 = vweird.f32 %v460
    %vm467 = vmor %vm465, %vm466
    %v468 = vsel %vm467, %v460, %v464
    %v469 = vand.u32 2147483647, %v282
    %vm470 = vcmp.eq.f32.partialorder %v469, 8.507059e+37
    %v471 = vand.u32 %v282, 2147483648
    %v472 = vor.u32 1.1754944e-38, %v471
    %v473 = vsel %vm470, %v472, %v468
    %v474 = vmul.f32 1.0, %v473
    %v475 = vrcp.pop %v283
    %v476 = vmul.f32 %v283, %v475
    %v477 = vsub.f32 1.0, %v476
    %v478 = vmul.f32 %v475, %v477
    %v479 = vadd.f32 %v475, %v478
    %vm480 = vweird.f32 %v283
    %vm481 = vweird.f32 %v475
    %vm482 = vmor %vm480, %vm481
    %v483 = vsel %vm482, %v475, %v479
    %v484 = vand.u32 2147483647, %v283
    %vm485 = vcmp.eq.f32.partialorder %v484, 8.507059e+37
    %v486 = vand.u32 %v283, 2147483648
    %v487 = vor.u32 1.1754944e-38, %v486
    %v488 = vsel %vm485, %v487, %v483
    %v489 = vmul.f32 1.0, %v488
    %v490 = vrcp.pop %v284
    %v491 = vmul.f32 %v284, %v490
    %v492 = vsub.f32 1.0, %v491
    %v493 = vmul.f32 %v490, %v492
    %v494 = vadd.f32 %v490, %v493
    %vm495 = vweird.f32 %v284
    %vm496 = vweird.f32 %v490
    %vm497 = vmor %vm495, %vm496
    %v498 = vsel %vm497, %v490, %v494
    %v499 = vand.u32 2147483647, %v284
    %vm500 = vcmp.eq.f32.partialorder %v499, 8.507059e+37
    %v501 = vand.u32 %v284, 2147483648
    %v502 = vor.u32 1.1754944e-38, %v501
    %v503 = vsel %vm500, %v502, %v498
    %v504 = vmul.f32 1.0, %v503
    %v505 = vrcp.pop %v285
    %v506 = vmul.f32 %v285, %v505
    %v507 = vsub.f32 1.0, %v506
    %v508 = vmul.f32 %v505, %v507
    %v509 = vadd.f32 %v505, %v508
    %vm510 = vweird.f32 %v285
    %vm511 = vweird.f32 %v505
    %vm512 = vmor %vm510, %vm511
    %v513 = vsel %vm512, %v505, %v509
    %v514 = vand.u32 2147483647, %v285
    %vm515 = vcmp.eq.f32.partialorder %v514, 8.507059e+37
    %v516 = vand.u32 %v285, 2147483648
    %v517 = vor.u32 1.1754944e-38, %v516
    %v518 = vsel %vm515, %v517, %v513
    %v519 = vmul.f32 1.0, %v518
    %v520 = vrcp.pop %v286
    %v521 = vmul.f32 %v286, %v520
    %v522 = vsub.f32 1.0, %v521
    %v523 = vmul.f32 %v520, %v522
    %v524 = vadd.f32 %v520, %v523
    %vm525 = vweird.f32 %v286
    %vm526 = vweird.f32 %v520
    %vm527 = vmor %vm525, %vm526
    %v528 = vsel %vm527, %v520, %v524
    %v529 = vand.u32 2147483647, %v286
    %vm530 = vcmp.eq.f32.partialorder %v529, 8.507059e+37
    %v531 = vand.u32 %v286, 2147483648
    %v532 = vor.u32 1.1754944e-38, %v531
    %v533 = vsel %vm530, %v532, %v528
    %v534 = vmul.f32 1.0, %v533
    %v535 = vrcp.pop %v287
    %v536 = vmul.f32 %v287, %v535
    %v537 = vsub.f32 1.0, %v536
    %v538 = vmul.f32 %v535, %v537
    %v539 = vadd.f32 %v535, %v538
    %vm540 = vweird.f32 %v287
    %vm541 = vweird.f32 %v535
    %vm542 = vmor %vm540, %vm541
    %v543 = vsel %vm542, %v535, %v539
    %v544 = vand.u32 2147483647, %v287
    %vm545 = vcmp.eq.f32.partialorder %v544, 8.507059e+37
    %v546 = vand.u32 %v287, 2147483648
    %v547 = vor.u32 1.1754944e-38, %v546
    %v548 = vsel %vm545, %v547, %v543
    %v549 = vmul.f32 1.0, %v548
    %v550 = vrcp.pop %v288
    %v551 = vmul.f32 %v288, %v550
    %v552 = vsub.f32 1.0, %v551
    %v553 = vmul.f32 %v550, %v552
    %v554 = vadd.f32 %v550, %v553
    %vm555 = vweird.f32 %v288
    %vm556 = vweird.f32 %v550
    %vm557 = vmor %vm555, %vm556
    %v558 = vsel %vm557, %v550, %v554
    %v559 = vand.u32 2147483647, %v288
    %vm560 = vcmp.eq.f32.partialorder %v559, 8.507059e+37
    %v561 = vand.u32 %v288, 2147483648
    %v562 = vor.u32 1.1754944e-38, %v561
    %v563 = vsel %vm560, %v562, %v558
    %v564 = vmul.f32 1.0, %v563
    %v565 = vrcp.pop %v289
    %v566 = vmul.f32 %v289, %v565
    %v567 = vsub.f32 1.0, %v566
    %v568 = vmul.f32 %v565, %v567
    %v569 = vadd.f32 %v565, %v568
    %vm570 = vweird.f32 %v289
    %vm571 = vweird.f32 %v565
    %vm572 = vmor %vm570, %vm571
    %v573 = vsel %vm572, %v565, %v569
    %v574 = vand.u32 2147483647, %v289
    %vm575 = vcmp.eq.f32.partialorder %v574, 8.507059e+37
    %v576 = vand.u32 %v289, 2147483648
    %v577 = vor.u32 1.1754944e-38, %v576
    %v578 = vsel %vm575, %v577, %v573
    %v579 = vmul.f32 1.0, %v578
    %v580 = vrcp.pop %v290
    %v581 = vmul.f32 %v290, %v580
    %v582 = vsub.f32 1.0, %v581
    %v583 = vmul.f32 %v580, %v582
    %v584 = vadd.f32 %v580, %v583
    %vm585 = vweird.f32 %v290
    %vm586 = vweird.f32 %v580
    %vm587 = vmor %vm585, %vm586
    %v588 = vsel %vm587, %v580, %v584
    %v589 = vand.u32 2147483647, %v290
    %vm590 = vcmp.eq.f32.partialorder %v589, 8.507059e+37
    %v591 = vand.u32 %v290, 2147483648
    %v592 = vor.u32 1.1754944e-38, %v591
    %v593 = vsel %vm590, %v592, %v588
    %v594 = vmul.f32 1.0, %v593
    %v595 = vrcp.pop %v291
    %v596 = vmul.f32 %v291, %v595
    %v597 = vsub.f32 1.0, %v596
    %v598 = vmul.f32 %v595, %v597
    %v599 = vadd.f32 %v595, %v598
    %vm600 = vweird.f32 %v291
    %vm601 = vweird.f32 %v595
    %vm602 = vmor %vm600, %vm601
    %v603 = vsel %vm602, %v595, %v599
    %v604 = vand.u32 2147483647, %v291
    %vm605 = vcmp.eq.f32.partialorder %v604, 8.507059e+37
    %v606 = vand.u32 %v291, 2147483648
    %v607 = vor.u32 1.1754944e-38, %v606
    %v608 = vsel %vm605, %v607, %v603
    %v609 = vmul.f32 1.0, %v608
    %v610 = vrcp.pop %v292
    %v611 = vmul.f32 %v292, %v610
    %v612 = vsub.f32 1.0, %v611
    %v613 = vmul.f32 %v610, %v612
    %v614 = vadd.f32 %v610, %v613
    %vm615 = vweird.f32 %v292
    %vm616 = vweird.f32 %v610
    %vm617 = vmor %vm615, %vm616
    %v618 = vsel %vm617, %v610, %v614
    %v619 = vand.u32 2147483647, %v292
    %vm620 = vcmp.eq.f32.partialorder %v619, 8.507059e+37
    %v621 = vand.u32 %v292, 2147483648
    %v622 = vor.u32 1.1754944e-38, %v621
    %v623 = vsel %vm620, %v622, %v618
    %v624 = vmul.f32 1.0, %v623
    %v625 = vrcp.pop %v293
    %v626 = vmul.f32 %v293, %v625
    %v627 = vsub.f32 1.0, %v626
    %v628 = vmul.f32 %v625, %v627
    %v629 = vadd.f32 %v625, %v628
    %vm630 = vweird.f32 %v293
    %vm631 = vweird.f32 %v625
    %vm632 = vmor %vm630, %vm631
    %v633 = vsel %vm632, %v625, %v629
    %v634 = vand.u32 2147483647, %v293
    %vm635 = vcmp.eq.f32.partialorder %v634, 8.507059e+37
    %v636 = vand.u32 %v293, 2147483648
    %v637 = vor.u32 1.1754944e-38, %v636
    %v638 = vsel %vm635, %v637, %v633
    %v639 = vmul.f32 1.0, %v638
    %v640 = vrcp.pop %v294
    %v641 = vmul.f32 %v294, %v640
    %v642 = vsub.f32 1.0, %v641
    %v643 = vmul.f32 %v640, %v642
    %v644 = vadd.f32 %v640, %v643
    %vm645 = vweird.f32 %v294
    %vm646 = vweird.f32 %v640
    %vm647 = vmor %vm645, %vm646
    %v648 = vsel %vm647, %v640, %v644
    %v649 = vand.u32 2147483647, %v294
    %vm650 = vcmp.eq.f32.partialorder %v649, 8.507059e+37
    %v651 = vand.u32 %v294, 2147483648
    %v652 = vor.u32 1.1754944e-38, %v651
    %v653 = vsel %vm650, %v652, %v648
    %v654 = vmul.f32 1.0, %v653
    %v655 = vmul.f32 %v128, %v309
    %v656 = vmul.f32 %v131, %v324
    %v657 = vmul.f32 %v134, %v339
    %v658 = vmul.f32 %v137, %v354
    %v659 = vmul.f32 %v140, %v369
    %v660 = vmul.f32 %v143, %v384
    %v661 = vmul.f32 %v146, %v399
    %v662 = vmul.f32 %v149, %v414
    %v663 = vmul.f32 %v152, %v429
    %v664 = vmul.f32 %v155, %v444
    %v665 = vmul.f32 %v158, %v459
    %v666 = vmul.f32 %v161, %v474
    %v667 = vmul.f32 %v164, %v489
    %v668 = vmul.f32 %v167, %v504
    %v669 = vmul.f32 %v170, %v519
    %v670 = vmul.f32 %v173, %v534
    %v671 = vmul.f32 %v176, %v549
    %v672 = vmul.f32 %v179, %v564
    %v673 = vmul.f32 %v182, %v579
    %v674 = vmul.f32 %v185, %v594
    %v675 = vmul.f32 %v188, %v609
    %v676 = vmul.f32 %v191, %v624
    %v677 = vmul.f32 %v194, %v639
    %v678 = vmul.f32 %v197, %v654
    %v679 = vld [vmem:[%s5] sm:$0xff]
    %v680 = vld [vmem:[%s5 + $0x8] sm:$0xff]
    %v681 = vld [vmem:[%s5 + $0x10] sm:$0xff]
    %v682 = vld [vmem:[%s5 + $0x18] sm:$0xff]
    %v683 = vld [vmem:[%s5 + $0x20] sm:$0xff]
    %v684 = vld [vmem:[%s5 + $0x28] sm:$0xff]
    %v685 = vld [vmem:[%s5 + $0x30] sm:$0xff]
    %v686 = vld [vmem:[%s5 + $0x38] sm:$0xff]
    %v687 = vld [vmem:[%s6] sm:$0x1]
    %v689 = vperm.slane %v687, 0
    %vm691 = vcmask 523264
    %v693 = vsel %vm691, %v655, 0
    %v696 = vsel %vm691, %v656, 0
    %v699 = vsel %vm691, %v657, 0
    %v702 = vsel %vm691, %v658, 0
    %v705 = vsel %vm691, %v659, 0
    %v708 = vsel %vm691, %v660, 0
    %v711 = vsel %vm691, %v661, 0
    %v714 = vsel %vm691, %v662, 0
    %v717 = vsel %vm691, %v663, 0
    %v720 = vsel %vm691, %v664, 0
    %v723 = vsel %vm691, %v665, 0
    %v726 = vsel %vm691, %v666, 0
    %v729 = vsel %vm691, %v667, 0
    %v732 = vsel %vm691, %v668, 0
    %v735 = vsel %vm691, %v669, 0
    %v738 = vsel %vm691, %v670, 0
    %v741 = vsel %vm691, %v671, 0
    %v744 = vsel %vm691, %v672, 0
    %v747 = vsel %vm691, %v673, 0
    %v750 = vsel %vm691, %v674, 0
    %v753 = vsel %vm691, %v675, 0
    %v756 = vsel %vm691, %v676, 0
    %v759 = vsel %vm691, %v677, 0
    %v762 = vsel %vm691, %v678, 0
    %764 = vmatpush.msra.mxu0 0.0
    %765 = vmatpush.msra.mxu0 0.0
    %766 = vmatpush.msra.mxu0 0.0
    %767 = vmatpush.msra.mxu0 0.0
    %768 = vmatpush.msra.mxu0 0.0
    %769 = vmatpush.msra.mxu0 0.0
    %770 = vmatpush.msra.mxu0 0.0
    %771 = vmatpush.msra.mxu0 0.0
    %772 = vmatpush.msra.mxu0 %v686
    %773 = vmatpush.msra.mxu0 %v685
    %774 = vmatpush.msra.mxu0 %v684
    %775 = vmatpush.msra.mxu0 %v683
    %776 = vmatpush.msra.mxu0 %v682
    %777 = vmatpush.msra.mxu0 %v681
    %778 = vmatpush.msra.mxu0 %v680
    %779 = vmatpush.msra.mxu0 %v679
    %780 = vmatmul.f32.gmra.mxu0 %v693
    %v781 = vpop.f32.mrf.mxu0
    %v782 = vadd.f32 %v689, %v781
    %783 = vmatmul.f32.gmra.mxu0 %v696
    %v784 = vpop.f32.mrf.mxu0
    %v785 = vadd.f32 %v689, %v784
    %786 = vmatmul.f32.gmra.mxu0 %v699
    %v787 = vpop.f32.mrf.mxu0
    %v788 = vadd.f32 %v689, %v787
    %789 = vmatmul.f32.gmra.mxu0 %v702
    %v790 = vpop.f32.mrf.mxu0
    %v791 = vadd.f32 %v689, %v790
    %792 = vmatmul.f32.gmra.mxu0 %v705
    %v793 = vpop.f32.mrf.mxu0
    %v794 = vadd.f32 %v689, %v793
    %795 = vmatmul.f32.gmra.mxu0 %v708
    %v796 = vpop.f32.mrf.mxu0
    %v797 = vadd.f32 %v689, %v796
    %798 = vmatmul.f32.gmra.mxu0 %v711
    %v799 = vpop.f32.mrf.mxu0
    %v800 = vadd.f32 %v689, %v799
    %801 = vmatmul.f32.gmra.mxu0 %v714
    %v802 = vpop.f32.mrf.mxu0
    %v803 = vadd.f32 %v689, %v802
    %804 = vmatmul.f32.gmra.mxu0 %v717
    %v805 = vpop.f32.mrf.mxu0
    %v806 = vadd.f32 %v689, %v805
    %807 = vmatmul.f32.gmra.mxu0 %v720
    %v808 = vpop.f32.mrf.mxu0
    %v809 = vadd.f32 %v689, %v808
    %810 = vmatmul.f32.gmra.mxu0 %v723
    %v811 = vpop.f32.mrf.mxu0
    %v812 = vadd.f32 %v689, %v811
    %813 = vmatmul.f32.gmra.mxu0 %v726
    %v814 = vpop.f32.mrf.mxu0
    %v815 = vadd.f32 %v689, %v814
    %816 = vmatmul.f32.gmra.mxu0 %v729
    %v817 = vpop.f32.mrf.mxu0
    %v818 = vadd.f32 %v689, %v817
    %819 = vmatmul.f32.gmra.mxu0 %v732
    %v820 = vpop.f32.mrf.mxu0
    %v821 = vadd.f32 %v689, %v820
    %822 = vmatmul.f32.gmra.mxu0 %v735
    %v823 = vpop.f32.mrf.mxu0
    %v824 = vadd.f32 %v689, %v823
    %825 = vmatmul.f32.gmra.mxu0 %v738
    %v826 = vpop.f32.mrf.mxu0
    %v827 = vadd.f32 %v689, %v826
    %828 = vmatmul.f32.gmra.mxu0 %v741
    %v829 = vpop.f32.mrf.mxu0
    %v830 = vadd.f32 %v689, %v829
    %831 = vmatmul.f32.gmra.mxu0 %v744
    %v832 = vpop.f32.mrf.mxu0
    %v833 = vadd.f32 %v689, %v832
    %834 = vmatmul.f32.gmra.mxu0 %v747
    %v835 = vpop.f32.mrf.mxu0
    %v836 = vadd.f32 %v689, %v835
    %837 = vmatmul.f32.gmra.mxu0 %v750
    %v838 = vpop.f32.mrf.mxu0
    %v839 = vadd.f32 %v689, %v838
    %840 = vmatmul.f32.gmra.mxu0 %v753
    %v841 = vpop.f32.mrf.mxu0
    %v842 = vadd.f32 %v689, %v841
    %843 = vmatmul.f32.gmra.mxu0 %v756
    %v844 = vpop.f32.mrf.mxu0
    %v845 = vadd.f32 %v689, %v844
    %846 = vmatmul.f32.gmra.mxu0 %v759
    %v847 = vpop.f32.mrf.mxu0
    %v848 = vadd.f32 %v689, %v847
    %849 = vmatmul.f32.gmra.mxu0 %v762
    %v850 = vpop.f32.mrf.mxu0
    %v851 = vadd.f32 %v689, %v850
    %852 = vdwg.mxu0
    %v853 = vxor.u32 %v782, 2147483648
    %v854 = vxor.u32 %v785, 2147483648
    %v855 = vxor.u32 %v788, 2147483648
    %v856 = vxor.u32 %v791, 2147483648
    %v857 = vxor.u32 %v794, 2147483648
    %v858 = vxor.u32 %v797, 2147483648
    %v859 = vxor.u32 %v800, 2147483648
    %v860 = vxor.u32 %v803, 2147483648
    %v861 = vxor.u32 %v806, 2147483648
    %v862 = vxor.u32 %v809, 2147483648
    %v863 = vxor.u32 %v812, 2147483648
    %v864 = vxor.u32 %v815, 2147483648
    %v865 = vxor.u32 %v818, 2147483648
    %v866 = vxor.u32 %v821, 2147483648
    %v867 = vxor.u32 %v824, 2147483648
    %v868 = vxor.u32 %v827, 2147483648
    %v869 = vxor.u32 %v830, 2147483648
    %v870 = vxor.u32 %v833, 2147483648
    %v871 = vxor.u32 %v836, 2147483648
    %v872 = vxor.u32 %v839, 2147483648
    %v873 = vxor.u32 %v842, 2147483648
    %v874 = vxor.u32 %v845, 2147483648
    %v875 = vxor.u32 %v848, 2147483648
    %v876 = vxor.u32 %v851, 2147483648
    %v877 = vmul.f32 %v853, 1.442695
    %v878 = vpow.pop %v877
    %v879 = vmul.f32 %v854, 1.442695
    %v880 = vpow.pop %v879
    %v881 = vmul.f32 %v855, 1.442695
    %v882 = vpow.pop %v881
    %v883 = vmul.f32 %v856, 1.442695
    %v884 = vpow.pop %v883
    %v885 = vmul.f32 %v857, 1.442695
    %v886 = vpow.pop %v885
    %v887 = vmul.f32 %v858, 1.442695
    %v888 = vpow.pop %v887
    %v889 = vmul.f32 %v859, 1.442695
    %v890 = vpow.pop %v889
    %v891 = vmul.f32 %v860, 1.442695
    %v892 = vpow.pop %v891
    %v893 = vmul.f32 %v861, 1.442695
    %v894 = vpow.pop %v893
    %v895 = vmul.f32 %v862, 1.442695
    %v896 = vpow.pop %v895
    %v897 = vmul.f32 %v863, 1.442695
    %v898 = vpow.pop %v897
    %v899 = vmul.f32 %v864, 1.442695
    %v900 = vpow.pop %v899
    %v901 = vmul.f32 %v865, 1.442695
    %v902 = vpow.pop %v901
    %v903 = vmul.f32 %v866, 1.442695
    %v904 = vpow.pop %v903
    %v905 = vmul.f32 %v867, 1.442695
    %v906 = vpow.pop %v905
    %v907 = vmul.f32 %v868, 1.442695
    %v908 = vpow.pop %v907
    %v909 = vmul.f32 %v869, 1.442695
    %v910 = vpow.pop %v909
    %v911 = vmul.f32 %v870, 1.442695
    %v912 = vpow.pop %v911
    %v913 = vmul.f32 %v871, 1.442695
    %v914 = vpow.pop %v913
    %v915 = vmul.f32 %v872, 1.442695
    %v916 = vpow.pop %v915
    %v917 = vmul.f32 %v873, 1.442695
    %v918 = vpow.pop %v917
    %v919 = vmul.f32 %v874, 1.442695
    %v920 = vpow.pop %v919
    %v921 = vmul.f32 %v875, 1.442695
    %v922 = vpow.pop %v921
    %v923 = vmul.f32 %v876, 1.442695
    %v924 = vpow.pop %v923
    %v925 = vadd.f32 %v878, 1.0
    %v926 = vadd.f32 %v880, 1.0
    %v927 = vadd.f32 %v882, 1.0
    %v928 = vadd.f32 %v884, 1.0
    %v929 = vadd.f32 %v886, 1.0
    %v930 = vadd.f32 %v888, 1.0
    %v931 = vadd.f32 %v890, 1.0
    %v932 = vadd.f32 %v892, 1.0
    %v933 = vadd.f32 %v894, 1.0
    %v934 = vadd.f32 %v896, 1.0
    %v935 = vadd.f32 %v898, 1.0
    %v936 = vadd.f32 %v900, 1.0
    %v937 = vadd.f32 %v902, 1.0
    %v938 = vadd.f32 %v904, 1.0
    %v939 = vadd.f32 %v906, 1.0
    %v940 = vadd.f32 %v908, 1.0
    %v941 = vadd.f32 %v910, 1.0
    %v942 = vadd.f32 %v912, 1.0
    %v943 = vadd.f32 %v914, 1.0
    %v944 = vadd.f32 %v916, 1.0
    %v945 = vadd.f32 %v918, 1.0
    %v946 = vadd.f32 %v920, 1.0
    %v947 = vadd.f32 %v922, 1.0
    %v948 = vadd.f32 %v924, 1.0
    %v949 = vrcp.pop %v925
    %v950 = vmul.f32 %v925, %v949
    %v951 = vsub.f32 1.0, %v950
    %v952 = vmul.f32 %v949, %v951
    %v953 = vadd.f32 %v949, %v952
    %vm954 = vweird.f32 %v925
    %vm955 = vweird.f32 %v949
    %vm956 = vmor %vm954, %vm955
    %v957 = vsel %vm956, %v949, %v953
    %v958 = vand.u32 2147483647, %v925
    %vm959 = vcmp.eq.f32.partialorder %v958, 8.507059e+37
    %v960 = vand.u32 %v925, 2147483648
    %v961 = vor.u32 1.1754944e-38, %v960
    %v962 = vsel %vm959, %v961, %v957
    %v963 = vmul.f32 1.0, %v962
    %v964 = vrcp.pop %v926
    %v965 = vmul.f32 %v926, %v964
    %v966 = vsub.f32 1.0, %v965
    %v967 = vmul.f32 %v964, %v966
    %v968 = vadd.f32 %v964, %v967
    %vm969 = vweird.f32 %v926
    %vm970 = vweird.f32 %v964
    %vm971 = vmor %vm969, %vm970
    %v972 = vsel %vm971, %v964, %v968
    %v973 = vand.u32 2147483647, %v926
    %vm974 = vcmp.eq.f32.partialorder %v973, 8.507059e+37
    %v975 = vand.u32 %v926, 2147483648
    %v976 = vor.u32 1.1754944e-38, %v975
    %v977 = vsel %vm974, %v976, %v972
    %v978 = vmul.f32 1.0, %v977
    %v979 = vrcp.pop %v927
    %v980 = vmul.f32 %v927, %v979
    %v981 = vsub.f32 1.0, %v980
    %v982 = vmul.f32 %v979, %v981
    %v983 = vadd.f32 %v979, %v982
    %vm984 = vweird.f32 %v927
    %vm985 = vweird.f32 %v979
    %vm986 = vmor %vm984, %vm985
    %v987 = vsel %vm986, %v979, %v983
    %v988 = vand.u32 2147483647, %v927
    %vm989 = vcmp.eq.f32.partialorder %v988, 8.507059e+37
    %v990 = vand.u32 %v927, 2147483648
    %v991 = vor.u32 1.1754944e-38, %v990
    %v992 = vsel %vm989, %v991, %v987
    %v993 = vmul.f32 1.0, %v992
    %v994 = vrcp.pop %v928
    %v995 = vmul.f32 %v928, %v994
    %v996 = vsub.f32 1.0, %v995
    %v997 = vmul.f32 %v994, %v996
    %v998 = vadd.f32 %v994, %v997
    %vm999 = vweird.f32 %v928
    %vm1000 = vweird.f32 %v994
    %vm1001 = vmor %vm999, %vm1000
    %v1002 = vsel %vm1001, %v994, %v998
    %v1003 = vand.u32 2147483647, %v928
    %vm1004 = vcmp.eq.f32.partialorder %v1003, 8.507059e+37
    %v1005 = vand.u32 %v928, 2147483648
    %v1006 = vor.u32 1.1754944e-38, %v1005
    %v1007 = vsel %vm1004, %v1006, %v1002
    %v1008 = vmul.f32 1.0, %v1007
    %v1009 = vrcp.pop %v929
    %v1010 = vmul.f32 %v929, %v1009
    %v1011 = vsub.f32 1.0, %v1010
    %v1012 = vmul.f32 %v1009, %v1011
    %v1013 = vadd.f32 %v1009, %v1012
    %vm1014 = vweird.f32 %v929
    %vm1015 = vweird.f32 %v1009
    %vm1016 = vmor %vm1014, %vm1015
    %v1017 = vsel %vm1016, %v1009, %v1013
    %v1018 = vand.u32 2147483647, %v929
    %vm1019 = vcmp.eq.f32.partialorder %v1018, 8.507059e+37
    %v1020 = vand.u32 %v929, 2147483648
    %v1021 = vor.u32 1.1754944e-38, %v1020
    %v1022 = vsel %vm1019, %v1021, %v1017
    %v1023 = vmul.f32 1.0, %v1022
    %v1024 = vrcp.pop %v930
    %v1025 = vmul.f32 %v930, %v1024
    %v1026 = vsub.f32 1.0, %v1025
    %v1027 = vmul.f32 %v1024, %v1026
    %v1028 = vadd.f32 %v1024, %v1027
    %vm1029 = vweird.f32 %v930
    %vm1030 = vweird.f32 %v1024
    %vm1031 = vmor %vm1029, %vm1030
    %v1032 = vsel %vm1031, %v1024, %v1028
    %v1033 = vand.u32 2147483647, %v930
    %vm1034 = vcmp.eq.f32.partialorder %v1033, 8.507059e+37
    %v1035 = vand.u32 %v930, 2147483648
    %v1036 = vor.u32 1.1754944e-38, %v1035
    %v1037 = vsel %vm1034, %v1036, %v1032
    %v1038 = vmul.f32 1.0, %v1037
    %v1039 = vrcp.pop %v931
    %v1040 = vmul.f32 %v931, %v1039
    %v1041 = vsub.f32 1.0, %v1040
    %v1042 = vmul.f32 %v1039, %v1041
    %v1043 = vadd.f32 %v1039, %v1042
    %vm1044 = vweird.f32 %v931
    %vm1045 = vweird.f32 %v1039
    %vm1046 = vmor %vm1044, %vm1045
    %v1047 = vsel %vm1046, %v1039, %v1043
    %v1048 = vand.u32 2147483647, %v931
    %vm1049 = vcmp.eq.f32.partialorder %v1048, 8.507059e+37
    %v1050 = vand.u32 %v931, 2147483648
    %v1051 = vor.u32 1.1754944e-38, %v1050
    %v1052 = vsel %vm1049, %v1051, %v1047
    %v1053 = vmul.f32 1.0, %v1052
    %v1054 = vrcp.pop %v932
    %v1055 = vmul.f32 %v932, %v1054
    %v1056 = vsub.f32 1.0, %v1055
    %v1057 = vmul.f32 %v1054, %v1056
    %v1058 = vadd.f32 %v1054, %v1057
    %vm1059 = vweird.f32 %v932
    %vm1060 = vweird.f32 %v1054
    %vm1061 = vmor %vm1059, %vm1060
    %v1062 = vsel %vm1061, %v1054, %v1058
    %v1063 = vand.u32 2147483647, %v932
    %vm1064 = vcmp.eq.f32.partialorder %v1063, 8.507059e+37
    %v1065 = vand.u32 %v932, 2147483648
    %v1066 = vor.u32 1.1754944e-38, %v1065
    %v1067 = vsel %vm1064, %v1066, %v1062
    %v1068 = vmul.f32 1.0, %v1067
    %v1069 = vrcp.pop %v933
    %v1070 = vmul.f32 %v933, %v1069
    %v1071 = vsub.f32 1.0, %v1070
    %v1072 = vmul.f32 %v1069, %v1071
    %v1073 = vadd.f32 %v1069, %v1072
    %vm1074 = vweird.f32 %v933
    %vm1075 = vweird.f32 %v1069
    %vm1076 = vmor %vm1074, %vm1075
    %v1077 = vsel %vm1076, %v1069, %v1073
    %v1078 = vand.u32 2147483647, %v933
    %vm1079 = vcmp.eq.f32.partialorder %v1078, 8.507059e+37
    %v1080 = vand.u32 %v933, 2147483648
    %v1081 = vor.u32 1.1754944e-38, %v1080
    %v1082 = vsel %vm1079, %v1081, %v1077
    %v1083 = vmul.f32 1.0, %v1082
    %v1084 = vrcp.pop %v934
    %v1085 = vmul.f32 %v934, %v1084
    %v1086 = vsub.f32 1.0, %v1085
    %v1087 = vmul.f32 %v1084, %v1086
    %v1088 = vadd.f32 %v1084, %v1087
    %vm1089 = vweird.f32 %v934
    %vm1090 = vweird.f32 %v1084
    %vm1091 = vmor %vm1089, %vm1090
    %v1092 = vsel %vm1091, %v1084, %v1088
    %v1093 = vand.u32 2147483647, %v934
    %vm1094 = vcmp.eq.f32.partialorder %v1093, 8.507059e+37
    %v1095 = vand.u32 %v934, 2147483648
    %v1096 = vor.u32 1.1754944e-38, %v1095
    %v1097 = vsel %vm1094, %v1096, %v1092
    %v1098 = vmul.f32 1.0, %v1097
    %v1099 = vrcp.pop %v935
    %v1100 = vmul.f32 %v935, %v1099
    %v1101 = vsub.f32 1.0, %v1100
    %v1102 = vmul.f32 %v1099, %v1101
    %v1103 = vadd.f32 %v1099, %v1102
    %vm1104 = vweird.f32 %v935
    %vm1105 = vweird.f32 %v1099
    %vm1106 = vmor %vm1104, %vm1105
    %v1107 = vsel %vm1106, %v1099, %v1103
    %v1108 = vand.u32 2147483647, %v935
    %vm1109 = vcmp.eq.f32.partialorder %v1108, 8.507059e+37
    %v1110 = vand.u32 %v935, 2147483648
    %v1111 = vor.u32 1.1754944e-38, %v1110
    %v1112 = vsel %vm1109, %v1111, %v1107
    %v1113 = vmul.f32 1.0, %v1112
    %v1114 = vrcp.pop %v936
    %v1115 = vmul.f32 %v936, %v1114
    %v1116 = vsub.f32 1.0, %v1115
    %v1117 = vmul.f32 %v1114, %v1116
    %v1118 = vadd.f32 %v1114, %v1117
    %vm1119 = vweird.f32 %v936
    %vm1120 = vweird.f32 %v1114
    %vm1121 = vmor %vm1119, %vm1120
    %v1122 = vsel %vm1121, %v1114, %v1118
    %v1123 = vand.u32 2147483647, %v936
    %vm1124 = vcmp.eq.f32.partialorder %v1123, 8.507059e+37
    %v1125 = vand.u32 %v936, 2147483648
    %v1126 = vor.u32 1.1754944e-38, %v1125
    %v1127 = vsel %vm1124, %v1126, %v1122
    %v1128 = vmul.f32 1.0, %v1127
    %v1129 = vrcp.pop %v937
    %v1130 = vmul.f32 %v937, %v1129
    %v1131 = vsub.f32 1.0, %v1130
    %v1132 = vmul.f32 %v1129, %v1131
    %v1133 = vadd.f32 %v1129, %v1132
    %vm1134 = vweird.f32 %v937
    %vm1135 = vweird.f32 %v1129
    %vm1136 = vmor %vm1134, %vm1135
    %v1137 = vsel %vm1136, %v1129, %v1133
    %v1138 = vand.u32 2147483647, %v937
    %vm1139 = vcmp.eq.f32.partialorder %v1138, 8.507059e+37
    %v1140 = vand.u32 %v937, 2147483648
    %v1141 = vor.u32 1.1754944e-38, %v1140
    %v1142 = vsel %vm1139, %v1141, %v1137
    %v1143 = vmul.f32 1.0, %v1142
    %v1144 = vrcp.pop %v938
    %v1145 = vmul.f32 %v938, %v1144
    %v1146 = vsub.f32 1.0, %v1145
    %v1147 = vmul.f32 %v1144, %v1146
    %v1148 = vadd.f32 %v1144, %v1147
    %vm1149 = vweird.f32 %v938
    %vm1150 = vweird.f32 %v1144
    %vm1151 = vmor %vm1149, %vm1150
    %v1152 = vsel %vm1151, %v1144, %v1148
    %v1153 = vand.u32 2147483647, %v938
    %vm1154 = vcmp.eq.f32.partialorder %v1153, 8.507059e+37
    %v1155 = vand.u32 %v938, 2147483648
    %v1156 = vor.u32 1.1754944e-38, %v1155
    %v1157 = vsel %vm1154, %v1156, %v1152
    %v1158 = vmul.f32 1.0, %v1157
    %v1159 = vrcp.pop %v939
    %v1160 = vmul.f32 %v939, %v1159
    %v1161 = vsub.f32 1.0, %v1160
    %v1162 = vmul.f32 %v1159, %v1161
    %v1163 = vadd.f32 %v1159, %v1162
    %vm1164 = vweird.f32 %v939
    %vm1165 = vweird.f32 %v1159
    %vm1166 = vmor %vm1164, %vm1165
    %v1167 = vsel %vm1166, %v1159, %v1163
    %v1168 = vand.u32 2147483647, %v939
    %vm1169 = vcmp.eq.f32.partialorder %v1168, 8.507059e+37
    %v1170 = vand.u32 %v939, 2147483648
    %v1171 = vor.u32 1.1754944e-38, %v1170
    %v1172 = vsel %vm1169, %v1171, %v1167
    %v1173 = vmul.f32 1.0, %v1172
    %v1174 = vrcp.pop %v940
    %v1175 = vmul.f32 %v940, %v1174
    %v1176 = vsub.f32 1.0, %v1175
    %v1177 = vmul.f32 %v1174, %v1176
    %v1178 = vadd.f32 %v1174, %v1177
    %vm1179 = vweird.f32 %v940
    %vm1180 = vweird.f32 %v1174
    %vm1181 = vmor %vm1179, %vm1180
    %v1182 = vsel %vm1181, %v1174, %v1178
    %v1183 = vand.u32 2147483647, %v940
    %vm1184 = vcmp.eq.f32.partialorder %v1183, 8.507059e+37
    %v1185 = vand.u32 %v940, 2147483648
    %v1186 = vor.u32 1.1754944e-38, %v1185
    %v1187 = vsel %vm1184, %v1186, %v1182
    %v1188 = vmul.f32 1.0, %v1187
    %v1189 = vrcp.pop %v941
    %v1190 = vmul.f32 %v941, %v1189
    %v1191 = vsub.f32 1.0, %v1190
    %v1192 = vmul.f32 %v1189, %v1191
    %v1193 = vadd.f32 %v1189, %v1192
    %vm1194 = vweird.f32 %v941
    %vm1195 = vweird.f32 %v1189
    %vm1196 = vmor %vm1194, %vm1195
    %v1197 = vsel %vm1196, %v1189, %v1193
    %v1198 = vand.u32 2147483647, %v941
    %vm1199 = vcmp.eq.f32.partialorder %v1198, 8.507059e+37
    %v1200 = vand.u32 %v941, 2147483648
    %v1201 = vor.u32 1.1754944e-38, %v1200
    %v1202 = vsel %vm1199, %v1201, %v1197
    %v1203 = vmul.f32 1.0, %v1202
    %v1204 = vrcp.pop %v942
    %v1205 = vmul.f32 %v942, %v1204
    %v1206 = vsub.f32 1.0, %v1205
    %v1207 = vmul.f32 %v1204, %v1206
    %v1208 = vadd.f32 %v1204, %v1207
    %vm1209 = vweird.f32 %v942
    %vm1210 = vweird.f32 %v1204
    %vm1211 = vmor %vm1209, %vm1210
    %v1212 = vsel %vm1211, %v1204, %v1208
    %v1213 = vand.u32 2147483647, %v942
    %vm1214 = vcmp.eq.f32.partialorder %v1213, 8.507059e+37
    %v1215 = vand.u32 %v942, 2147483648
    %v1216 = vor.u32 1.1754944e-38, %v1215
    %v1217 = vsel %vm1214, %v1216, %v1212
    %v1218 = vmul.f32 1.0, %v1217
    %v1219 = vrcp.pop %v943
    %v1220 = vmul.f32 %v943, %v1219
    %v1221 = vsub.f32 1.0, %v1220
    %v1222 = vmul.f32 %v1219, %v1221
    %v1223 = vadd.f32 %v1219, %v1222
    %vm1224 = vweird.f32 %v943
    %vm1225 = vweird.f32 %v1219
    %vm1226 = vmor %vm1224, %vm1225
    %v1227 = vsel %vm1226, %v1219, %v1223
    %v1228 = vand.u32 2147483647, %v943
    %vm1229 = vcmp.eq.f32.partialorder %v1228, 8.507059e+37
    %v1230 = vand.u32 %v943, 2147483648
    %v1231 = vor.u32 1.1754944e-38, %v1230
    %v1232 = vsel %vm1229, %v1231, %v1227
    %v1233 = vmul.f32 1.0, %v1232
    %v1234 = vrcp.pop %v944
    %v1235 = vmul.f32 %v944, %v1234
    %v1236 = vsub.f32 1.0, %v1235
    %v1237 = vmul.f32 %v1234, %v1236
    %v1238 = vadd.f32 %v1234, %v1237
    %vm1239 = vweird.f32 %v944
    %vm1240 = vweird.f32 %v1234
    %vm1241 = vmor %vm1239, %vm1240
    %v1242 = vsel %vm1241, %v1234, %v1238
    %v1243 = vand.u32 2147483647, %v944
    %vm1244 = vcmp.eq.f32.partialorder %v1243, 8.507059e+37
    %v1245 = vand.u32 %v944, 2147483648
    %v1246 = vor.u32 1.1754944e-38, %v1245
    %v1247 = vsel %vm1244, %v1246, %v1242
    %v1248 = vmul.f32 1.0, %v1247
    %v1249 = vrcp.pop %v945
    %v1250 = vmul.f32 %v945, %v1249
    %v1251 = vsub.f32 1.0, %v1250
    %v1252 = vmul.f32 %v1249, %v1251
    %v1253 = vadd.f32 %v1249, %v1252
    %vm1254 = vweird.f32 %v945
    %vm1255 = vweird.f32 %v1249
    %vm1256 = vmor %vm1254, %vm1255
    %v1257 = vsel %vm1256, %v1249, %v1253
    %v1258 = vand.u32 2147483647, %v945
    %vm1259 = vcmp.eq.f32.partialorder %v1258, 8.507059e+37
    %v1260 = vand.u32 %v945, 2147483648
    %v1261 = vor.u32 1.1754944e-38, %v1260
    %v1262 = vsel %vm1259, %v1261, %v1257
    %v1263 = vmul.f32 1.0, %v1262
    %v1264 = vrcp.pop %v946
    %v1265 = vmul.f32 %v946, %v1264
    %v1266 = vsub.f32 1.0, %v1265
    %v1267 = vmul.f32 %v1264, %v1266
    %v1268 = vadd.f32 %v1264, %v1267
    %vm1269 = vweird.f32 %v946
    %vm1270 = vweird.f32 %v1264
    %vm1271 = vmor %vm1269, %vm1270
    %v1272 = vsel %vm1271, %v1264, %v1268
    %v1273 = vand.u32 2147483647, %v946
    %vm1274 = vcmp.eq.f32.partialorder %v1273, 8.507059e+37
    %v1275 = vand.u32 %v946, 2147483648
    %v1276 = vor.u32 1.1754944e-38, %v1275
    %v1277 = vsel %vm1274, %v1276, %v1272
    %v1278 = vmul.f32 1.0, %v1277
    %v1279 = vrcp.pop %v947
    %v1280 = vmul.f32 %v947, %v1279
    %v1281 = vsub.f32 1.0, %v1280
    %v1282 = vmul.f32 %v1279, %v1281
    %v1283 = vadd.f32 %v1279, %v1282
    %vm1284 = vweird.f32 %v947
    %vm1285 = vweird.f32 %v1279
    %vm1286 = vmor %vm1284, %vm1285
    %v1287 = vsel %vm1286, %v1279, %v1283
    %v1288 = vand.u32 2147483647, %v947
    %vm1289 = vcmp.eq.f32.partialorder %v1288, 8.507059e+37
    %v1290 = vand.u32 %v947, 2147483648
    %v1291 = vor.u32 1.1754944e-38, %v1290
    %v1292 = vsel %vm1289, %v1291, %v1287
    %v1293 = vmul.f32 1.0, %v1292
    %v1294 = vrcp.pop %v948
    %v1295 = vmul.f32 %v948, %v1294
    %v1296 = vsub.f32 1.0, %v1295
    %v1297 = vmul.f32 %v1294, %v1296
    %v1298 = vadd.f32 %v1294, %v1297
    %vm1299 = vweird.f32 %v948
    %vm1300 = vweird.f32 %v1294
    %vm1301 = vmor %vm1299, %vm1300
    %v1302 = vsel %vm1301, %v1294, %v1298
    %v1303 = vand.u32 2147483647, %v948
    %vm1304 = vcmp.eq.f32.partialorder %v1303, 8.507059e+37
    %v1305 = vand.u32 %v948, 2147483648
    %v1306 = vor.u32 1.1754944e-38, %v1305
    %v1307 = vsel %vm1304, %v1306, %v1302
    %v1308 = vmul.f32 1.0, %v1307
    %v1309 = vmul.f32 %v782, %v963
    %v1310 = vmul.f32 %v785, %v978
    %v1311 = vmul.f32 %v788, %v993
    %v1312 = vmul.f32 %v791, %v1008
    %v1313 = vmul.f32 %v794, %v1023
    %v1314 = vmul.f32 %v797, %v1038
    %v1315 = vmul.f32 %v800, %v1053
    %v1316 = vmul.f32 %v803, %v1068
    %v1317 = vmul.f32 %v806, %v1083
    %v1318 = vmul.f32 %v809, %v1098
    %v1319 = vmul.f32 %v812, %v1113
    %v1320 = vmul.f32 %v815, %v1128
    %v1321 = vmul.f32 %v818, %v1143
    %v1322 = vmul.f32 %v821, %v1158
    %v1323 = vmul.f32 %v824, %v1173
    %v1324 = vmul.f32 %v827, %v1188
    %v1325 = vmul.f32 %v830, %v1203
    %v1326 = vmul.f32 %v833, %v1218
    %v1327 = vmul.f32 %v836, %v1233
    %v1328 = vmul.f32 %v839, %v1248
    %v1329 = vmul.f32 %v842, %v1263
    %v1330 = vmul.f32 %v845, %v1278
    %v1331 = vmul.f32 %v848, %v1293
    %v1332 = vmul.f32 %v851, %v1308
    %v1333 = vld [vmem:[%s13] sm:$0x3f]
    %v1334 = vld [vmem:[%s13 + $0x8] sm:$0x3f]
    %v1336 = vsel %vm691, %v1334, 0
    %1338 = vmatpush.msra.mxu0 %v1324
    %1339 = vmatpush.msra.mxu0 %v1323
    %1340 = vmatpush.msra.mxu0 %v1322
    %1341 = vmatpush.msra.mxu0 %v1321
    %1342 = vmatpush.msra.mxu0 %v1320
    %1343 = vmatpush.msra.mxu0 %v1319
    %1344 = vmatpush.msra.mxu0 %v1318
    %1345 = vmatpush.msra.mxu0 %v1317
    %1346 = vmatpush.msra.mxu0 %v1316
    %1347 = vmatpush.msra.mxu0 %v1315
    %1348 = vmatpush.msra.mxu0 %v1314
    %1349 = vmatpush.msra.mxu0 %v1313
    %1350 = vmatpush.msra.mxu0 %v1312
    %1351 = vmatpush.msra.mxu0 %v1311
    %1352 = vmatpush.msra.mxu0 %v1310
    %1353 = vmatpush.msra.mxu0 %v1309
    %1354 = vmatmul.f32.gmra.mxu0 %v1333
    %v1355 = vpop.f32.mrf.mxu0
    %v1356 = vadd.f32 0.0, %v1355
    %1357 = vdwg.mxu0
    %1358 = vmatpush.msra.mxu0 0.0
    %1359 = vmatpush.msra.mxu0 0.0
    %1360 = vmatpush.msra.mxu0 0.0
    %1361 = vmatpush.msra.mxu0 0.0
    %1362 = vmatpush.msra.mxu0 0.0
    %1363 = vmatpush.msra.mxu0 0.0
    %1364 = vmatpush.msra.mxu0 0.0
    %1365 = vmatpush.msra.mxu0 0.0
    %1366 = vmatpush.msra.mxu0 %v1332
    %1367 = vmatpush.msra.mxu0 %v1331
    %1368 = vmatpush.msra.mxu0 %v1330
    %1369 = vmatpush.msra.mxu0 %v1329
    %1370 = vmatpush.msra.mxu0 %v1328
    %1371 = vmatpush.msra.mxu0 %v1327
    %1372 = vmatpush.msra.mxu0 %v1326
    %1373 = vmatpush.msra.mxu0 %v1325
    %1374 = vmatmul.f32.gmra.mxu0 %v1336
    %v1375 = vpop.f32.mrf.mxu0
    %v1376 = vadd.f32 %v1356, %v1375
    %1377 = vdwg.mxu0
    %v1378 = vld [vmem:[%s7] sm:$0xff]
    %v1379 = vld [vmem:[%s7 + $0x8] sm:$0xff]
    %v1380 = vld [vmem:[%s7 + $0x10] sm:$0xff]
    %v1381 = vld [vmem:[%s7 + $0x18] sm:$0xff]
    %v1382 = vld [vmem:[%s8] sm:$0x1]
    %v1384 = vperm.slane %v1382, 0
    %vm1386 = vcmask 261120
    %v1388 = vsel %vm1386, %v1376, 0
    %1390 = vmatpush.msra.mxu0 0.0
    %1391 = vmatpush.msra.mxu0 0.0
    %1392 = vmatpush.msra.mxu0 0.0
    %1393 = vmatpush.msra.mxu0 0.0
    %1394 = vmatpush.msra.mxu0 0.0
    %1395 = vmatpush.msra.mxu0 0.0
    %1396 = vmatpush.msra.mxu0 0.0
    %1397 = vmatpush.msra.mxu0 0.0
    %1398 = vmatpush.msra.mxu0 0.0
    %1399 = vmatpush.msra.mxu0 0.0
    %1400 = vmatpush.msra.mxu0 0.0
    %1401 = vmatpush.msra.mxu0 0.0
    %1402 = vmatpush.msra.mxu0 %v1381
    %1403 = vmatpush.msra.mxu0 %v1380
    %1404 = vmatpush.msra.mxu0 %v1379
    %1405 = vmatpush.msra.mxu0 %v1378
    %1406 = vmatmul.f32.gmra.mxu0 %v1388
    %v1407 = vpop.f32.mrf.mxu0
    %v1408 = vadd.f32 %v1384, %v1407
    %1409 = vdwg.mxu0
    %v1410 = vmax.f32 %v1408, 0.0
    %v1411 = vld [vmem:[%s9] sm:$0x3]
    %v1412 = vld [vmem:[%s10] sm:$0x1]
    %v1414 = vperm.slane %v1412, 0
    %vm1416 = vcmask 15360
    %v1418 = vsel %vm1416, %v1410, 0
    %vm1420 = vcmask 1041408
    %v1422 = vsel %vm1420, %v1411, 0
    %1424 = vmatpush.msra.mxu0 0.0
    %1425 = vmatpush.msra.mxu0 0.0
    %1426 = vmatpush.msra.mxu0 0.0
    %1427 = vmatpush.msra.mxu0 0.0
    %1428 = vmatpush.msra.mxu0 0.0
    %1429 = vmatpush.msra.mxu0 0.0
    %1430 = vmatpush.msra.mxu0 0.0
    %1431 = vmatpush.msra.mxu0 0.0
    %1432 = vmatpush.msra.mxu0 0.0
    %1433 = vmatpush.msra.mxu0 0.0
    %1434 = vmatpush.msra.mxu0 0.0
    %1435 = vmatpush.msra.mxu0 0.0
    %1436 = vmatpush.msra.mxu0 0.0
    %1437 = vmatpush.msra.mxu0 0.0
    %1438 = vmatpush.msra.mxu0 0.0
    %1439 = vmatpush.msra.mxu0 %v1422
    %1440 = vmatmul.f32.gmra.mxu0 %v1418
    %v1441 = vpop.f32.mrf.mxu0
    %v1442 = vadd.f32 %v1414, %v1441
    %1443 = vdwg.mxu0
    %v1444 = vxor.u32 %v1442, 2147483648
    %v1445 = vmul.f32 %v1444, 1.442695
    %v1446 = vpow.pop %v1445
    %v1447 = vadd.f32 %v1446, 1.0
    %v1448 = vrcp.pop %v1447
    %v1449 = vmul.f32 %v1447, %v1448
    %v1450 = vsub.f32 1.0, %v1449
    %v1451 = vmul.f32 %v1448, %v1450
    %v1452 = vadd.f32 %v1448, %v1451
    %vm1453 = vweird.f32 %v1447
    %vm1454 = vweird.f32 %v1448
    %vm1455 = vmor %vm1453, %vm1454
    %v1456 = vsel %vm1455, %v1448, %v1452
    %v1457 = vand.u32 2147483647, %v1447
    %vm1458 = vcmp.eq.f32.partialorder %v1457, 8.507059e+37
    %v1459 = vand.u32 %v1447, 2147483648
    %v1460 = vor.u32 1.1754944e-38, %v1459
    %v1461 = vsel %vm1458, %v1460, %v1456
    %v1462 = vmul.f32 1.0, %v1461
    %v1463 = vld [vmem:[%s14] sm:$0xff]
    %v1464 = vld [vmem:[%s14 + $0x8] sm:$0xff]
    %v1465 = vld [vmem:[%s14 + $0x10] sm:$0xff]
    %v1466 = vld [vmem:[%s14 + $0x18] sm:$0xff]
    %v1467 = vld [vmem:[%s14 + $0x20] sm:$0xff]
    %v1468 = vld [vmem:[%s14 + $0x28] sm:$0xff]
    %v1469 = vld [vmem:[%s14 + $0x30] sm:$0xff]
    %v1470 = vld [vmem:[%s14 + $0x38] sm:$0xff]
    %v1471 = vld [vmem:[%s14 + $0x40] sm:$0xff]
    %v1472 = vld [vmem:[%s14 + $0x48] sm:$0xff]
    %v1473 = vld [vmem:[%s14 + $0x50] sm:$0xff]
    %v1474 = vld [vmem:[%s14 + $0x58] sm:$0xff]
    %v1475 = vld [vmem:[%s14 + $0x60] sm:$0xff]
    %v1476 = vld [vmem:[%s14 + $0x68] sm:$0xff]
    %v1477 = vld [vmem:[%s14 + $0x70] sm:$0xff]
    %v1478 = vld [vmem:[%s14 + $0x78] sm:$0xff]
    %v1479 = vld [vmem:[%s14 + $0x80] sm:$0xff]
    %v1480 = vld [vmem:[%s14 + $0x88] sm:$0xff]
    %v1481 = vld [vmem:[%s14 + $0x90] sm:$0xff]
    %v1482 = vld [vmem:[%s14 + $0x98] sm:$0xff]
    %v1483 = vld [vmem:[%s14 + $0xa0] sm:$0xff]
    %v1484 = vld [vmem:[%s14 + $0xa8] sm:$0xff]
    %v1485 = vld [vmem:[%s14 + $0xb0] sm:$0xff]
    %v1486 = vld [vmem:[%s14 + $0xb8] sm:$0xff]
    %vm1487 = vcmask 48128
    %v1489 = vsel %vm1487, %v1463, 0
    %v1492 = vsel %vm1487, %v1464, 0
    %v1495 = vsel %vm1487, %v1465, 0
    %v1498 = vsel %vm1487, %v1466, 0
    %v1501 = vsel %vm1487, %v1467, 0
    %v1504 = vsel %vm1487, %v1468, 0
    %v1507 = vsel %vm1487, %v1469, 0
    %v1510 = vsel %vm1487, %v1470, 0
    %v1513 = vsel %vm1487, %v1471, 0
    %v1516 = vsel %vm1487, %v1472, 0
    %v1519 = vsel %vm1487, %v1473, 0
    %v1522 = vsel %vm1487, %v1474, 0
    %v1525 = vsel %vm1487, %v1475, 0
    %v1528 = vsel %vm1487, %v1476, 0
    %v1531 = vsel %vm1487, %v1477, 0
    %v1534 = vsel %vm1487, %v1478, 0
    %v1537 = vsel %vm1487, %v1479, 0
    %v1540 = vsel %vm1487, %v1480, 0
    %v1543 = vsel %vm1487, %v1481, 0
    %v1546 = vsel %vm1487, %v1482, 0
    %v1549 = vsel %vm1487, %v1483, 0
    %v1552 = vsel %vm1487, %v1484, 0
    %v1555 = vsel %vm1487, %v1485, 0
    %v1558 = vsel %vm1487, %v1486, 0
    %vm1560 = vcmask 1045504
    %v1562 = vsel %vm1560, %v1462, 0
    %1564 = vmatpush.msra.mxu0 0.0
    %1565 = vmatpush.msra.mxu0 0.0
    %1566 = vmatpush.msra.mxu0 0.0
    %1567 = vmatpush.msra.mxu0 0.0
    %1568 = vmatpush.msra.mxu0 0.0
    %1569 = vmatpush.msra.mxu0 0.0
    %1570 = vmatpush.msra.mxu0 0.0
    %1571 = vmatpush.msra.mxu0 0.0
    %1572 = vmatpush.msra.mxu0 0.0
    %1573 = vmatpush.msra.mxu0 0.0
    %1574 = vmatpush.msra.mxu0 0.0
    %1575 = vmatpush.msra.mxu0 0.0
    %1576 = vmatpush.msra.mxu0 0.0
    %1577 = vmatpush.msra.mxu0 0.0
    %1578 = vmatpush.msra.mxu0 0.0
    %1579 = vmatpush.msra.mxu0 %v1562
    %1580 = vmatmul.f32.gmra.mxu0 %v1489
    %v1581 = vpop.f32.mrf.mxu0
    %v1582 = vadd.f32 0.0, %v1581
    %1583 = vmatmul.f32.gmra.mxu0 %v1492
    %v1584 = vpop.f32.mrf.mxu0
    %v1585 = vadd.f32 0.0, %v1584
    %1586 = vmatmul.f32.gmra.mxu0 %v1495
    %v1587 = vpop.f32.mrf.mxu0
    %v1588 = vadd.f32 0.0, %v1587
    %1589 = vmatmul.f32.gmra.mxu0 %v1498
    %v1590 = vpop.f32.mrf.mxu0
    %v1591 = vadd.f32 0.0, %v1590
    %1592 = vmatmul.f32.gmra.mxu0 %v1501
    %v1593 = vpop.f32.mrf.mxu0
    %v1594 = vadd.f32 0.0, %v1593
    %1595 = vmatmul.f32.gmra.mxu0 %v1504
    %v1596 = vpop.f32.mrf.mxu0
    %v1597 = vadd.f32 0.0, %v1596
    %1598 = vmatmul.f32.gmra.mxu0 %v1507
    %v1599 = vpop.f32.mrf.mxu0
    %v1600 = vadd.f32 0.0, %v1599
    %1601 = vmatmul.f32.gmra.mxu0 %v1510
    %v1602 = vpop.f32.mrf.mxu0
    %v1603 = vadd.f32 0.0, %v1602
    %1604 = vmatmul.f32.gmra.mxu0 %v1513
    %v1605 = vpop.f32.mrf.mxu0
    %v1606 = vadd.f32 0.0, %v1605
    %1607 = vmatmul.f32.gmra.mxu0 %v1516
    %v1608 = vpop.f32.mrf.mxu0
    %v1609 = vadd.f32 0.0, %v1608
    %1610 = vmatmul.f32.gmra.mxu0 %v1519
    %v1611 = vpop.f32.mrf.mxu0
    %v1612 = vadd.f32 0.0, %v1611
    %1613 = vmatmul.f32.gmra.mxu0 %v1522
    %v1614 = vpop.f32.mrf.mxu0
    %v1615 = vadd.f32 0.0, %v1614
    %1616 = vmatmul.f32.gmra.mxu0 %v1525
    %v1617 = vpop.f32.mrf.mxu0
    %v1618 = vadd.f32 0.0, %v1617
    %1619 = vmatmul.f32.gmra.mxu0 %v1528
    %v1620 = vpop.f32.mrf.mxu0
    %v1621 = vadd.f32 0.0, %v1620
    %1622 = vmatmul.f32.gmra.mxu0 %v1531
    %v1623 = vpop.f32.mrf.mxu0
    %v1624 = vadd.f32 0.0, %v1623
    %1625 = vmatmul.f32.gmra.mxu0 %v1534
    %v1626 = vpop.f32.mrf.mxu0
    %v1627 = vadd.f32 0.0, %v1626
    %1628 = vmatmul.f32.gmra.mxu0 %v1537
    %v1629 = vpop.f32.mrf.mxu0
    %v1630 = vadd.f32 0.0, %v1629
    %1631 = vmatmul.f32.gmra.mxu0 %v1540
    %v1632 = vpop.f32.mrf.mxu0
    %v1633 = vadd.f32 0.0, %v1632
    %1634 = vmatmul.f32.gmra.mxu0 %v1543
    %v1635 = vpop.f32.mrf.mxu0
    %v1636 = vadd.f32 0.0, %v1635
    %1637 = vmatmul.f32.gmra.mxu0 %v1546
    %v1638 = vpop.f32.mrf.mxu0
    %v1639 = vadd.f32 0.0, %v1638
    %1640 = vmatmul.f32.gmra.mxu0 %v1549
    %v1641 = vpop.f32.mrf.mxu0
    %v1642 = vadd.f32 0.0, %v1641
    %1643 = vmatmul.f32.gmra.mxu0 %v1552
    %v1644 = vpop.f32.mrf.mxu0
    %v1645 = vadd.f32 0.0, %v1644
    %1646 = vmatmul.f32.gmra.mxu0 %v1555
    %v1647 = vpop.f32.mrf.mxu0
    %v1648 = vadd.f32 0.0, %v1647
    %1649 = vmatmul.f32.gmra.mxu0 %v1558
    %v1650 = vpop.f32.mrf.mxu0
    %v1651 = vadd.f32 0.0, %v1650
    %1652 = vdwg.mxu0
    %v1653 = vmul.f32 %v1309, %v1582
    %v1654 = vmul.f32 %v1310, %v1585
    %v1655 = vmul.f32 %v1311, %v1588
    %v1656 = vmul.f32 %v1312, %v1591
    %v1657 = vmul.f32 %v1313, %v1594
    %v1658 = vmul.f32 %v1314, %v1597
    %v1659 = vmul.f32 %v1315, %v1600
    %v1660 = vmul.f32 %v1316, %v1603
    %v1661 = vmul.f32 %v1317, %v1606
    %v1662 = vmul.f32 %v1318, %v1609
    %v1663 = vmul.f32 %v1319, %v1612
    %v1664 = vmul.f32 %v1320, %v1615
    %v1665 = vmul.f32 %v1321, %v1618
    %v1666 = vmul.f32 %v1322, %v1621
    %v1667 = vmul.f32 %v1323, %v1624
    %v1668 = vmul.f32 %v1324, %v1627
    %v1669 = vmul.f32 %v1325, %v1630
    %v1670 = vmul.f32 %v1326, %v1633
    %v1671 = vmul.f32 %v1327, %v1636
    %v1672 = vmul.f32 %v1328, %v1639
    %v1673 = vmul.f32 %v1329, %v1642
    %v1674 = vmul.f32 %v1330, %v1645
    %v1675 = vmul.f32 %v1331, %v1648
    %v1676 = vmul.f32 %v1332, %v1651
    %v1677 = vld [vmem:[%s11] sm:$0xff]
    %v1678 = vld [vmem:[%s11 + $0x8] sm:$0xff]
    %v1679 = vld [vmem:[%s11 + $0x10] sm:$0xff]
    %v1680 = vld [vmem:[%s11 + $0x18] sm:$0xff]
    %v1681 = vld [vmem:[%s12] sm:$0x1]
    %v1683 = vperm.slane %v1681, 0
    %v1686 = vsel %vm1386, %v1653, 0
    %v1689 = vsel %vm1386, %v1654, 0
    %v1692 = vsel %vm1386, %v1655, 0
    %v1695 = vsel %vm1386, %v1656, 0
    %v1698 = vsel %vm1386, %v1657, 0
    %v1701 = vsel %vm1386, %v1658, 0
    %v1704 = vsel %vm1386, %v1659, 0
    %v1707 = vsel %vm1386, %v1660, 0
    %v1710 = vsel %vm1386, %v1661, 0
    %v1713 = vsel %vm1386, %v1662, 0
    %v1716 = vsel %vm1386, %v1663, 0
    %v1719 = vsel %vm1386, %v1664, 0
    %v1722 = vsel %vm1386, %v1665, 0
    %v1725 = vsel %vm1386, %v1666, 0
    %v1728 = vsel %vm1386, %v1667, 0
    %v1731 = vsel %vm1386, %v1668, 0
    %v1734 = vsel %vm1386, %v1669, 0
    %v1737 = vsel %vm1386, %v1670, 0
    %v1740 = vsel %vm1386, %v1671, 0
    %v1743 = vsel %vm1386, %v1672, 0
    %v1746 = vsel %vm1386, %v1673, 0
    %v1749 = vsel %vm1386, %v1674, 0
    %v1752 = vsel %vm1386, %v1675, 0
    %v1755 = vsel %vm1386, %v1676, 0
    %1757 = vmatpush.msra.mxu0 0.0
    %1758 = vmatpush.msra.mxu0 0.0
    %1759 = vmatpush.msra.mxu0 0.0
    %1760 = vmatpush.msra.mxu0 0.0
    %1761 = vmatpush.msra.mxu0 0.0
    %1762 = vmatpush.msra.mxu0 0.0
    %1763 = vmatpush.msra.mxu0 0.0
    %1764 = vmatpush.msra.mxu0 0.0
    %1765 = vmatpush.msra.mxu0 0.0
    %1766 = vmatpush.msra.mxu0 0.0
    %1767 = vmatpush.msra.mxu0 0.0
    %1768 = vmatpush.msra.mxu0 0.0
    %1769 = vmatpush.msra.mxu0 %v1680
    %1770 = vmatpush.msra.mxu0 %v1679
    %1771 = vmatpush.msra.mxu0 %v1678
    %1772 = vmatpush.msra.mxu0 %v1677
    %1773 = vmatmul.f32.gmra.mxu0 %v1686
    %v1774 = vpop.f32.mrf.mxu0
    %v1775 = vadd.f32 %v1683, %v1774
    %1776 = vmatmul.f32.gmra.mxu0 %v1689
    %v1777 = vpop.f32.mrf.mxu0
    %v1778 = vadd.f32 %v1683, %v1777
    %1779 = vmatmul.f32.gmra.mxu0 %v1692
    %v1780 = vpop.f32.mrf.mxu0
    %v1781 = vadd.f32 %v1683, %v1780
    %1782 = vmatmul.f32.gmra.mxu0 %v1695
    %v1783 = vpop.f32.mrf.mxu0
    %v1784 = vadd.f32 %v1683, %v1783
    %1785 = vmatmul.f32.gmra.mxu0 %v1698
    %v1786 = vpop.f32.mrf.mxu0
    %v1787 = vadd.f32 %v1683, %v1786
    %1788 = vmatmul.f32.gmra.mxu0 %v1701
    %v1789 = vpop.f32.mrf.mxu0
    %v1790 = vadd.f32 %v1683, %v1789
    %1791 = vmatmul.f32.gmra.mxu0 %v1704
    %v1792 = vpop.f32.mrf.mxu0
    %v1793 = vadd.f32 %v1683, %v1792
    %1794 = vmatmul.f32.gmra.mxu0 %v1707
    %v1795 = vpop.f32.mrf.mxu0
    %v1796 = vadd.f32 %v1683, %v1795
    %1797 = vmatmul.f32.gmra.mxu0 %v1710
    %v1798 = vpop.f32.mrf.mxu0
    %v1799 = vadd.f32 %v1683, %v1798
    %1800 = vmatmul.f32.gmra.mxu0 %v1713
    %v1801 = vpop.f32.mrf.mxu0
    %v1802 = vadd.f32 %v1683, %v1801
    %1803 = vmatmul.f32.gmra.mxu0 %v1716
    %v1804 = vpop.f32.mrf.mxu0
    %v1805 = vadd.f32 %v1683, %v1804
    %1806 = vmatmul.f32.gmra.mxu0 %v1719
    %v1807 = vpop.f32.mrf.mxu0
    %v1808 = vadd.f32 %v1683, %v1807
    %1809 = vmatmul.f32.gmra.mxu0 %v1722
    %v1810 = vpop.f32.mrf.mxu0
    %v1811 = vadd.f32 %v1683, %v1810
    %1812 = vmatmul.f32.gmra.mxu0 %v1725
    %v1813 = vpop.f32.mrf.mxu0
    %v1814 = vadd.f32 %v1683, %v1813
    %1815 = vmatmul.f32.gmra.mxu0 %v1728
    %v1816 = vpop.f32.mrf.mxu0
    %v1817 = vadd.f32 %v1683, %v1816
    %1818 = vmatmul.f32.gmra.mxu0 %v1731
    %v1819 = vpop.f32.mrf.mxu0
    %v1820 = vadd.f32 %v1683, %v1819
    %1821 = vmatmul.f32.gmra.mxu0 %v1734
    %v1822 = vpop.f32.mrf.mxu0
    %v1823 = vadd.f32 %v1683, %v1822
    %1824 = vmatmul.f32.gmra.mxu0 %v1737
    %v1825 = vpop.f32.mrf.mxu0
    %v1826 = vadd.f32 %v1683, %v1825
    %1827 = vmatmul.f32.gmra.mxu0 %v1740
    %v1828 = vpop.f32.mrf.mxu0
    %v1829 = vadd.f32 %v1683, %v1828
    %1830 = vmatmul.f32.gmra.mxu0 %v1743
    %v1831 = vpop.f32.mrf.mxu0
    %v1832 = vadd.f32 %v1683, %v1831
    %1833 = vmatmul.f32.gmra.mxu0 %v1746
    %v1834 = vpop.f32.mrf.mxu0
    %v1835 = vadd.f32 %v1683, %v1834
    %1836 = vmatmul.f32.gmra.mxu0 %v1749
    %v1837 = vpop.f32.mrf.mxu0
    %v1838 = vadd.f32 %v1683, %v1837
    %1839 = vmatmul.f32.gmra.mxu0 %v1752
    %v1840 = vpop.f32.mrf.mxu0
    %v1841 = vadd.f32 %v1683, %v1840
    %1842 = vmatmul.f32.gmra.mxu0 %v1755
    %v1843 = vpop.f32.mrf.mxu0
    %v1844 = vadd.f32 %v1683, %v1843
    %1845 = vdwg.mxu0
    %v1846 = vld [vmem:[%s15] sm:$0xff]
    %v1847 = vld [vmem:[%s15 + $0x8] sm:$0xff]
    %v1848 = vld [vmem:[%s15 + $0x10] sm:$0xff]
    %v1849 = vld [vmem:[%s15 + $0x18] sm:$0xff]
    %v1850 = vld [vmem:[%s15 + $0x20] sm:$0xff]
    %v1851 = vld [vmem:[%s15 + $0x28] sm:$0xff]
    %v1852 = vld [vmem:[%s15 + $0x30] sm:$0xff]
    %v1853 = vld [vmem:[%s15 + $0x38] sm:$0xff]
    %v1854 = vld [vmem:[%s15 + $0x40] sm:$0xff]
    %v1855 = vld [vmem:[%s15 + $0x48] sm:$0xff]
    %v1856 = vld [vmem:[%s15 + $0x50] sm:$0xff]
    %v1857 = vld [vmem:[%s15 + $0x58] sm:$0xff]
    %v1858 = vld [vmem:[%s15 + $0x60] sm:$0xff]
    %v1859 = vld [vmem:[%s15 + $0x68] sm:$0xff]
    %v1860 = vld [vmem:[%s15 + $0x70] sm:$0xff]
    %v1861 = vld [vmem:[%s15 + $0x78] sm:$0xff]
    %v1862 = vld [vmem:[%s15 + $0x80] sm:$0xff]
    %v1863 = vld [vmem:[%s15 + $0x88] sm:$0xff]
    %v1864 = vld [vmem:[%s15 + $0x90] sm:$0xff]
    %v1865 = vld [vmem:[%s15 + $0x98] sm:$0xff]
    %v1866 = vld [vmem:[%s15 + $0xa0] sm:$0xff]
    %v1867 = vld [vmem:[%s15 + $0xa8] sm:$0xff]
    %v1868 = vld [vmem:[%s15 + $0xb0] sm:$0xff]
    %v1869 = vld [vmem:[%s15 + $0xb8] sm:$0xff]
    %v1871 = vsel %vm691, %v1847, 0
    %v1874 = vsel %vm691, %v1849, 0
    %v1877 = vsel %vm691, %v1851, 0
    %v1880 = vsel %vm691, %v1853, 0
    %v1883 = vsel %vm691, %v1855, 0
    %v1886 = vsel %vm691, %v1857, 0
    %v1889 = vsel %vm691, %v1859, 0
    %v1892 = vsel %vm691, %v1861, 0
    %v1895 = vsel %vm691, %v1863, 0
    %v1898 = vsel %vm691, %v1865, 0
    %v1901 = vsel %vm691, %v1867, 0
    %v1904 = vsel %vm691, %v1869, 0
    %1906 = vmatpush.msra.mxu0 %v1820
    %1907 = vmatpush.msra.mxu0 %v1817
    %1908 = vmatpush.msra.mxu0 %v1814
    %1909 = vmatpush.msra.mxu0 %v1811
    %1910 = vmatpush.msra.mxu0 %v1808
    %1911 = vmatpush.msra.mxu0 %v1805
    %1912 = vmatpush.msra.mxu0 %v1802
    %1913 = vmatpush.msra.mxu0 %v1799
    %1914 = vmatpush.msra.mxu0 %v1796
    %1915 = vmatpush.msra.mxu0 %v1793
    %1916 = vmatpush.msra.mxu0 %v1790
    %1917 = vmatpush.msra.mxu0 %v1787
    %1918 = vmatpush.msra.mxu0 %v1784
    %1919 = vmatpush.msra.mxu0 %v1781
    %1920 = vmatpush.msra.mxu0 %v1778
    %1921 = vmatpush.msra.mxu0 %v1775
    %1922 = vmatmul.f32.gmra.mxu0 %v1846
    %v1923 = vpop.f32.mrf.mxu0
    %v1924 = vadd.f32 0.0, %v1923
    %1925 = vmatmul.f32.gmra.mxu0 %v1848
    %v1926 = vpop.f32.mrf.mxu0
    %v1927 = vadd.f32 0.0, %v1926
    %1928 = vmatmul.f32.gmra.mxu0 %v1850
    %v1929 = vpop.f32.mrf.mxu0
    %v1930 = vadd.f32 0.0, %v1929
    %1931 = vmatmul.f32.gmra.mxu0 %v1852
    %v1932 = vpop.f32.mrf.mxu0
    %v1933 = vadd.f32 0.0, %v1932
    %1934 = vmatmul.f32.gmra.mxu0 %v1854
    %v1935 = vpop.f32.mrf.mxu0
    %v1936 = vadd.f32 0.0, %v1935
    %1937 = vmatmul.f32.gmra.mxu0 %v1856
    %v1938 = vpop.f32.mrf.mxu0
    %v1939 = vadd.f32 0.0, %v1938
    %1940 = vmatmul.f32.gmra.mxu0 %v1858
    %v1941 = vpop.f32.mrf.mxu0
    %v1942 = vadd.f32 0.0, %v1941
    %1943 = vmatmul.f32.gmra.mxu0 %v1860
    %v1944 = vpop.f32.mrf.mxu0
    %v1945 = vadd.f32 0.0, %v1944
    %1946 = vmatmul.f32.gmra.mxu0 %v1862
    %v1947 = vpop.f32.mrf.mxu0
    %v1948 = vadd.f32 0.0, %v1947
    %1949 = vmatmul.f32.gmra.mxu0 %v1864
    %v1950 = vpop.f32.mrf.mxu0
    %v1951 = vadd.f32 0.0, %v1950
    %1952 = vmatmul.f32.gmra.mxu0 %v1866
    %v1953 = vpop.f32.mrf.mxu0
    %v1954 = vadd.f32 0.0, %v1953
    %1955 = vmatmul.f32.gmra.mxu0 %v1868
    %v1956 = vpop.f32.mrf.mxu0
    %v1957 = vadd.f32 0.0, %v1956
    %1958 = vdwg.mxu0
    %1959 = vmatpush.msra.mxu0 0.0
    %1960 = vmatpush.msra.mxu0 0.0
    %1961 = vmatpush.msra.mxu0 0.0
    %1962 = vmatpush.msra.mxu0 0.0
    %1963 = vmatpush.msra.mxu0 0.0
    %1964 = vmatpush.msra.mxu0 0.0
    %1965 = vmatpush.msra.mxu0 0.0
    %1966 = vmatpush.msra.mxu0 0.0
    %1967 = vmatpush.msra.mxu0 %v1844
    %1968 = vmatpush.msra.mxu0 %v1841
    %1969 = vmatpush.msra.mxu0 %v1838
    %1970 = vmatpush.msra.mxu0 %v1835
    %1971 = vmatpush.msra.mxu0 %v1832
    %1972 = vmatpush.msra.mxu0 %v1829
    %1973 = vmatpush.msra.mxu0 %v1826
    %1974 = vmatpush.msra.mxu0 %v1823
    %1975 = vmatmul.f32.gmra.mxu0 %v1871
    %v1976 = vpop.f32.mrf.mxu0
    %v1977 = vadd.f32 %v1924, %v1976
    %1978 = vmatmul.f32.gmra.mxu0 %v1874
    %v1979 = vpop.f32.mrf.mxu0
    %v1980 = vadd.f32 %v1927, %v1979
    %1981 = vmatmul.f32.gmra.mxu0 %v1877
    %v1982 = vpop.f32.mrf.mxu0
    %v1983 = vadd.f32 %v1930, %v1982
    %1984 = vmatmul.f32.gmra.mxu0 %v1880
    %v1985 = vpop.f32.mrf.mxu0
    %v1986 = vadd.f32 %v1933, %v1985
    %1987 = vmatmul.f32.gmra.mxu0 %v1883
    %v1988 = vpop.f32.mrf.mxu0
    %v1989 = vadd.f32 %v1936, %v1988
    %1990 = vmatmul.f32.gmra.mxu0 %v1886
    %v1991 = vpop.f32.mrf.mxu0
    %v1992 = vadd.f32 %v1939, %v1991
    %1993 = vmatmul.f32.gmra.mxu0 %v1889
    %v1994 = vpop.f32.mrf.mxu0
    %v1995 = vadd.f32 %v1942, %v1994
    %1996 = vmatmul.f32.gmra.mxu0 %v1892
    %v1997 = vpop.f32.mrf.mxu0
    %v1998 = vadd.f32 %v1945, %v1997
    %1999 = vmatmul.f32.gmra.mxu0 %v1895
    %v2000 = vpop.f32.mrf.mxu0
    %v2001 = vadd.f32 %v1948, %v2000
    %2002 = vmatmul.f32.gmra.mxu0 %v1898
    %v2003 = vpop.f32.mrf.mxu0
    %v2004 = vadd.f32 %v1951, %v2003
    %2005 = vmatmul.f32.gmra.mxu0 %v1901
    %v2006 = vpop.f32.mrf.mxu0
    %v2007 = vadd.f32 %v1954, %v2006
    %2008 = vmatmul.f32.gmra.mxu0 %v1904
    %v2009 = vpop.f32.mrf.mxu0
    %v2010 = vadd.f32 %v1957, %v2009
    %2011 = vdwg.mxu0
    %v2012 = vld [vmem:[%s16] sm:$0xff]
    %v2013 = vld [vmem:[%s16 + $0x8] sm:$0xff]
    %vm2014 = vcmask 130048
    %v2016 = vsel %vm2014, %v1977, 0
    %v2019 = vsel %vm2014, %v1980, 0
    %v2022 = vsel %vm2014, %v1983, 0
    %v2025 = vsel %vm2014, %v1986, 0
    %v2028 = vsel %vm2014, %v1989, 0
    %v2031 = vsel %vm2014, %v1992, 0
    %v2034 = vsel %vm2014, %v1995, 0
    %v2037 = vsel %vm2014, %v1998, 0
    %v2040 = vsel %vm2014, %v2001, 0
    %v2043 = vsel %vm2014, %v2004, 0
    %v2046 = vsel %vm2014, %v2007, 0
    %v2049 = vsel %vm2014, %v2010, 0
    %2051 = vmatpush.msra.mxu0 0.0
    %2052 = vmatpush.msra.mxu0 0.0
    %2053 = vmatpush.msra.mxu0 0.0
    %2054 = vmatpush.msra.mxu0 0.0
    %2055 = vmatpush.msra.mxu0 0.0
    %2056 = vmatpush.msra.mxu0 0.0
    %2057 = vmatpush.msra.mxu0 0.0
    %2058 = vmatpush.msra.mxu0 0.0
    %2059 = vmatpush.msra.mxu0 0.0
    %2060 = vmatpush.msra.mxu0 0.0
    %2061 = vmatpush.msra.mxu0 0.0
    %2062 = vmatpush.msra.mxu0 0.0
    %2063 = vmatpush.msra.mxu0 0.0
    %2064 = vmatpush.msra.mxu0 0.0
    %2065 = vmatpush.msra.mxu0 %v2013
    %2066 = vmatpush.msra.mxu0 %v2012
    %2067 = vmatmul.f32.gmra.mxu0 %v2016
    %v2068 = vpop.f32.mrf.mxu0
    %v2069 = vadd.f32 0.0, %v2068
    %2070 = vmatmul.f32.gmra.mxu0 %v2019
    %v2071 = vpop.f32.mrf.mxu0
    %v2072 = vadd.f32 0.0, %v2071
    %2073 = vmatmul.f32.gmra.mxu0 %v2022
    %v2074 = vpop.f32.mrf.mxu0
    %v2075 = vadd.f32 0.0, %v2074
    %2076 = vmatmul.f32.gmra.mxu0 %v2025
    %v2077 = vpop.f32.mrf.mxu0
    %v2078 = vadd.f32 0.0, %v2077
    %2079 = vmatmul.f32.gmra.mxu0 %v2028
    %v2080 = vpop.f32.mrf.mxu0
    %v2081 = vadd.f32 0.0, %v2080
    %2082 = vmatmul.f32.gmra.mxu0 %v2031
    %v2083 = vpop.f32.mrf.mxu0
    %v2084 = vadd.f32 0.0, %v2083
    %2085 = vmatmul.f32.gmra.mxu0 %v2034
    %v2086 = vpop.f32.mrf.mxu0
    %v2087 = vadd.f32 0.0, %v2086
    %2088 = vmatmul.f32.gmra.mxu0 %v2037
    %v2089 = vpop.f32.mrf.mxu0
    %v2090 = vadd.f32 0.0, %v2089
    %2091 = vmatmul.f32.gmra.mxu0 %v2040
    %v2092 = vpop.f32.mrf.mxu0
    %v2093 = vadd.f32 0.0, %v2092
    %2094 = vmatmul.f32.gmra.mxu0 %v2043
    %v2095 = vpop.f32.mrf.mxu0
    %v2096 = vadd.f32 0.0, %v2095
    %2097 = vmatmul.f32.gmra.mxu0 %v2046
    %v2098 = vpop.f32.mrf.mxu0
    %v2099 = vadd.f32 0.0, %v2098
    %2100 = vmatmul.f32.gmra.mxu0 %v2049
    %v2101 = vpop.f32.mrf.mxu0
    %v2102 = vadd.f32 0.0, %v2101
    %2103 = vdwg.mxu0
    %2104 = vst.msk [vmem:[#allocation2] sm:$0xff] %vm1386, %v2069
    %2105 = vst.msk [vmem:[#allocation2 + $0x8] sm:$0xff] %vm1386, %v2072
    %2106 = vst.msk [vmem:[#allocation2 + $0x10] sm:$0xff] %vm1386, %v2075
    %2107 = vst.msk [vmem:[#allocation2 + $0x18] sm:$0xff] %vm1386, %v2078
    %2108 = vst.msk [vmem:[#allocation2 + $0x20] sm:$0xff] %vm1386, %v2081
    %2109 = vst.msk [vmem:[#allocation2 + $0x28] sm:$0xff] %vm1386, %v2084
    %2110 = vst.msk [vmem:[#allocation2 + $0x30] sm:$0xff] %vm1386, %v2087
    %2111 = vst.msk [vmem:[#allocation2 + $0x38] sm:$0xff] %vm1386, %v2090
    %2112 = vst.msk [vmem:[#allocation2 + $0x40] sm:$0xff] %vm1386, %v2093
    %2113 = vst.msk [vmem:[#allocation2 + $0x48] sm:$0xff] %vm1386, %v2096
    %2114 = vst.msk [vmem:[#allocation2 + $0x50] sm:$0xff] %vm1386, %v2099
    %2115 = vst.msk [vmem:[#allocation2 + $0x58] sm:$0xff] %vm1386, %v2102
    %v2116 = vld [vmem:[%s1] sm:$0x3f]
    %v2117 = vld [vmem:[%s17] sm:$0xff]
    %v2118 = vld [vmem:[%s18] sm:$0x1]
    %v2120 = vperm.slane %v2118, 0
    %vm2122 = vcmask 64512
    %v2124 = vsel %vm2122, %v2116, 0
    %2126 = vmatpush.msra.mxu0 0.0
    %2127 = vmatpush.msra.mxu0 0.0
    %2128 = vmatpush.msra.mxu0 0.0
    %2129 = vmatpush.msra.mxu0 0.0
    %2130 = vmatpush.msra.mxu0 0.0
    %2131 = vmatpush.msra.mxu0 0.0
    %2132 = vmatpush.msra.mxu0 0.0
    %2133 = vmatpush.msra.mxu0 0.0
    %2134 = vmatpush.msra.mxu0 0.0
    %2135 = vmatpush.msra.mxu0 0.0
    %2136 = vmatpush.msra.mxu0 0.0
    %2137 = vmatpush.msra.mxu0 0.0
    %2138 = vmatpush.msra.mxu0 0.0
    %2139 = vmatpush.msra.mxu0 0.0
    %2140 = vmatpush.msra.mxu0 0.0
    %2141 = vmatpush.msra.mxu0 %v2117
    %2142 = vmatmul.f32.gmra.mxu0 %v2124
    %v2143 = vpop.f32.mrf.mxu0
    %v2144 = vadd.f32 %v2120, %v2143
    %2145 = vdwg.mxu0
    %v2146 = vmul.f32 %v2144, 0.6666667
    %v2147 = vld [vmem:[%s2] sm:$0x3f]
    %v2148 = vadd.f32 %v2146, %v2147
    %v2149 = vxor.u32 %v2148, 2147483648
    %v2150 = vmul.f32 %v2149, 1.442695
    %v2151 = vpow.pop %v2150
    %v2152 = vadd.f32 %v2151, 1.0
    %v2153 = vrcp.pop %v2152
    %v2154 = vmul.f32 %v2152, %v2153
    %v2155 = vsub.f32 1.0, %v2154
    %v2156 = vmul.f32 %v2153, %v2155
    %v2157 = vadd.f32 %v2153, %v2156
    %vm2158 = vweird.f32 %v2152
    %vm2159 = vweird.f32 %v2153
    %vm2160 = vmor %vm2158, %vm2159
    %v2161 = vsel %vm2160, %v2153, %v2157
    %v2162 = vand.u32 2147483647, %v2152
    %vm2163 = vcmp.eq.f32.partialorder %v2162, 8.507059e+37
    %v2164 = vand.u32 %v2152, 2147483648
    %v2165 = vor.u32 1.1754944e-38, %v2164
    %v2166 = vsel %vm2163, %v2165, %v2161
    %v2167 = vmul.f32 1.0, %v2166
    %v2168 = vmul.f32 %v2148, %v2167
    %vm2169 = vcmask 128000
    %2170 = vst.msk [vmem:[#allocation4] sm:$0x3f] %vm2169, %v2168
    // Predicated region
    $region78: #{edge_block_forward.5} parent=1 // pred_check
      _
    $region79: #{edge_block_forward.5} parent=1 // pred_check_branch
      %2172 = sbr.rel (0) target = $region81
    $region80: #{edge_block_forward.5} parent=1 // pred_region
      %2174 = vsyncadd [#allocation3], 0
      %s2175 = sshll.u32 [#allocation2], 4
      %s2176 = int_to_ptr.vmem [resolvable:$true] %s2175
      %s2177 = sshll.u32 %s19, 4
      %s2178 = int_to_ptr.hbm [resolvable:$true] %s2177
      %2183 = dma.vmem_to_hbm [thread:$0]  %s2176, 1536, %s2178, [#allocation3], 128, 128, 8
    $region81: #{edge_block_forward.5} parent=1 // pred_fallthru
      _
    // Predicated region
    $region82: #{edge_block_forward.5} parent=1 // pred_check
      _
    $region83: #{edge_block_forward.5} parent=1 // pred_check_branch
      %2185 = sbr.rel (0) target = $region85
    $region84: #{edge_block_forward.5} parent=1 // pred_region
      %2187 = vsyncadd [#allocation5], 0
      %s2189 = sshll.u32 [#allocation4], 4
      %s2190 = int_to_ptr.vmem [resolvable:$true] %s2189
      %s2191 = sshll.u32 %s20, 4
      %s2192 = int_to_ptr.hbm [resolvable:$true] %s2191
      %2194 = dma.vmem_to_hbm [thread:$0]  %s2190, 128, %s2192, [#allocation5]
    $region85: #{edge_block_forward.5} parent=1 // pred_fallthru
      _
    // Predicated region
    $region86: #{edge_block_forward.5} parent=1 // pred_check
      _
    $region87: #{edge_block_forward.5} parent=1 // pred_check_branch
      %2196 = sbr.rel (0) target = $region89
    $region88: #{edge_block_forward.5} parent=1 // pred_region
      %2198 = dma.done [#allocation3], 1536
    $region89: #{edge_block_forward.5} parent=1 // pred_fallthru
      _
    // Predicated region
    $region90: #{edge_block_forward.5} parent=1 // pred_check
      _
    $region91: #{edge_block_forward.5} parent=1 // pred_check_branch
      %2200 = sbr.rel (0) target = $region93
    $region92: #{edge_block_forward.5} parent=1 // pred_region
      %2202 = dma.done [#allocation5], 128
    $region93: #{edge_block_forward.5} parent=1 // pred_fallthru
      _
    %2203 = vsyncpa [#allocation3], 1
    %2204 = vsyncpa [#allocation5], 1

</llo_original>
